<compile_context>
chip_gen: v7x
topology: tpu7x:2x2x1
jax: 0.10.0
libtpu: 0.0.40
codegen_flags: <defaults>
</compile_context>

<pallas_src>
import math
import jax
import jax.numpy as jnp
from jax import lax
from jax.experimental import pallas as pl
from jax.experimental.pallas import tpu as pltpu


def _round_up(n, m):
    return ((n + m - 1) // m) * m


def _lstm_seq_kernel(xp_ref, h0_ref, c0_ref, wh_ref, hs_ref, cs_ref, h_ref, c_ref):
    """One block of Tb timesteps per grid point.

    xp_ref : (Tb, Bp, 4*Hp)  precomputed x @ Wx + b for the Tb steps
    wh_ref : (Hp, 4*Hp)      recurrent weight (VMEM-resident across the grid)
    h_ref, c_ref : (Bp, Hp)  carried state (VMEM scratch, persists across grid)
    """
    tb = pl.program_id(0)
    Tb = xp_ref.shape[0]
    Hp = h_ref.shape[1]

    @pl.when(tb == 0)
    def _():
        h_ref[...] = h0_ref[...]
        c_ref[...] = c0_ref[...]

    # sigmoid(v) = 0.5*tanh(0.5*v) + 0.5  -> single EUP push (vs exp + recip).
    def _sig(v):
        return 0.5 * jnp.tanh(0.5 * v) + 0.5

    def step(i, carry):
        # Only the recurrent half of the gate pre-activation is computed here;
        # the input projection (+ bias) was hoisted out of the serial loop.
        gates = xp_ref[i] + jnp.dot(
            h_ref[...], wh_ref[...], preferred_element_type=jnp.float32)

        # Gate order along the 4*Hp axis is [i, f, c, o]; each slice is a whole
        # 128-lane-aligned block.
        gate_i = _sig(gates[:, 0 * Hp:1 * Hp])
        gate_f = _sig(gates[:, 1 * Hp:2 * Hp])
        gate_c = jnp.tanh(gates[:, 2 * Hp:3 * Hp])
        gate_o = _sig(gates[:, 3 * Hp:4 * Hp])

        c1 = gate_f * c_ref[...] + gate_i * gate_c
        h1 = gate_o * jnp.tanh(c1)

        h_ref[...] = h1
        c_ref[...] = c1
        hs_ref[i] = h1.astype(hs_ref.dtype)
        cs_ref[i] = c1.astype(cs_ref.dtype)
        return carry

    lax.fori_loop(0, Tb, step, 0, unroll=True)


def lstm_untied_sequence(x_seq, h0, c0, wx, wh, b, *, time_block=8):
    """Run the untied LSTM cell over a whole (T, B, I) sequence in one pallas_call.

    wx : (I, 4H), wh : (H, 4H), b : (4H,)  -- gate order [i, f, c, o].
    Returns (h_seq, c_seq), each (T, B, H).
    """
    T, B, I = x_seq.shape
    H = h0.shape[1]
    assert wx.shape == (I, 4 * H) and wh.shape == (H, 4 * H) and b.shape == (4 * H,)

    Ip = _round_up(I, 128)
    Hp = _round_up(H, 128)
    Bp = _round_up(B, 8)
    Tb = max(1, min(time_block, T))
    Tp = _round_up(T, Tb)
    f32 = jnp.float32

    # Pad each gate's H columns up to Hp (lane alignment) and the contraction
    # rows (I->Ip, H->Hp) with zeros, so pad lanes contribute exactly zero.
    def _pad_gate_cols(mat):
        r = mat.shape[0]
        m = mat.reshape(r, 4, H).astype(f32)
        m = jnp.pad(m, ((0, 0), (0, 0), (0, Hp - H)))
        return m.reshape(r, 4 * Hp)

    wx_p = jnp.pad(_pad_gate_cols(wx), ((0, Ip - I), (0, 0)))     # (Ip, 4Hp)
    wh_p = jnp.pad(_pad_gate_cols(wh), ((0, Hp - H), (0, 0)))     # (Hp, 4Hp)
    b_p = _pad_gate_cols(b[None, :])                              # (1, 4Hp)

    x_p = jnp.pad(x_seq.astype(f32),
                  ((0, Tp - T), (0, Bp - B), (0, Ip - I)))        # (Tp, Bp, Ip)
    h0_p = jnp.pad(h0.astype(f32), ((0, Bp - B), (0, Hp - H)))    # (Bp, Hp)
    c0_p = jnp.pad(c0.astype(f32), ((0, Bp - B), (0, Hp - H)))    # (Bp, Hp)

    # Input projection + bias hoisted out of the serial recurrence:
    # one large MXU-friendly matmul over T*Bp rows (plain XLA in the wrapper).
    xp = (x_p.reshape(Tp * Bp, Ip) @ wx_p + b_p).reshape(Tp, Bp, 4 * Hp)

    grid_spec = pltpu.PrefetchScalarGridSpec(
        num_scalar_prefetch=0,
        grid=(Tp // Tb,),
        in_specs=[
            # Tb-step block of the precomputed projection, double-buffered over
            # the sequence (VMEM use independent of T -> safe on v7x's 64 MiB).
            pl.BlockSpec((Tb, Bp, 4 * Hp), lambda tb: (tb, 0, 0)),
            pl.BlockSpec((Bp, Hp), lambda tb: (0, 0)),            # h0 (resident)
            pl.BlockSpec((Bp, Hp), lambda tb: (0, 0)),            # c0 (resident)
            pl.BlockSpec((Hp, 4 * Hp), lambda tb: (0, 0)),        # Wh (resident)
        ],
        out_specs=(
            pl.BlockSpec((Tb, Bp, Hp), lambda tb: (tb, 0, 0)),    # h block
            pl.BlockSpec((Tb, Bp, Hp), lambda tb: (tb, 0, 0)),    # c block
        ),
        scratch_shapes=[
            pltpu.VMEM((Bp, Hp), f32),        # carried h state
            pltpu.VMEM((Bp, Hp), f32),        # carried c state
        ],
    )

    h_seq, c_seq = pl.pallas_call(
        _lstm_seq_kernel,
        out_shape=(jax.ShapeDtypeStruct((Tp, Bp, Hp), x_seq.dtype),
                   jax.ShapeDtypeStruct((Tp, Bp, Hp), x_seq.dtype)),
        grid_spec=grid_spec,
        compiler_params=pltpu.CompilerParams(
            dimension_semantics=("arbitrary",)),   # time carries state -> sequential
    )(xp, h0_p, c0_p, wh_p)

    return h_seq[:T, :B, :H], c_seq[:T, :B, :H]


def lstm_cell_untied(x, h0, c0, wx, wh, b):
    """Single-step LSTM cell (matches the PyTorch module's forward): T == 1."""
    h_seq, c_seq = lstm_untied_sequence(x[None], h0, c0, wx, wh, b, time_block=1)
    return h_seq[0], c_seq[0]


def init_params(key, input_size, hidden_size, dtype=jnp.float32):
    """Matches reset_parameters(): uniform(-std, std) with std = 1/sqrt(self.hiddenSize);
    the module reassigns self.hiddenSize = inputSize, so std = 1/sqrt(inputSize)."""
    std = 1.0 / math.sqrt(input_size)
    names_shapes = [
        ("w_xi", (hidden_size, input_size)),
        ("w_xf", (hidden_size, input_size)),
        ("w_xo", (hidden_size, input_size)),
        ("w_xc", (hidden_size, input_size)),
        ("w_hi", (hidden_size, hidden_size)),
        ("w_hf", (hidden_size, hidden_size)),
        ("w_ho", (hidden_size, hidden_size)),
        ("w_hc", (hidden_size, hidden_size)),
        ("b_i", (hidden_size,)),
        ("b_f", (hidden_size,)),
        ("b_o", (hidden_size,)),
        ("b_c", (hidden_size,)),
    ]
    keys = jax.random.split(key, len(names_shapes))
    params = {}
    for k, (name, shape) in zip(keys, names_shapes):
        params[name] = jax.random.uniform(k, shape, dtype, minval=-std, maxval=std)
    return params


def pack_params(p):
    # Gate order [i, f, c, o]; F.linear(x, W) == x @ W.T, so pre-transpose.
    wx = jnp.concatenate([p["w_xi"], p["w_xf"], p["w_xc"], p["w_xo"]], axis=0).T  # (I, 4H)
    wh = jnp.concatenate([p["w_hi"], p["w_hf"], p["w_hc"], p["w_ho"]], axis=0).T  # (H, 4H)
    b = jnp.concatenate([p["b_i"], p["b_f"], p["b_c"], p["b_o"]], axis=0)         # (4H,)
    return wx, wh, b


def reference_forward(x, h0, c0, p):
    lin = lambda a, w: a @ w.T
    gi = jax.nn.sigmoid(lin(x, p["w_xi"]) + lin(h0, p["w_hi"]) + p["b_i"])
    gf = jax.nn.sigmoid(lin(x, p["w_xf"]) + lin(h0, p["w_hf"]) + p["b_f"])
    gc = jnp.tanh(lin(x, p["w_xc"]) + lin(h0, p["w_hc"]) + p["b_c"])
    go = jax.nn.sigmoid(lin(x, p["w_xo"]) + lin(h0, p["w_ho"]) + p["b_o"])
    c1 = gf * c0 + gi * gc
    h1 = go * jnp.tanh(c1)
    return h1, c1


if __name__ == "__main__":
    input_size = 16
    hidden_size = 32
    batch = 8
    seq_len = 24

    key = jax.random.PRNGKey(0)
    k_p, k_x, k_h, k_c = jax.random.split(key, 4)

    params = init_params(k_p, input_size, hidden_size)
    x_seq = jax.random.normal(k_x, (seq_len, batch, input_size), jnp.float32)
    h0 = jax.random.normal(k_h, (batch, hidden_size), jnp.float32)
    c0 = jax.random.normal(k_c, (batch, hidden_size), jnp.float32)

    wx, wh, b = pack_params(params)

    # Fused sequence: one pallas_call for all T timesteps (time-blocked grid).
    h_seq, c_seq = jax.block_until_ready(
        lstm_untied_sequence(x_seq, h0, c0, wx, wh, b, time_block=8))

    # Reference: apply the module's forward step-by-step.
    h_r, c_r = h0, c0
    for t in range(seq_len):
        h_r, c_r = reference_forward(x_seq[t], h_r, c_r, params)
        assert jnp.allclose(h_seq[t], h_r, atol=1e-4, rtol=1e-4), f"h mismatch at t={t}"
        assert jnp.allclose(c_seq[t], c_r, atol=1e-4, rtol=1e-4), f"c mismatch at t={t}"

    # Single-step call (module semantics exactly).
    h1, c1 = jax.block_until_ready(lstm_cell_untied(x_seq[0], h0, c0, wx, wh, b))
    h1_r, c1_r = reference_forward(x_seq[0], h0, c0, params)
    assert jnp.allclose(h1, h1_r, atol=1e-5, rtol=1e-5), "h1 mismatch"
    assert jnp.allclose(c1, c1_r, atol=1e-5, rtol=1e-5), "c1 mismatch"

    print("KERNEL_OK")
</pallas_src>

<mosaic_0001>
module attributes {stable_mosaic.version = 11 : i64} {
  func.func @_lstm_seq_kernel(%arg0: i32, %arg1: memref<8x8x512xf32, #tpu.memory_space<vmem>>, %arg2: memref<8x128xf32, #tpu.memory_space<vmem>>, %arg3: memref<8x128xf32, #tpu.memory_space<vmem>>, %arg4: memref<128x512xf32, #tpu.memory_space<vmem>>, %arg5: memref<8x8x128xf32, #tpu.memory_space<vmem>>, %arg6: memref<8x8x128xf32, #tpu.memory_space<vmem>>, %arg7: memref<8x128xf32, #tpu.memory_space<vmem>>, %arg8: memref<8x128xf32, #tpu.memory_space<vmem>>) attributes {dimension_semantics = [#tpu.dimension_semantics<arbitrary>], iteration_bounds = array<i64: 3>, scalar_prefetch = 0 : i64, scratch_operands = 2 : i64, tpu.core_type = #tpu.core_type<tc>, window_params = [{transform_indices = @transform_0, window_bounds = array<i64: 8, 8, 512>}, {pipeline_mode = #tpu.pipeline_mode<synchronous>, transform_indices = @transform_1, window_bounds = array<i64: 8, 128>}, {pipeline_mode = #tpu.pipeline_mode<synchronous>, transform_indices = @transform_2, window_bounds = array<i64: 8, 128>}, {pipeline_mode = #tpu.pipeline_mode<synchronous>, transform_indices = @transform_3, window_bounds = array<i64: 128, 512>}, {transform_indices = @transform_4, window_bounds = array<i64: 8, 8, 128>}, {transform_indices = @transform_5, window_bounds = array<i64: 8, 8, 128>}]} {
    %c0_i32 = arith.constant 0 : i32
    %0 = arith.cmpi eq, %arg0, %c0_i32 : i32
    %1 = arith.extui %0 : i1 to i32
    %c0_i32_0 = arith.constant 0 : i32
    %2 = arith.cmpi ne, %1, %c0_i32_0 : i32
    scf.if %2 {
      %c0_208 = arith.constant 0 : index
      %c0_209 = arith.constant 0 : index
      %395 = vector.load %arg2[%c0_208, %c0_209] : memref<8x128xf32, #tpu.memory_space<vmem>>, vector<8x128xf32>
      %c0_210 = arith.constant 0 : index
      %c0_211 = arith.constant 0 : index
      %396 = vector.load %arg7[%c0_210, %c0_211] : memref<8x128xf32, #tpu.memory_space<vmem>>, vector<8x128xf32>
      tpu.vector_store %arg7[%c0_210, %c0_211], %395 {strides = array<i32>} : memref<8x128xf32, #tpu.memory_space<vmem>>, vector<8x128xf32>,
      %c0_212 = arith.constant 0 : index
      %c0_213 = arith.constant 0 : index
      %397 = vector.load %arg3[%c0_212, %c0_213] : memref<8x128xf32, #tpu.memory_space<vmem>>, vector<8x128xf32>
      %c0_214 = arith.constant 0 : index
      %c0_215 = arith.constant 0 : index
      %398 = vector.load %arg8[%c0_214, %c0_215] : memref<8x128xf32, #tpu.memory_space<vmem>>, vector<8x128xf32>
      tpu.vector_store %arg8[%c0_214, %c0_215], %397 {strides = array<i32>} : memref<8x128xf32, #tpu.memory_space<vmem>>, vector<8x128xf32>,
    } else {
    }
    %c0_i32_1 = arith.constant 0 : i32
    %3 = arith.index_cast %c0_i32_1 : i32 to index
    %c0 = arith.constant 0 : index
    %c0_2 = arith.constant 0 : index
    %4 = vector.load %arg1[%3, %c0, %c0_2] : memref<8x8x512xf32, #tpu.memory_space<vmem>>, vector<1x8x512xf32>
    %5 = vector.shape_cast %4 : vector<1x8x512xf32> to vector<8x512xf32>
    %c0_3 = arith.constant 0 : index
    %c0_4 = arith.constant 0 : index
    %6 = vector.load %arg7[%c0_3, %c0_4] : memref<8x128xf32, #tpu.memory_space<vmem>>, vector<8x128xf32>
    %c0_5 = arith.constant 0 : index
    %c0_6 = arith.constant 0 : index
    %7 = vector.load %arg4[%c0_5, %c0_6] : memref<128x512xf32, #tpu.memory_space<vmem>>, vector<128x512xf32>
    %cst = arith.constant dense<0.000000e+00> : vector<8x512xf32>
    %8 = tpu.matmul %6, %7, %cst {dimension_numbers = #tpu.dot_dimension_numbers<[1], [0], [0], [1], [0, 0, 1, 1], [], []>} : vector<8x128xf32>, vector<128x512xf32>, vector<8x512xf32> -> vector<8x512xf32>
    %9 = arith.addf %5, %8 : vector<8x512xf32>
    %10 = vector.extract_strided_slice %9 {offsets = [0, 0], sizes = [8, 128], strides = [1, 1]} : vector<8x512xf32> to vector<8x128xf32>
    %cst_7 = arith.constant 5.000000e-01 : f32
    %11 = vector.broadcast %cst_7 : f32 to vector<8x128xf32>
    %12 = arith.mulf %11, %10 : vector<8x128xf32>
    %13 = math.tanh %12 : vector<8x128xf32>
    %cst_8 = arith.constant 5.000000e-01 : f32
    %14 = vector.broadcast %cst_8 : f32 to vector<8x128xf32>
    %15 = arith.mulf %14, %13 : vector<8x128xf32>
    %cst_9 = arith.constant 5.000000e-01 : f32
    %16 = vector.broadcast %cst_9 : f32 to vector<8x128xf32>
    %17 = arith.addf %15, %16 : vector<8x128xf32>
    %18 = vector.extract_strided_slice %9 {offsets = [0, 128], sizes = [8, 128], strides = [1, 1]} : vector<8x512xf32> to vector<8x128xf32>
    %cst_10 = arith.constant 5.000000e-01 : f32
    %19 = vector.broadcast %cst_10 : f32 to vector<8x128xf32>
    %20 = arith.mulf %19, %18 : vector<8x128xf32>
    %21 = math.tanh %20 : vector<8x128xf32>
    %cst_11 = arith.constant 5.000000e-01 : f32
    %22 = vector.broadcast %cst_11 : f32 to vector<8x128xf32>
    %23 = arith.mulf %22, %21 : vector<8x128xf32>
    %cst_12 = arith.constant 5.000000e-01 : f32
    %24 = vector.broadcast %cst_12 : f32 to vector<8x128xf32>
    %25 = arith.addf %23, %24 : vector<8x128xf32>
    %26 = vector.extract_strided_slice %9 {offsets = [0, 256], sizes = [8, 128], strides = [1, 1]} : vector<8x512xf32> to vector<8x128xf32>
    %27 = math.tanh %26 : vector<8x128xf32>
    %28 = vector.extract_strided_slice %9 {offsets = [0, 384], sizes = [8, 128], strides = [1, 1]} : vector<8x512xf32> to vector<8x128xf32>
    %cst_13 = arith.constant 5.000000e-01 : f32
    %29 = vector.broadcast %cst_13 : f32 to vector<8x128xf32>
    %30 = arith.mulf %29, %28 : vector<8x128xf32>
    %31 = math.tanh %30 : vector<8x128xf32>
    %cst_14 = arith.constant 5.000000e-01 : f32
    %32 = vector.broadcast %cst_14 : f32 to vector<8x128xf32>
    %33 = arith.mulf %32, %31 : vector<8x128xf32>
    %cst_15 = arith.constant 5.000000e-01 : f32
    %34 = vector.broadcast %cst_15 : f32 to vector<8x128xf32>
    %35 = arith.addf %33, %34 : vector<8x128xf32>
    %c0_16 = arith.constant 0 : index
    %c0_17 = arith.constant 0 : index
    %36 = vector.load %arg8[%c0_16, %c0_17] : memref<8x128xf32, #tpu.memory_space<vmem>>, vector<8x128xf32>
    %37 = arith.mulf %25, %36 : vector<8x128xf32>
    %38 = arith.mulf %17, %27 : vector<8x128xf32>
    %39 = arith.addf %37, %38 : vector<8x128xf32>
    %40 = math.tanh %39 : vector<8x128xf32>
    %41 = arith.mulf %35, %40 : vector<8x128xf32>
    %c0_18 = arith.constant 0 : index
    %c0_19 = arith.constant 0 : index
    %42 = vector.load %arg7[%c0_18, %c0_19] : memref<8x128xf32, #tpu.memory_space<vmem>>, vector<8x128xf32>
    tpu.vector_store %arg7[%c0_18, %c0_19], %41 {strides = array<i32>} : memref<8x128xf32, #tpu.memory_space<vmem>>, vector<8x128xf32>,
    %c0_20 = arith.constant 0 : index
    %c0_21 = arith.constant 0 : index
    %43 = vector.load %arg8[%c0_20, %c0_21] : memref<8x128xf32, #tpu.memory_space<vmem>>, vector<8x128xf32>
    tpu.vector_store %arg8[%c0_20, %c0_21], %39 {strides = array<i32>} : memref<8x128xf32, #tpu.memory_space<vmem>>, vector<8x128xf32>,
    %44 = arith.index_cast %c0_i32_1 : i32 to index
    %c0_22 = arith.constant 0 : index
    %c0_23 = arith.constant 0 : index
    %45 = vector.load %arg5[%44, %c0_22, %c0_23] : memref<8x8x128xf32, #tpu.memory_space<vmem>>, vector<1x8x128xf32>
    %46 = vector.shape_cast %45 : vector<1x8x128xf32> to vector<8x128xf32>
    %47 = vector.shape_cast %41 : vector<8x128xf32> to vector<1x8x128xf32>
    tpu.vector_store %arg5[%44, %c0_22, %c0_23], %47 {strides = array<i32>} : memref<8x8x128xf32, #tpu.memory_space<vmem>>, vector<1x8x128xf32>,
    %48 = arith.index_cast %c0_i32_1 : i32 to index
    %c0_24 = arith.constant 0 : index
    %c0_25 = arith.constant 0 : index
    %49 = vector.load %arg6[%48, %c0_24, %c0_25] : memref<8x8x128xf32, #tpu.memory_space<vmem>>, vector<1x8x128xf32>
    %50 = vector.shape_cast %49 : vector<1x8x128xf32> to vector<8x128xf32>
    %51 = vector.shape_cast %39 : vector<8x128xf32> to vector<1x8x128xf32>
    tpu.vector_store %arg6[%48, %c0_24, %c0_25], %51 {strides = array<i32>} : memref<8x8x128xf32, #tpu.memory_space<vmem>>, vector<1x8x128xf32>,
    %c1_i32 = arith.constant 1 : i32
    %52 = arith.index_cast %c1_i32 : i32 to index
    %c0_26 = arith.constant 0 : index
    %c0_27 = arith.constant 0 : index
    %53 = vector.load %arg1[%52, %c0_26, %c0_27] : memref<8x8x512xf32, #tpu.memory_space<vmem>>, vector<1x8x512xf32>
    %54 = vector.shape_cast %53 : vector<1x8x512xf32> to vector<8x512xf32>
    %c0_28 = arith.constant 0 : index
    %c0_29 = arith.constant 0 : index
    %55 = vector.load %arg7[%c0_28, %c0_29] : memref<8x128xf32, #tpu.memory_space<vmem>>, vector<8x128xf32>
    %c0_30 = arith.constant 0 : index
    %c0_31 = arith.constant 0 : index
    %56 = vector.load %arg4[%c0_30, %c0_31] : memref<128x512xf32, #tpu.memory_space<vmem>>, vector<128x512xf32>
    %cst_32 = arith.constant dense<0.000000e+00> : vector<8x512xf32>
    %57 = tpu.matmul %55, %56, %cst_32 {dimension_numbers = #tpu.dot_dimension_numbers<[1], [0], [0], [1], [0, 0, 1, 1], [], []>} : vector<8x128xf32>, vector<128x512xf32>, vector<8x512xf32> -> vector<8x512xf32>
    %58 = arith.addf %54, %57 : vector<8x512xf32>
    %59 = vector.extract_strided_slice %58 {offsets = [0, 0], sizes = [8, 128], strides = [1, 1]} : vector<8x512xf32> to vector<8x128xf32>
    %cst_33 = arith.constant 5.000000e-01 : f32
    %60 = vector.broadcast %cst_33 : f32 to vector<8x128xf32>
    %61 = arith.mulf %60, %59 : vector<8x128xf32>
    %62 = math.tanh %61 : vector<8x128xf32>
    %cst_34 = arith.constant 5.000000e-01 : f32
    %63 = vector.broadcast %cst_34 : f32 to vector<8x128xf32>
    %64 = arith.mulf %63, %62 : vector<8x128xf32>
    %cst_35 = arith.constant 5.000000e-01 : f32
    %65 = vector.broadcast %cst_35 : f32 to vector<8x128xf32>
    %66 = arith.addf %64, %65 : vector<8x128xf32>
    %67 = vector.extract_strided_slice %58 {offsets = [0, 128], sizes = [8, 128], strides = [1, 1]} : vector<8x512xf32> to vector<8x128xf32>
    %cst_36 = arith.constant 5.000000e-01 : f32
    %68 = vector.broadcast %cst_36 : f32 to vector<8x128xf32>
    %69 = arith.mulf %68, %67 : vector<8x128xf32>
    %70 = math.tanh %69 : vector<8x128xf32>
    %cst_37 = arith.constant 5.000000e-01 : f32
    %71 = vector.broadcast %cst_37 : f32 to vector<8x128xf32>
    %72 = arith.mulf %71, %70 : vector<8x128xf32>
    %cst_38 = arith.constant 5.000000e-01 : f32
    %73 = vector.broadcast %cst_38 : f32 to vector<8x128xf32>
    %74 = arith.addf %72, %73 : vector<8x128xf32>
    %75 = vector.extract_strided_slice %58 {offsets = [0, 256], sizes = [8, 128], strides = [1, 1]} : vector<8x512xf32> to vector<8x128xf32>
    %76 = math.tanh %75 : vector<8x128xf32>
    %77 = vector.extract_strided_slice %58 {offsets = [0, 384], sizes = [8, 128], strides = [1, 1]} : vector<8x512xf32> to vector<8x128xf32>
    %cst_39 = arith.constant 5.000000e-01 : f32
    %78 = vector.broadcast %cst_39 : f32 to vector<8x128xf32>
    %79 = arith.mulf %78, %77 : vector<8x128xf32>
    %80 = math.tanh %79 : vector<8x128xf32>
    %cst_40 = arith.constant 5.000000e-01 : f32
    %81 = vector.broadcast %cst_40 : f32 to vector<8x128xf32>
    %82 = arith.mulf %81, %80 : vector<8x128xf32>
    %cst_41 = arith.constant 5.000000e-01 : f32
    %83 = vector.broadcast %cst_41 : f32 to vector<8x128xf32>
    %84 = arith.addf %82, %83 : vector<8x128xf32>
    %c0_42 = arith.constant 0 : index
    %c0_43 = arith.constant 0 : index
    %85 = vector.load %arg8[%c0_42, %c0_43] : memref<8x128xf32, #tpu.memory_space<vmem>>, vector<8x128xf32>
    %86 = arith.mulf %74, %85 : vector<8x128xf32>
    %87 = arith.mulf %66, %76 : vector<8x128xf32>
    %88 = arith.addf %86, %87 : vector<8x128xf32>
    %89 = math.tanh %88 : vector<8x128xf32>
    %90 = arith.mulf %84, %89 : vector<8x128xf32>
    %c0_44 = arith.constant 0 : index
    %c0_45 = arith.constant 0 : index
    %91 = vector.load %arg7[%c0_44, %c0_45] : memref<8x128xf32, #tpu.memory_space<vmem>>, vector<8x128xf32>
    tpu.vector_store %arg7[%c0_44, %c0_45], %90 {strides = array<i32>} : memref<8x128xf32, #tpu.memory_space<vmem>>, vector<8x128xf32>,
    %c0_46 = arith.constant 0 : index
    %c0_47 = arith.constant 0 : index
    %92 = vector.load %arg8[%c0_46, %c0_47] : memref<8x128xf32, #tpu.memory_space<vmem>>, vector<8x128xf32>
    tpu.vector_store %arg8[%c0_46, %c0_47], %88 {strides = array<i32>} : memref<8x128xf32, #tpu.memory_space<vmem>>, vector<8x128xf32>,
    %93 = arith.index_cast %c1_i32 : i32 to index
    %c0_48 = arith.constant 0 : index
    %c0_49 = arith.constant 0 : index
    %94 = vector.load %arg5[%93, %c0_48, %c0_49] : memref<8x8x128xf32, #tpu.memory_space<vmem>>, vector<1x8x128xf32>
    %95 = vector.shape_cast %94 : vector<1x8x128xf32> to vector<8x128xf32>
    %96 = vector.shape_cast %90 : vector<8x128xf32> to vector<1x8x128xf32>
    tpu.vector_store %arg5[%93, %c0_48, %c0_49], %96 {strides = array<i32>} : memref<8x8x128xf32, #tpu.memory_space<vmem>>, vector<1x8x128xf32>,
    %97 = arith.index_cast %c1_i32 : i32 to index
    %c0_50 = arith.constant 0 : index
    %c0_51 = arith.constant 0 : index
    %98 = vector.load %arg6[%97, %c0_50, %c0_51] : memref<8x8x128xf32, #tpu.memory_space<vmem>>, vector<1x8x128xf32>
    %99 = vector.shape_cast %98 : vector<1x8x128xf32> to vector<8x128xf32>
    %100 = vector.shape_cast %88 : vector<8x128xf32> to vector<1x8x128xf32>
    tpu.vector_store %arg6[%97, %c0_50, %c0_51], %100 {strides = array<i32>} : memref<8x8x128xf32, #tpu.memory_space<vmem>>, vector<1x8x128xf32>,
    %c2_i32 = arith.constant 2 : i32
    %101 = arith.index_cast %c2_i32 : i32 to index
    %c0_52 = arith.constant 0 : index
    %c0_53 = arith.constant 0 : index
    %102 = vector.load %arg1[%101, %c0_52, %c0_53] : memref<8x8x512xf32, #tpu.memory_space<vmem>>, vector<1x8x512xf32>
    %103 = vector.shape_cast %102 : vector<1x8x512xf32> to vector<8x512xf32>
    %c0_54 = arith.constant 0 : index
    %c0_55 = arith.constant 0 : index
    %104 = vector.load %arg7[%c0_54, %c0_55] : memref<8x128xf32, #tpu.memory_space<vmem>>, vector<8x128xf32>
    %c0_56 = arith.constant 0 : index
    %c0_57 = arith.constant 0 : index
    %105 = vector.load %arg4[%c0_56, %c0_57] : memref<128x512xf32, #tpu.memory_space<vmem>>, vector<128x512xf32>
    %cst_58 = arith.constant dense<0.000000e+00> : vector<8x512xf32>
    %106 = tpu.matmul %104, %105, %cst_58 {dimension_numbers = #tpu.dot_dimension_numbers<[1], [0], [0], [1], [0, 0, 1, 1], [], []>} : vector<8x128xf32>, vector<128x512xf32>, vector<8x512xf32> -> vector<8x512xf32>
    %107 = arith.addf %103, %106 : vector<8x512xf32>
    %108 = vector.extract_strided_slice %107 {offsets = [0, 0], sizes = [8, 128], strides = [1, 1]} : vector<8x512xf32> to vector<8x128xf32>
    %cst_59 = arith.constant 5.000000e-01 : f32
    %109 = vector.broadcast %cst_59 : f32 to vector<8x128xf32>
    %110 = arith.mulf %109, %108 : vector<8x128xf32>
    %111 = math.tanh %110 : vector<8x128xf32>
    %cst_60 = arith.constant 5.000000e-01 : f32
    %112 = vector.broadcast %cst_60 : f32 to vector<8x128xf32>
    %113 = arith.mulf %112, %111 : vector<8x128xf32>
    %cst_61 = arith.constant 5.000000e-01 : f32
    %114 = vector.broadcast %cst_61 : f32 to vector<8x128xf32>
    %115 = arith.addf %113, %114 : vector<8x128xf32>
    %116 = vector.extract_strided_slice %107 {offsets = [0, 128], sizes = [8, 128], strides = [1, 1]} : vector<8x512xf32> to vector<8x128xf32>
    %cst_62 = arith.constant 5.000000e-01 : f32
    %117 = vector.broadcast %cst_62 : f32 to vector<8x128xf32>
    %118 = arith.mulf %117, %116 : vector<8x128xf32>
    %119 = math.tanh %118 : vector<8x128xf32>
    %cst_63 = arith.constant 5.000000e-01 : f32
    %120 = vector.broadcast %cst_63 : f32 to vector<8x128xf32>
    %121 = arith.mulf %120, %119 : vector<8x128xf32>
    %cst_64 = arith.constant 5.000000e-01 : f32
    %122 = vector.broadcast %cst_64 : f32 to vector<8x128xf32>
    %123 = arith.addf %121, %122 : vector<8x128xf32>
    %124 = vector.extract_strided_slice %107 {offsets = [0, 256], sizes = [8, 128], strides = [1, 1]} : vector<8x512xf32> to vector<8x128xf32>
    %125 = math.tanh %124 : vector<8x128xf32>
    %126 = vector.extract_strided_slice %107 {offsets = [0, 384], sizes = [8, 128], strides = [1, 1]} : vector<8x512xf32> to vector<8x128xf32>
    %cst_65 = arith.constant 5.000000e-01 : f32
    %127 = vector.broadcast %cst_65 : f32 to vector<8x128xf32>
    %128 = arith.mulf %127, %126 : vector<8x128xf32>
    %129 = math.tanh %128 : vector<8x128xf32>
    %cst_66 = arith.constant 5.000000e-01 : f32
    %130 = vector.broadcast %cst_66 : f32 to vector<8x128xf32>
    %131 = arith.mulf %130, %129 : vector<8x128xf32>
    %cst_67 = arith.constant 5.000000e-01 : f32
    %132 = vector.broadcast %cst_67 : f32 to vector<8x128xf32>
    %133 = arith.addf %131, %132 : vector<8x128xf32>
    %c0_68 = arith.constant 0 : index
    %c0_69 = arith.constant 0 : index
    %134 = vector.load %arg8[%c0_68, %c0_69] : memref<8x128xf32, #tpu.memory_space<vmem>>, vector<8x128xf32>
    %135 = arith.mulf %123, %134 : vector<8x128xf32>
    %136 = arith.mulf %115, %125 : vector<8x128xf32>
    %137 = arith.addf %135, %136 : vector<8x128xf32>
    %138 = math.tanh %137 : vector<8x128xf32>
    %139 = arith.mulf %133, %138 : vector<8x128xf32>
    %c0_70 = arith.constant 0 : index
    %c0_71 = arith.constant 0 : index
    %140 = vector.load %arg7[%c0_70, %c0_71] : memref<8x128xf32, #tpu.memory_space<vmem>>, vector<8x128xf32>
    tpu.vector_store %arg7[%c0_70, %c0_71], %139 {strides = array<i32>} : memref<8x128xf32, #tpu.memory_space<vmem>>, vector<8x128xf32>,
    %c0_72 = arith.constant 0 : index
    %c0_73 = arith.constant 0 : index
    %141 = vector.load %arg8[%c0_72, %c0_73] : memref<8x128xf32, #tpu.memory_space<vmem>>, vector<8x128xf32>
    tpu.vector_store %arg8[%c0_72, %c0_73], %137 {strides = array<i32>} : memref<8x128xf32, #tpu.memory_space<vmem>>, vector<8x128xf32>,
    %142 = arith.index_cast %c2_i32 : i32 to index
    %c0_74 = arith.constant 0 : index
    %c0_75 = arith.constant 0 : index
    %143 = vector.load %arg5[%142, %c0_74, %c0_75] : memref<8x8x128xf32, #tpu.memory_space<vmem>>, vector<1x8x128xf32>
    %144 = vector.shape_cast %143 : vector<1x8x128xf32> to vector<8x128xf32>
    %145 = vector.shape_cast %139 : vector<8x128xf32> to vector<1x8x128xf32>
    tpu.vector_store %arg5[%142, %c0_74, %c0_75], %145 {strides = array<i32>} : memref<8x8x128xf32, #tpu.memory_space<vmem>>, vector<1x8x128xf32>,
    %146 = arith.index_cast %c2_i32 : i32 to index
    %c0_76 = arith.constant 0 : index
    %c0_77 = arith.constant 0 : index
    %147 = vector.load %arg6[%146, %c0_76, %c0_77] : memref<8x8x128xf32, #tpu.memory_space<vmem>>, vector<1x8x128xf32>
    %148 = vector.shape_cast %147 : vector<1x8x128xf32> to vector<8x128xf32>
    %149 = vector.shape_cast %137 : vector<8x128xf32> to vector<1x8x128xf32>
    tpu.vector_store %arg6[%146, %c0_76, %c0_77], %149 {strides = array<i32>} : memref<8x8x128xf32, #tpu.memory_space<vmem>>, vector<1x8x128xf32>,
    %c3_i32 = arith.constant 3 : i32
    %150 = arith.index_cast %c3_i32 : i32 to index
    %c0_78 = arith.constant 0 : index
    %c0_79 = arith.constant 0 : index
    %151 = vector.load %arg1[%150, %c0_78, %c0_79] : memref<8x8x512xf32, #tpu.memory_space<vmem>>, vector<1x8x512xf32>
    %152 = vector.shape_cast %151 : vector<1x8x512xf32> to vector<8x512xf32>
    %c0_80 = arith.constant 0 : index
    %c0_81 = arith.constant 0 : index
    %153 = vector.load %arg7[%c0_80, %c0_81] : memref<8x128xf32, #tpu.memory_space<vmem>>, vector<8x128xf32>
    %c0_82 = arith.constant 0 : index
    %c0_83 = arith.constant 0 : index
    %154 = vector.load %arg4[%c0_82, %c0_83] : memref<128x512xf32, #tpu.memory_space<vmem>>, vector<128x512xf32>
    %cst_84 = arith.constant dense<0.000000e+00> : vector<8x512xf32>
    %155 = tpu.matmul %153, %154, %cst_84 {dimension_numbers = #tpu.dot_dimension_numbers<[1], [0], [0], [1], [0, 0, 1, 1], [], []>} : vector<8x128xf32>, vector<128x512xf32>, vector<8x512xf32> -> vector<8x512xf32>
    %156 = arith.addf %152, %155 : vector<8x512xf32>
    %157 = vector.extract_strided_slice %156 {offsets = [0, 0], sizes = [8, 128], strides = [1, 1]} : vector<8x512xf32> to vector<8x128xf32>
    %cst_85 = arith.constant 5.000000e-01 : f32
    %158 = vector.broadcast %cst_85 : f32 to vector<8x128xf32>
    %159 = arith.mulf %158, %157 : vector<8x128xf32>
    %160 = math.tanh %159 : vector<8x128xf32>
    %cst_86 = arith.constant 5.000000e-01 : f32
    %161 = vector.broadcast %cst_86 : f32 to vector<8x128xf32>
    %162 = arith.mulf %161, %160 : vector<8x128xf32>
    %cst_87 = arith.constant 5.000000e-01 : f32
    %163 = vector.broadcast %cst_87 : f32 to vector<8x128xf32>
    %164 = arith.addf %162, %163 : vector<8x128xf32>
    %165 = vector.extract_strided_slice %156 {offsets = [0, 128], sizes = [8, 128], strides = [1, 1]} : vector<8x512xf32> to vector<8x128xf32>
    %cst_88 = arith.constant 5.000000e-01 : f32
    %166 = vector.broadcast %cst_88 : f32 to vector<8x128xf32>
    %167 = arith.mulf %166, %165 : vector<8x128xf32>
    %168 = math.tanh %167 : vector<8x128xf32>
    %cst_89 = arith.constant 5.000000e-01 : f32
    %169 = vector.broadcast %cst_89 : f32 to vector<8x128xf32>
    %170 = arith.mulf %169, %168 : vector<8x128xf32>
    %cst_90 = arith.constant 5.000000e-01 : f32
    %171 = vector.broadcast %cst_90 : f32 to vector<8x128xf32>
    %172 = arith.addf %170, %171 : vector<8x128xf32>
    %173 = vector.extract_strided_slice %156 {offsets = [0, 256], sizes = [8, 128], strides = [1, 1]} : vector<8x512xf32> to vector<8x128xf32>
    %174 = math.tanh %173 : vector<8x128xf32>
    %175 = vector.extract_strided_slice %156 {offsets = [0, 384], sizes = [8, 128], strides = [1, 1]} : vector<8x512xf32> to vector<8x128xf32>
    %cst_91 = arith.constant 5.000000e-01 : f32
    %176 = vector.broadcast %cst_91 : f32 to vector<8x128xf32>
    %177 = arith.mulf %176, %175 : vector<8x128xf32>
    %178 = math.tanh %177 : vector<8x128xf32>
    %cst_92 = arith.constant 5.000000e-01 : f32
    %179 = vector.broadcast %cst_92 : f32 to vector<8x128xf32>
    %180 = arith.mulf %179, %178 : vector<8x128xf32>
    %cst_93 = arith.constant 5.000000e-01 : f32
    %181 = vector.broadcast %cst_93 : f32 to vector<8x128xf32>
    %182 = arith.addf %180, %181 : vector<8x128xf32>
    %c0_94 = arith.constant 0 : index
    %c0_95 = arith.constant 0 : index
    %183 = vector.load %arg8[%c0_94, %c0_95] : memref<8x128xf32, #tpu.memory_space<vmem>>, vector<8x128xf32>
    %184 = arith.mulf %172, %183 : vector<8x128xf32>
    %185 = arith.mulf %164, %174 : vector<8x128xf32>
    %186 = arith.addf %184, %185 : vector<8x128xf32>
    %187 = math.tanh %186 : vector<8x128xf32>
    %188 = arith.mulf %182, %187 : vector<8x128xf32>
    %c0_96 = arith.constant 0 : index
    %c0_97 = arith.constant 0 : index
    %189 = vector.load %arg7[%c0_96, %c0_97] : memref<8x128xf32, #tpu.memory_space<vmem>>, vector<8x128xf32>
    tpu.vector_store %arg7[%c0_96, %c0_97], %188 {strides = array<i32>} : memref<8x128xf32, #tpu.memory_space<vmem>>, vector<8x128xf32>,
    %c0_98 = arith.constant 0 : index
    %c0_99 = arith.constant 0 : index
    %190 = vector.load %arg8[%c0_98, %c0_99] : memref<8x128xf32, #tpu.memory_space<vmem>>, vector<8x128xf32>
    tpu.vector_store %arg8[%c0_98, %c0_99], %186 {strides = array<i32>} : memref<8x128xf32, #tpu.memory_space<vmem>>, vector<8x128xf32>,
    %191 = arith.index_cast %c3_i32 : i32 to index
    %c0_100 = arith.constant 0 : index
    %c0_101 = arith.constant 0 : index
    %192 = vector.load %arg5[%191, %c0_100, %c0_101] : memref<8x8x128xf32, #tpu.memory_space<vmem>>, vector<1x8x128xf32>
    %193 = vector.shape_cast %192 : vector<1x8x128xf32> to vector<8x128xf32>
    %194 = vector.shape_cast %188 : vector<8x128xf32> to vector<1x8x128xf32>
    tpu.vector_store %arg5[%191, %c0_100, %c0_101], %194 {strides = array<i32>} : memref<8x8x128xf32, #tpu.memory_space<vmem>>, vector<1x8x128xf32>,
    %195 = arith.index_cast %c3_i32 : i32 to index
    %c0_102 = arith.constant 0 : index
    %c0_103 = arith.constant 0 : index
    %196 = vector.load %arg6[%195, %c0_102, %c0_103] : memref<8x8x128xf32, #tpu.memory_space<vmem>>, vector<1x8x128xf32>
    %197 = vector.shape_cast %196 : vector<1x8x128xf32> to vector<8x128xf32>
    %198 = vector.shape_cast %186 : vector<8x128xf32> to vector<1x8x128xf32>
    tpu.vector_store %arg6[%195, %c0_102, %c0_103], %198 {strides = array<i32>} : memref<8x8x128xf32, #tpu.memory_space<vmem>>, vector<1x8x128xf32>,
    %c4_i32 = arith.constant 4 : i32
    %199 = arith.index_cast %c4_i32 : i32 to index
    %c0_104 = arith.constant 0 : index
    %c0_105 = arith.constant 0 : index
    %200 = vector.load %arg1[%199, %c0_104, %c0_105] : memref<8x8x512xf32, #tpu.memory_space<vmem>>, vector<1x8x512xf32>
    %201 = vector.shape_cast %200 : vector<1x8x512xf32> to vector<8x512xf32>
    %c0_106 = arith.constant 0 : index
    %c0_107 = arith.constant 0 : index
    %202 = vector.load %arg7[%c0_106, %c0_107] : memref<8x128xf32, #tpu.memory_space<vmem>>, vector<8x128xf32>
    %c0_108 = arith.constant 0 : index
    %c0_109 = arith.constant 0 : index
    %203 = vector.load %arg4[%c0_108, %c0_109] : memref<128x512xf32, #tpu.memory_space<vmem>>, vector<128x512xf32>
    %cst_110 = arith.constant dense<0.000000e+00> : vector<8x512xf32>
    %204 = tpu.matmul %202, %203, %cst_110 {dimension_numbers = #tpu.dot_dimension_numbers<[1], [0], [0], [1], [0, 0, 1, 1], [], []>} : vector<8x128xf32>, vector<128x512xf32>, vector<8x512xf32> -> vector<8x512xf32>
    %205 = arith.addf %201, %204 : vector<8x512xf32>
    %206 = vector.extract_strided_slice %205 {offsets = [0, 0], sizes = [8, 128], strides = [1, 1]} : vector<8x512xf32> to vector<8x128xf32>
    %cst_111 = arith.constant 5.000000e-01 : f32
    %207 = vector.broadcast %cst_111 : f32 to vector<8x128xf32>
    %208 = arith.mulf %207, %206 : vector<8x128xf32>
    %209 = math.tanh %208 : vector<8x128xf32>
    %cst_112 = arith.constant 5.000000e-01 : f32
    %210 = vector.broadcast %cst_112 : f32 to vector<8x128xf32>
    %211 = arith.mulf %210, %209 : vector<8x128xf32>
    %cst_113 = arith.constant 5.000000e-01 : f32
    %212 = vector.broadcast %cst_113 : f32 to vector<8x128xf32>
    %213 = arith.addf %211, %212 : vector<8x128xf32>
    %214 = vector.extract_strided_slice %205 {offsets = [0, 128], sizes = [8, 128], strides = [1, 1]} : vector<8x512xf32> to vector<8x128xf32>
    %cst_114 = arith.constant 5.000000e-01 : f32
    %215 = vector.broadcast %cst_114 : f32 to vector<8x128xf32>
    %216 = arith.mulf %215, %214 : vector<8x128xf32>
    %217 = math.tanh %216 : vector<8x128xf32>
    %cst_115 = arith.constant 5.000000e-01 : f32
    %218 = vector.broadcast %cst_115 : f32 to vector<8x128xf32>
    %219 = arith.mulf %218, %217 : vector<8x128xf32>
    %cst_116 = arith.constant 5.000000e-01 : f32
    %220 = vector.broadcast %cst_116 : f32 to vector<8x128xf32>
    %221 = arith.addf %219, %220 : vector<8x128xf32>
    %222 = vector.extract_strided_slice %205 {offsets = [0, 256], sizes = [8, 128], strides = [1, 1]} : vector<8x512xf32> to vector<8x128xf32>
    %223 = math.tanh %222 : vector<8x128xf32>
    %224 = vector.extract_strided_slice %205 {offsets = [0, 384], sizes = [8, 128], strides = [1, 1]} : vector<8x512xf32> to vector<8x128xf32>
    %cst_117 = arith.constant 5.000000e-01 : f32
    %225 = vector.broadcast %cst_117 : f32 to vector<8x128xf32>
    %226 = arith.mulf %225, %224 : vector<8x128xf32>
    %227 = math.tanh %226 : vector<8x128xf32>
    %cst_118 = arith.constant 5.000000e-01 : f32
    %228 = vector.broadcast %cst_118 : f32 to vector<8x128xf32>
    %229 = arith.mulf %228, %227 : vector<8x128xf32>
    %cst_119 = arith.constant 5.000000e-01 : f32
    %230 = vector.broadcast %cst_119 : f32 to vector<8x128xf32>
    %231 = arith.addf %229, %230 : vector<8x128xf32>
    %c0_120 = arith.constant 0 : index
    %c0_121 = arith.constant 0 : index
    %232 = vector.load %arg8[%c0_120, %c0_121] : memref<8x128xf32, #tpu.memory_space<vmem>>, vector<8x128xf32>
    %233 = arith.mulf %221, %232 : vector<8x128xf32>
    %234 = arith.mulf %213, %223 : vector<8x128xf32>
    %235 = arith.addf %233, %234 : vector<8x128xf32>
    %236 = math.tanh %235 : vector<8x128xf32>
    %237 = arith.mulf %231, %236 : vector<8x128xf32>
    %c0_122 = arith.constant 0 : index
    %c0_123 = arith.constant 0 : index
    %238 = vector.load %arg7[%c0_122, %c0_123] : memref<8x128xf32, #tpu.memory_space<vmem>>, vector<8x128xf32>
    tpu.vector_store %arg7[%c0_122, %c0_123], %237 {strides = array<i32>} : memref<8x128xf32, #tpu.memory_space<vmem>>, vector<8x128xf32>,
    %c0_124 = arith.constant 0 : index
    %c0_125 = arith.constant 0 : index
    %239 = vector.load %arg8[%c0_124, %c0_125] : memref<8x128xf32, #tpu.memory_space<vmem>>, vector<8x128xf32>
    tpu.vector_store %arg8[%c0_124, %c0_125], %235 {strides = array<i32>} : memref<8x128xf32, #tpu.memory_space<vmem>>, vector<8x128xf32>,
    %240 = arith.index_cast %c4_i32 : i32 to index
    %c0_126 = arith.constant 0 : index
    %c0_127 = arith.constant 0 : index
    %241 = vector.load %arg5[%240, %c0_126, %c0_127] : memref<8x8x128xf32, #tpu.memory_space<vmem>>, vector<1x8x128xf32>
    %242 = vector.shape_cast %241 : vector<1x8x128xf32> to vector<8x128xf32>
    %243 = vector.shape_cast %237 : vector<8x128xf32> to vector<1x8x128xf32>
    tpu.vector_store %arg5[%240, %c0_126, %c0_127], %243 {strides = array<i32>} : memref<8x8x128xf32, #tpu.memory_space<vmem>>, vector<1x8x128xf32>,
    %244 = arith.index_cast %c4_i32 : i32 to index
    %c0_128 = arith.constant 0 : index
    %c0_129 = arith.constant 0 : index
    %245 = vector.load %arg6[%244, %c0_128, %c0_129] : memref<8x8x128xf32, #tpu.memory_space<vmem>>, vector<1x8x128xf32>
    %246 = vector.shape_cast %245 : vector<1x8x128xf32> to vector<8x128xf32>
    %247 = vector.shape_cast %235 : vector<8x128xf32> to vector<1x8x128xf32>
    tpu.vector_store %arg6[%244, %c0_128, %c0_129], %247 {strides = array<i32>} : memref<8x8x128xf32, #tpu.memory_space<vmem>>, vector<1x8x128xf32>,
    %c5_i32 = arith.constant 5 : i32
    %248 = arith.index_cast %c5_i32 : i32 to index
    %c0_130 = arith.constant 0 : index
    %c0_131 = arith.constant 0 : index
    %249 = vector.load %arg1[%248, %c0_130, %c0_131] : memref<8x8x512xf32, #tpu.memory_space<vmem>>, vector<1x8x512xf32>
    %250 = vector.shape_cast %249 : vector<1x8x512xf32> to vector<8x512xf32>
    %c0_132 = arith.constant 0 : index
    %c0_133 = arith.constant 0 : index
    %251 = vector.load %arg7[%c0_132, %c0_133] : memref<8x128xf32, #tpu.memory_space<vmem>>, vector<8x128xf32>
    %c0_134 = arith.constant 0 : index
    %c0_135 = arith.constant 0 : index
    %252 = vector.load %arg4[%c0_134, %c0_135] : memref<128x512xf32, #tpu.memory_space<vmem>>, vector<128x512xf32>
    %cst_136 = arith.constant dense<0.000000e+00> : vector<8x512xf32>
    %253 = tpu.matmul %251, %252, %cst_136 {dimension_numbers = #tpu.dot_dimension_numbers<[1], [0], [0], [1], [0, 0, 1, 1], [], []>} : vector<8x128xf32>, vector<128x512xf32>, vector<8x512xf32> -> vector<8x512xf32>
    %254 = arith.addf %250, %253 : vector<8x512xf32>
    %255 = vector.extract_strided_slice %254 {offsets = [0, 0], sizes = [8, 128], strides = [1, 1]} : vector<8x512xf32> to vector<8x128xf32>
    %cst_137 = arith.constant 5.000000e-01 : f32
    %256 = vector.broadcast %cst_137 : f32 to vector<8x128xf32>
    %257 = arith.mulf %256, %255 : vector<8x128xf32>
    %258 = math.tanh %257 : vector<8x128xf32>
    %cst_138 = arith.constant 5.000000e-01 : f32
    %259 = vector.broadcast %cst_138 : f32 to vector<8x128xf32>
    %260 = arith.mulf %259, %258 : vector<8x128xf32>
    %cst_139 = arith.constant 5.000000e-01 : f32
    %261 = vector.broadcast %cst_139 : f32 to vector<8x128xf32>
    %262 = arith.addf %260, %261 : vector<8x128xf32>
    %263 = vector.extract_strided_slice %254 {offsets = [0, 128], sizes = [8, 128], strides = [1, 1]} : vector<8x512xf32> to vector<8x128xf32>
    %cst_140 = arith.constant 5.000000e-01 : f32
    %264 = vector.broadcast %cst_140 : f32 to vector<8x128xf32>
    %265 = arith.mulf %264, %263 : vector<8x128xf32>
    %266 = math.tanh %265 : vector<8x128xf32>
    %cst_141 = arith.constant 5.000000e-01 : f32
    %267 = vector.broadcast %cst_141 : f32 to vector<8x128xf32>
    %268 = arith.mulf %267, %266 : vector<8x128xf32>
    %cst_142 = arith.constant 5.000000e-01 : f32
    %269 = vector.broadcast %cst_142 : f32 to vector<8x128xf32>
    %270 = arith.addf %268, %269 : vector<8x128xf32>
    %271 = vector.extract_strided_slice %254 {offsets = [0, 256], sizes = [8, 128], strides = [1, 1]} : vector<8x512xf32> to vector<8x128xf32>
    %272 = math.tanh %271 : vector<8x128xf32>
    %273 = vector.extract_strided_slice %254 {offsets = [0, 384], sizes = [8, 128], strides = [1, 1]} : vector<8x512xf32> to vector<8x128xf32>
    %cst_143 = arith.constant 5.000000e-01 : f32
    %274 = vector.broadcast %cst_143 : f32 to vector<8x128xf32>
    %275 = arith.mulf %274, %273 : vector<8x128xf32>
    %276 = math.tanh %275 : vector<8x128xf32>
    %cst_144 = arith.constant 5.000000e-01 : f32
    %277 = vector.broadcast %cst_144 : f32 to vector<8x128xf32>
    %278 = arith.mulf %277, %276 : vector<8x128xf32>
    %cst_145 = arith.constant 5.000000e-01 : f32
    %279 = vector.broadcast %cst_145 : f32 to vector<8x128xf32>
    %280 = arith.addf %278, %279 : vector<8x128xf32>
    %c0_146 = arith.constant 0 : index
    %c0_147 = arith.constant 0 : index
    %281 = vector.load %arg8[%c0_146, %c0_147] : memref<8x128xf32, #tpu.memory_space<vmem>>, vector<8x128xf32>
    %282 = arith.mulf %270, %281 : vector<8x128xf32>
    %283 = arith.mulf %262, %272 : vector<8x128xf32>
    %284 = arith.addf %282, %283 : vector<8x128xf32>
    %285 = math.tanh %284 : vector<8x128xf32>
    %286 = arith.mulf %280, %285 : vector<8x128xf32>
    %c0_148 = arith.constant 0 : index
    %c0_149 = arith.constant 0 : index
    %287 = vector.load %arg7[%c0_148, %c0_149] : memref<8x128xf32, #tpu.memory_space<vmem>>, vector<8x128xf32>
    tpu.vector_store %arg7[%c0_148, %c0_149], %286 {strides = array<i32>} : memref<8x128xf32, #tpu.memory_space<vmem>>, vector<8x128xf32>,
    %c0_150 = arith.constant 0 : index
    %c0_151 = arith.constant 0 : index
    %288 = vector.load %arg8[%c0_150, %c0_151] : memref<8x128xf32, #tpu.memory_space<vmem>>, vector<8x128xf32>
    tpu.vector_store %arg8[%c0_150, %c0_151], %284 {strides = array<i32>} : memref<8x128xf32, #tpu.memory_space<vmem>>, vector<8x128xf32>,
    %289 = arith.index_cast %c5_i32 : i32 to index
    %c0_152 = arith.constant 0 : index
    %c0_153 = arith.constant 0 : index
    %290 = vector.load %arg5[%289, %c0_152, %c0_153] : memref<8x8x128xf32, #tpu.memory_space<vmem>>, vector<1x8x128xf32>
    %291 = vector.shape_cast %290 : vector<1x8x128xf32> to vector<8x128xf32>
    %292 = vector.shape_cast %286 : vector<8x128xf32> to vector<1x8x128xf32>
    tpu.vector_store %arg5[%289, %c0_152, %c0_153], %292 {strides = array<i32>} : memref<8x8x128xf32, #tpu.memory_space<vmem>>, vector<1x8x128xf32>,
    %293 = arith.index_cast %c5_i32 : i32 to index
    %c0_154 = arith.constant 0 : index
    %c0_155 = arith.constant 0 : index
    %294 = vector.load %arg6[%293, %c0_154, %c0_155] : memref<8x8x128xf32, #tpu.memory_space<vmem>>, vector<1x8x128xf32>
    %295 = vector.shape_cast %294 : vector<1x8x128xf32> to vector<8x128xf32>
    %296 = vector.shape_cast %284 : vector<8x128xf32> to vector<1x8x128xf32>
    tpu.vector_store %arg6[%293, %c0_154, %c0_155], %296 {strides = array<i32>} : memref<8x8x128xf32, #tpu.memory_space<vmem>>, vector<1x8x128xf32>,
    %c6_i32 = arith.constant 6 : i32
    %297 = arith.index_cast %c6_i32 : i32 to index
    %c0_156 = arith.constant 0 : index
    %c0_157 = arith.constant 0 : index
    %298 = vector.load %arg1[%297, %c0_156, %c0_157] : memref<8x8x512xf32, #tpu.memory_space<vmem>>, vector<1x8x512xf32>
    %299 = vector.shape_cast %298 : vector<1x8x512xf32> to vector<8x512xf32>
    %c0_158 = arith.constant 0 : index
    %c0_159 = arith.constant 0 : index
    %300 = vector.load %arg7[%c0_158, %c0_159] : memref<8x128xf32, #tpu.memory_space<vmem>>, vector<8x128xf32>
    %c0_160 = arith.constant 0 : index
    %c0_161 = arith.constant 0 : index
    %301 = vector.load %arg4[%c0_160, %c0_161] : memref<128x512xf32, #tpu.memory_space<vmem>>, vector<128x512xf32>
    %cst_162 = arith.constant dense<0.000000e+00> : vector<8x512xf32>
    %302 = tpu.matmul %300, %301, %cst_162 {dimension_numbers = #tpu.dot_dimension_numbers<[1], [0], [0], [1], [0, 0, 1, 1], [], []>} : vector<8x128xf32>, vector<128x512xf32>, vector<8x512xf32> -> vector<8x512xf32>
    %303 = arith.addf %299, %302 : vector<8x512xf32>
    %304 = vector.extract_strided_slice %303 {offsets = [0, 0], sizes = [8, 128], strides = [1, 1]} : vector<8x512xf32> to vector<8x128xf32>
    %cst_163 = arith.constant 5.000000e-01 : f32
    %305 = vector.broadcast %cst_163 : f32 to vector<8x128xf32>
    %306 = arith.mulf %305, %304 : vector<8x128xf32>
    %307 = math.tanh %306 : vector<8x128xf32>
    %cst_164 = arith.constant 5.000000e-01 : f32
    %308 = vector.broadcast %cst_164 : f32 to vector<8x128xf32>
    %309 = arith.mulf %308, %307 : vector<8x128xf32>
    %cst_165 = arith.constant 5.000000e-01 : f32
    %310 = vector.broadcast %cst_165 : f32 to vector<8x128xf32>
    %311 = arith.addf %309, %310 : vector<8x128xf32>
    %312 = vector.extract_strided_slice %303 {offsets = [0, 128], sizes = [8, 128], strides = [1, 1]} : vector<8x512xf32> to vector<8x128xf32>
    %cst_166 = arith.constant 5.000000e-01 : f32
    %313 = vector.broadcast %cst_166 : f32 to vector<8x128xf32>
    %314 = arith.mulf %313, %312 : vector<8x128xf32>
    %315 = math.tanh %314 : vector<8x128xf32>
    %cst_167 = arith.constant 5.000000e-01 : f32
    %316 = vector.broadcast %cst_167 : f32 to vector<8x128xf32>
    %317 = arith.mulf %316, %315 : vector<8x128xf32>
    %cst_168 = arith.constant 5.000000e-01 : f32
    %318 = vector.broadcast %cst_168 : f32 to vector<8x128xf32>
    %319 = arith.addf %317, %318 : vector<8x128xf32>
    %320 = vector.extract_strided_slice %303 {offsets = [0, 256], sizes = [8, 128], strides = [1, 1]} : vector<8x512xf32> to vector<8x128xf32>
    %321 = math.tanh %320 : vector<8x128xf32>
    %322 = vector.extract_strided_slice %303 {offsets = [0, 384], sizes = [8, 128], strides = [1, 1]} : vector<8x512xf32> to vector<8x128xf32>
    %cst_169 = arith.constant 5.000000e-01 : f32
    %323 = vector.broadcast %cst_169 : f32 to vector<8x128xf32>
    %324 = arith.mulf %323, %322 : vector<8x128xf32>
    %325 = math.tanh %324 : vector<8x128xf32>
    %cst_170 = arith.constant 5.000000e-01 : f32
    %326 = vector.broadcast %cst_170 : f32 to vector<8x128xf32>
    %327 = arith.mulf %326, %325 : vector<8x128xf32>
    %cst_171 = arith.constant 5.000000e-01 : f32
    %328 = vector.broadcast %cst_171 : f32 to vector<8x128xf32>
    %329 = arith.addf %327, %328 : vector<8x128xf32>
    %c0_172 = arith.constant 0 : index
    %c0_173 = arith.constant 0 : index
    %330 = vector.load %arg8[%c0_172, %c0_173] : memref<8x128xf32, #tpu.memory_space<vmem>>, vector<8x128xf32>
    %331 = arith.mulf %319, %330 : vector<8x128xf32>
    %332 = arith.mulf %311, %321 : vector<8x128xf32>
    %333 = arith.addf %331, %332 : vector<8x128xf32>
    %334 = math.tanh %333 : vector<8x128xf32>
    %335 = arith.mulf %329, %334 : vector<8x128xf32>
    %c0_174 = arith.constant 0 : index
    %c0_175 = arith.constant 0 : index
    %336 = vector.load %arg7[%c0_174, %c0_175] : memref<8x128xf32, #tpu.memory_space<vmem>>, vector<8x128xf32>
    tpu.vector_store %arg7[%c0_174, %c0_175], %335 {strides = array<i32>} : memref<8x128xf32, #tpu.memory_space<vmem>>, vector<8x128xf32>,
    %c0_176 = arith.constant 0 : index
    %c0_177 = arith.constant 0 : index
    %337 = vector.load %arg8[%c0_176, %c0_177] : memref<8x128xf32, #tpu.memory_space<vmem>>, vector<8x128xf32>
    tpu.vector_store %arg8[%c0_176, %c0_177], %333 {strides = array<i32>} : memref<8x128xf32, #tpu.memory_space<vmem>>, vector<8x128xf32>,
    %338 = arith.index_cast %c6_i32 : i32 to index
    %c0_178 = arith.constant 0 : index
    %c0_179 = arith.constant 0 : index
    %339 = vector.load %arg5[%338, %c0_178, %c0_179] : memref<8x8x128xf32, #tpu.memory_space<vmem>>, vector<1x8x128xf32>
    %340 = vector.shape_cast %339 : vector<1x8x128xf32> to vector<8x128xf32>
    %341 = vector.shape_cast %335 : vector<8x128xf32> to vector<1x8x128xf32>
    tpu.vector_store %arg5[%338, %c0_178, %c0_179], %341 {strides = array<i32>} : memref<8x8x128xf32, #tpu.memory_space<vmem>>, vector<1x8x128xf32>,
    %342 = arith.index_cast %c6_i32 : i32 to index
    %c0_180 = arith.constant 0 : index
    %c0_181 = arith.constant 0 : index
    %343 = vector.load %arg6[%342, %c0_180, %c0_181] : memref<8x8x128xf32, #tpu.memory_space<vmem>>, vector<1x8x128xf32>
    %344 = vector.shape_cast %343 : vector<1x8x128xf32> to vector<8x128xf32>
    %345 = vector.shape_cast %333 : vector<8x128xf32> to vector<1x8x128xf32>
    tpu.vector_store %arg6[%342, %c0_180, %c0_181], %345 {strides = array<i32>} : memref<8x8x128xf32, #tpu.memory_space<vmem>>, vector<1x8x128xf32>,
    %c7_i32 = arith.constant 7 : i32
    %346 = arith.index_cast %c7_i32 : i32 to index
    %c0_182 = arith.constant 0 : index
    %c0_183 = arith.constant 0 : index
    %347 = vector.load %arg1[%346, %c0_182, %c0_183] : memref<8x8x512xf32, #tpu.memory_space<vmem>>, vector<1x8x512xf32>
    %348 = vector.shape_cast %347 : vector<1x8x512xf32> to vector<8x512xf32>
    %c0_184 = arith.constant 0 : index
    %c0_185 = arith.constant 0 : index
    %349 = vector.load %arg7[%c0_184, %c0_185] : memref<8x128xf32, #tpu.memory_space<vmem>>, vector<8x128xf32>
    %c0_186 = arith.constant 0 : index
    %c0_187 = arith.constant 0 : index
    %350 = vector.load %arg4[%c0_186, %c0_187] : memref<128x512xf32, #tpu.memory_space<vmem>>, vector<128x512xf32>
    %cst_188 = arith.constant dense<0.000000e+00> : vector<8x512xf32>
    %351 = tpu.matmul %349, %350, %cst_188 {dimension_numbers = #tpu.dot_dimension_numbers<[1], [0], [0], [1], [0, 0, 1, 1], [], []>} : vector<8x128xf32>, vector<128x512xf32>, vector<8x512xf32> -> vector<8x512xf32>
    %352 = arith.addf %348, %351 : vector<8x512xf32>
    %353 = vector.extract_strided_slice %352 {offsets = [0, 0], sizes = [8, 128], strides = [1, 1]} : vector<8x512xf32> to vector<8x128xf32>
    %cst_189 = arith.constant 5.000000e-01 : f32
    %354 = vector.broadcast %cst_189 : f32 to vector<8x128xf32>
    %355 = arith.mulf %354, %353 : vector<8x128xf32>
    %356 = math.tanh %355 : vector<8x128xf32>
    %cst_190 = arith.constant 5.000000e-01 : f32
    %357 = vector.broadcast %cst_190 : f32 to vector<8x128xf32>
    %358 = arith.mulf %357, %356 : vector<8x128xf32>
    %cst_191 = arith.constant 5.000000e-01 : f32
    %359 = vector.broadcast %cst_191 : f32 to vector<8x128xf32>
    %360 = arith.addf %358, %359 : vector<8x128xf32>
    %361 = vector.extract_strided_slice %352 {offsets = [0, 128], sizes = [8, 128], strides = [1, 1]} : vector<8x512xf32> to vector<8x128xf32>
    %cst_192 = arith.constant 5.000000e-01 : f32
    %362 = vector.broadcast %cst_192 : f32 to vector<8x128xf32>
    %363 = arith.mulf %362, %361 : vector<8x128xf32>
    %364 = math.tanh %363 : vector<8x128xf32>
    %cst_193 = arith.constant 5.000000e-01 : f32
    %365 = vector.broadcast %cst_193 : f32 to vector<8x128xf32>
    %366 = arith.mulf %365, %364 : vector<8x128xf32>
    %cst_194 = arith.constant 5.000000e-01 : f32
    %367 = vector.broadcast %cst_194 : f32 to vector<8x128xf32>
    %368 = arith.addf %366, %367 : vector<8x128xf32>
    %369 = vector.extract_strided_slice %352 {offsets = [0, 256], sizes = [8, 128], strides = [1, 1]} : vector<8x512xf32> to vector<8x128xf32>
    %370 = math.tanh %369 : vector<8x128xf32>
    %371 = vector.extract_strided_slice %352 {offsets = [0, 384], sizes = [8, 128], strides = [1, 1]} : vector<8x512xf32> to vector<8x128xf32>
    %cst_195 = arith.constant 5.000000e-01 : f32
    %372 = vector.broadcast %cst_195 : f32 to vector<8x128xf32>
    %373 = arith.mulf %372, %371 : vector<8x128xf32>
    %374 = math.tanh %373 : vector<8x128xf32>
    %cst_196 = arith.constant 5.000000e-01 : f32
    %375 = vector.broadcast %cst_196 : f32 to vector<8x128xf32>
    %376 = arith.mulf %375, %374 : vector<8x128xf32>
    %cst_197 = arith.constant 5.000000e-01 : f32
    %377 = vector.broadcast %cst_197 : f32 to vector<8x128xf32>
    %378 = arith.addf %376, %377 : vector<8x128xf32>
    %c0_198 = arith.constant 0 : index
    %c0_199 = arith.constant 0 : index
    %379 = vector.load %arg8[%c0_198, %c0_199] : memref<8x128xf32, #tpu.memory_space<vmem>>, vector<8x128xf32>
    %380 = arith.mulf %368, %379 : vector<8x128xf32>
    %381 = arith.mulf %360, %370 : vector<8x128xf32>
    %382 = arith.addf %380, %381 : vector<8x128xf32>
    %383 = math.tanh %382 : vector<8x128xf32>
    %384 = arith.mulf %378, %383 : vector<8x128xf32>
    %c0_200 = arith.constant 0 : index
    %c0_201 = arith.constant 0 : index
    %385 = vector.load %arg7[%c0_200, %c0_201] : memref<8x128xf32, #tpu.memory_space<vmem>>, vector<8x128xf32>
    tpu.vector_store %arg7[%c0_200, %c0_201], %384 {strides = array<i32>} : memref<8x128xf32, #tpu.memory_space<vmem>>, vector<8x128xf32>,
    %c0_202 = arith.constant 0 : index
    %c0_203 = arith.constant 0 : index
    %386 = vector.load %arg8[%c0_202, %c0_203] : memref<8x128xf32, #tpu.memory_space<vmem>>, vector<8x128xf32>
    tpu.vector_store %arg8[%c0_202, %c0_203], %382 {strides = array<i32>} : memref<8x128xf32, #tpu.memory_space<vmem>>, vector<8x128xf32>,
    %387 = arith.index_cast %c7_i32 : i32 to index
    %c0_204 = arith.constant 0 : index
    %c0_205 = arith.constant 0 : index
    %388 = vector.load %arg5[%387, %c0_204, %c0_205] : memref<8x8x128xf32, #tpu.memory_space<vmem>>, vector<1x8x128xf32>
    %389 = vector.shape_cast %388 : vector<1x8x128xf32> to vector<8x128xf32>
    %390 = vector.shape_cast %384 : vector<8x128xf32> to vector<1x8x128xf32>
    tpu.vector_store %arg5[%387, %c0_204, %c0_205], %390 {strides = array<i32>} : memref<8x8x128xf32, #tpu.memory_space<vmem>>, vector<1x8x128xf32>,
    %391 = arith.index_cast %c7_i32 : i32 to index
    %c0_206 = arith.constant 0 : index
    %c0_207 = arith.constant 0 : index
    %392 = vector.load %arg6[%391, %c0_206, %c0_207] : memref<8x8x128xf32, #tpu.memory_space<vmem>>, vector<1x8x128xf32>
    %393 = vector.shape_cast %392 : vector<1x8x128xf32> to vector<8x128xf32>
    %394 = vector.shape_cast %382 : vector<8x128xf32> to vector<1x8x128xf32>
    tpu.vector_store %arg6[%391, %c0_206, %c0_207], %394 {strides = array<i32>} : memref<8x8x128xf32, #tpu.memory_space<vmem>>, vector<1x8x128xf32>,
    %c8_i32 = arith.constant 8 : i32
    return
  }
  func.func @transform_0(%arg0: i32) -> (i32, i32, i32) {
    %c0_i32 = arith.constant 0 : i32
    %c0_i32_0 = arith.constant 0 : i32
    %c0_i32_1 = arith.constant 0 : i32
    return %arg0, %c0_i32, %c0_i32_0 : i32, i32, i32
  }
  func.func @transform_1(%arg0: i32) -> (i32, i32) {
    %c0_i32 = arith.constant 0 : i32
    %c0_i32_0 = arith.constant 0 : i32
    %c0_i32_1 = arith.constant 0 : i32
    return %c0_i32, %c0_i32_0 : i32, i32
  }
  func.func @transform_2(%arg0: i32) -> (i32, i32) {
    %c0_i32 = arith.constant 0 : i32
    %c0_i32_0 = arith.constant 0 : i32
    %c0_i32_1 = arith.constant 0 : i32
    return %c0_i32, %c0_i32_0 : i32, i32
  }
  func.func @transform_3(%arg0: i32) -> (i32, i32) {
    %c0_i32 = arith.constant 0 : i32
    %c0_i32_0 = arith.constant 0 : i32
    %c0_i32_1 = arith.constant 0 : i32
    return %c0_i32, %c0_i32_0 : i32, i32
  }
  func.func @transform_4(%arg0: i32) -> (i32, i32, i32) {
    %c0_i32 = arith.constant 0 : i32
    %c0_i32_0 = arith.constant 0 : i32
    %c0_i32_1 = arith.constant 0 : i32
    return %arg0, %c0_i32, %c0_i32_0 : i32, i32, i32
  }
  func.func @transform_5(%arg0: i32) -> (i32, i32, i32) {
    %c0_i32 = arith.constant 0 : i32
    %c0_i32_0 = arith.constant 0 : i32
    %c0_i32_1 = arith.constant 0 : i32
    return %arg0, %c0_i32, %c0_i32_0 : i32, i32, i32
  }
}

</mosaic_0001>

<llo_original>
// kernel: tpu_custom_call.1
$region0: #{tpu_custom_call.1}
  #allocation0 [shape = 'u32[]', space=smem, size = 0x4, offset = 0x4, fixed_abs, tag = 'smem constant byte address 0x4 - core index']
  #allocation1 [shape = 'u32[144,128]{1,0:T(1,128)}', space=vmem, size = 0x12000, scoped, tag = 'internal scratch']
  #allocation2 [shape = 'f32[8,128]{1,0:T(8,128)}', space=vmem, size = 0x1000, scoped, tag = 'scratch operand']
  #allocation3 [shape = 'f32[8,128]{1,0:T(8,128)}', space=vmem, size = 0x1000, scoped, tag = 'scratch operand']
  %s0 = inlined_call_operand.hbm [shape: f32[24,8,512], index: 0, kind: input, shape index: {}]
  %s1 = inlined_call_operand.hbm [shape: f32[8,128], index: 1, kind: input, shape index: {}]
  %s2 = inlined_call_operand.hbm [shape: f32[8,128], index: 2, kind: input, shape index: {}]
  %s3 = inlined_call_operand.hbm [shape: f32[128,512], index: 3, kind: input, shape index: {}]
  %s4 = inlined_call_operand.hbm [shape: f32[24,8,128], index: 4, kind: output, shape index: {0}]
  %s5 = inlined_call_operand.hbm [shape: f32[24,8,128], index: 5, kind: output, shape index: {1}]
  %6 = xla_tuple %s4, %s5
  %s7 = sld [smem:[#allocation0]]
  $region77: #{tpu_custom_call.1} parent=0
    _
  %s9 = ssub.s32 1, %s7
  %s10 = scalar_select 0, %s9, %s7
  $region1: #{tpu_custom_call.1} parent=0
    #allocation4 [shape = 'u8[262144]{0}', space=vmem, size = 0x40000, scoped, tag = 'input window, operand 0']
    #allocation5 [shape = 's32[2]{0}', space=sflag, size = 0x8, scoped, tag = 'scoped memory for tpu_custom_call.1']
    #allocation6 [shape = 's32[2]{0}', space=sflag, size = 0x8, scoped, tag = 'scoped memory for tpu_custom_call.1']
    #allocation7 [shape = 'u8[4096]{0}', space=vmem, size = 0x1000, scoped, tag = 'input window, operand 1, single buffered']
    #allocation8 [shape = 's32[1]{0}', space=sflag, size = 0x4, scoped, tag = 'scoped memory for tpu_custom_call.1']
    #allocation9 [shape = 'u8[4096]{0}', space=vmem, size = 0x1000, scoped, tag = 'input window, operand 2, single buffered']
    #allocation10 [shape = 'u8[262144]{0}', space=vmem, size = 0x40000, scoped, tag = 'input window, operand 3, single buffered']
    #allocation11 [shape = 's32[1]{0}', space=sflag, size = 0x4, scoped, tag = 'scoped memory for tpu_custom_call.1']
    #allocation12 [shape = 'u8[65536]{0}', space=vmem, size = 0x10000, scoped, tag = 'output window, operand 0']
    #allocation13 [shape = 'u8[65536]{0}', space=vmem, size = 0x10000, scoped, tag = 'output window, operand 1']
    #allocation14 [shape = 's32[2]{0}', space=sflag, size = 0x8, scoped, tag = 'scoped memory for tpu_custom_call.1']
    %11 = vsyncpa [#allocation5], 0
    %s12 = scalar_lea.sflag [#allocation5], 1
    %13 = vsyncpa %s12, 0
    %14 = vsyncpa [#allocation8], 0
    %15 = vsyncpa [#allocation11], 0
    %16 = vsyncpa [#allocation6], 0
    %s17 = scalar_lea.sflag [#allocation6], 1
    %18 = vsyncpa %s17, 0
    %19 = vsyncpa [#allocation14], 0
    %s20 = scalar_lea.sflag [#allocation14], 1
    %21 = vsyncpa %s20, 0
    loop: start=0, step=1, limit=5
    $region2: #{tpu_custom_call.1} parent=1 // loop_pre_header
      _
    $region3: #{tpu_custom_call.1} parent=1 // loop_header
      %s23 = sphi 0, %s27
      %p24 = scmp.ge.s32.totalorder %s23, 5
      %s33 = sphi 0, %s35
      %s36 = sphi 0, %s33
      %s37 = sphi 0, %s36
      %s53 = sphi 0, %s37
      %s57 = sphi 0, %s57
      %s59 = sphi 0, %s57
      %s60 = sphi 0, %s59
      %s74 = sphi 0, %s60
      %s78 = sphi 0, %s78
      %s80 = sphi 0, %s78
      %s81 = sphi 0, %s80
      %s95 = sphi 0, %s81
      %s99 = sphi 0, %s99
      %s101 = sphi 0, %s99
      %s102 = sphi 0, %s101
      %s116 = sphi 0, %s102
      %s122 = sphi 0, %s124
      %s125 = sphi 0, %s122
      %s126 = sphi 0, %s125
      %s142 = sphi 0, %s126
      %s148 = sphi 0, %s150
      %s151 = sphi 0, %s148
      %s152 = sphi 0, %s151
      %s168 = sphi 0, %s152
    $region4: #{tpu_custom_call.1} parent=1 // loop_header_branch
      %26 = sbr.rel (%p24) target = $region8
    $region5: #{tpu_custom_call.1} parent=1 // loop_body
      %s28 = ssub.s32 %s23, 1
      %s29 = ssub.s32 %s23, 2
      %s30 = sadd.s32 %s23, 1
      %s31 = ssub.s32 %s23, %s30
      %p32 = scmp.eq.s32.totalorder %s31, 0
      %s34 = sadd.s32 %s33, 1
      %s35 = scalar_select %p32, %s33, %s34
      %p38 = pneg %p32
      %p39 = scmp.eq.s32.totalorder %s23, 2
      %p40 = por %p38, %p39
      %p41 = scmp.ne.s32.totalorder %s33, %s36
      %p42 = scmp.eq.s32.totalorder %s23, 0
      %p43 = por %p41, %p42
      %p44 = scmp.ne.s32.totalorder %s33, %s36
      %p45 = scmp.eq.s32.totalorder %s28, 2
      %p46 = por %p44, %p45
      %p47 = scmp.ne.s32.totalorder %s36, %s37
      %p48 = scmp.eq.s32.totalorder %s28, 0
      %p49 = por %p47, %p48
      %p50 = scmp.ne.s32.totalorder %s36, %s37
      %p51 = scmp.eq.s32.totalorder %s29, 2
      %p52 = por %p50, %p51
      %p54 = scmp.ne.s32.totalorder %s37, %s53
      %p55 = scmp.eq.s32.totalorder %s29, 0
      %p56 = por %p54, %p55
      %s58 = sadd.s32 %s57, 1
      %p61 = scmp.eq.s32.totalorder %s23, 2
      %p62 = scmp.ne.s32.totalorder %s57, %s59
      %p63 = scmp.eq.s32.totalorder %s23, 0
      %p64 = por %p62, %p63
      %p65 = scmp.ne.s32.totalorder %s57, %s59
      %p66 = scmp.eq.s32.totalorder %s28, 2
      %p67 = por %p65, %p66
      %p68 = scmp.ne.s32.totalorder %s59, %s60
      %p69 = scmp.eq.s32.totalorder %s28, 0
      %p70 = por %p68, %p69
      %p71 = scmp.ne.s32.totalorder %s59, %s60
      %p72 = scmp.eq.s32.totalorder %s29, 2
      %p73 = por %p71, %p72
      %p75 = scmp.ne.s32.totalorder %s60, %s74
      %p76 = scmp.eq.s32.totalorder %s29, 0
      %p77 = por %p75, %p76
      %s79 = sadd.s32 %s78, 1
      %p82 = scmp.eq.s32.totalorder %s23, 2
      %p83 = scmp.ne.s32.totalorder %s78, %s80
      %p84 = scmp.eq.s32.totalorder %s23, 0
      %p85 = por %p83, %p84
      %p86 = scmp.ne.s32.totalorder %s78, %s80
      %p87 = scmp.eq.s32.totalorder %s28, 2
      %p88 = por %p86, %p87
      %p89 = scmp.ne.s32.totalorder %s80, %s81
      %p90 = scmp.eq.s32.totalorder %s28, 0
      %p91 = por %p89, %p90
      %p92 = scmp.ne.s32.totalorder %s80, %s81
      %p93 = scmp.eq.s32.totalorder %s29, 2
      %p94 = por %p92, %p93
      %p96 = scmp.ne.s32.totalorder %s81, %s95
      %p97 = scmp.eq.s32.totalorder %s29, 0
      %p98 = por %p96, %p97
      %s100 = sadd.s32 %s99, 1
      %p103 = scmp.eq.s32.totalorder %s23, 2
      %p104 = scmp.ne.s32.totalorder %s99, %s101
      %p105 = scmp.eq.s32.totalorder %s23, 0
      %p106 = por %p104, %p105
      %p107 = scmp.ne.s32.totalorder %s99, %s101
      %p108 = scmp.eq.s32.totalorder %s28, 2
      %p109 = por %p107, %p108
      %p110 = scmp.ne.s32.totalorder %s101, %s102
      %p111 = scmp.eq.s32.totalorder %s28, 0
      %p112 = por %p110, %p111
      %p113 = scmp.ne.s32.totalorder %s101, %s102
      %p114 = scmp.eq.s32.totalorder %s29, 2
      %p115 = por %p113, %p114
      %p117 = scmp.ne.s32.totalorder %s102, %s116
      %p118 = scmp.eq.s32.totalorder %s29, 0
      %p119 = por %p117, %p118
      %s120 = ssub.s32 %s23, %s30
      %p121 = scmp.eq.s32.totalorder %s120, 0
      %s123 = sadd.s32 %s122, 1
      %s124 = scalar_select %p121, %s122, %s123
      %p127 = pneg %p121
      %p128 = scmp.eq.s32.totalorder %s23, 2
      %p129 = por %p127, %p128
      %p130 = scmp.ne.s32.totalorder %s122, %s125
      %p131 = scmp.eq.s32.totalorder %s23, 0
      %p132 = por %p130, %p131
      %p133 = scmp.ne.s32.totalorder %s122, %s125
      %p134 = scmp.eq.s32.totalorder %s28, 2
      %p135 = por %p133, %p134
      %p136 = scmp.ne.s32.totalorder %s125, %s126
      %p137 = scmp.eq.s32.totalorder %s28, 0
      %p138 = por %p136, %p137
      %p139 = scmp.ne.s32.totalorder %s125, %s126
      %p140 = scmp.eq.s32.totalorder %s29, 2
      %p141 = por %p139, %p140
      %p143 = scmp.ne.s32.totalorder %s126, %s142
      %p144 = scmp.eq.s32.totalorder %s29, 0
      %p145 = por %p143, %p144
      %s146 = ssub.s32 %s23, %s30
      %p147 = scmp.eq.s32.totalorder %s146, 0
      %s149 = sadd.s32 %s148, 1
      %s150 = scalar_select %p147, %s148, %s149
      %p153 = pneg %p147
      %p154 = scmp.eq.s32.totalorder %s23, 2
      %p155 = por %p153, %p154
      %p156 = scmp.ne.s32.totalorder %s148, %s151
      %p157 = scmp.eq.s32.totalorder %s23, 0
      %p158 = por %p156, %p157
      %p159 = scmp.ne.s32.totalorder %s148, %s151
      %p160 = scmp.eq.s32.totalorder %s28, 2
      %p161 = por %p159, %p160
      %p162 = scmp.ne.s32.totalorder %s151, %s152
      %p163 = scmp.eq.s32.totalorder %s28, 0
      %p164 = por %p162, %p163
      %p165 = scmp.ne.s32.totalorder %s151, %s152
      %p166 = scmp.eq.s32.totalorder %s29, 2
      %p167 = por %p165, %p166
      %p169 = scmp.ne.s32.totalorder %s152, %s168
      %p170 = scmp.eq.s32.totalorder %s29, 0
      %p171 = por %p169, %p170
      %p172 = scmp.le.s32.totalorder 1, %s23
      %p173 = scmp.lt.s32.totalorder %s23, 4
      %p174 = pnand %p172, %p173
      %p175 = pneg %p174
      // Predicated region
      $region9: #{tpu_custom_call.1} parent=5 // pred_check
        _
      $region10: #{tpu_custom_call.1} parent=5 // pred_check_branch
        %177 = sbr.rel (%p174) target = $region12
      $region11: #{tpu_custom_call.1} parent=5 // pred_region
        %s178 = ssub.s32 %s23, 1
        // Predicated region
        $region13: #{tpu_custom_call.1} parent=11 // pred_check
          %p179 = pneg %p70
        $region14: #{tpu_custom_call.1} parent=11 // pred_check_branch
          %181 = sbr.rel (%p179) target = $region16
        $region15: #{tpu_custom_call.1} parent=11 // pred_region
          %s183 = ssub.s32 128, 128
          %184 = vsyncadd [#allocation8], %s183
          %s186 = sshll.u32 [#allocation7], 4
          %s187 = int_to_ptr.vmem [resolvable:$true] %s186
          %189 = dma.hbm_to_vmem [thread:$0]  %s1, 128, %s187, [#allocation8]
        $region16: #{tpu_custom_call.1} parent=11 // pred_fallthru
          _
        // Predicated region
        $region17: #{tpu_custom_call.1} parent=11 // pred_check
          %p190 = pneg %p91
        $region18: #{tpu_custom_call.1} parent=11 // pred_check_branch
          %192 = sbr.rel (%p190) target = $region20
        $region19: #{tpu_custom_call.1} parent=11 // pred_region
          %s194 = ssub.s32 128, 128
          %195 = vsyncadd [#allocation8], %s194
          %s197 = sshll.u32 [#allocation9], 4
          %s198 = int_to_ptr.vmem [resolvable:$true] %s197
          %200 = dma.hbm_to_vmem [thread:$0]  %s2, 128, %s198, [#allocation8]
        $region20: #{tpu_custom_call.1} parent=11 // pred_fallthru
          _
        // Predicated region
        $region21: #{tpu_custom_call.1} parent=11 // pred_check
          %p201 = pneg %p112
        $region22: #{tpu_custom_call.1} parent=11 // pred_check_branch
          %203 = sbr.rel (%p201) target = $region24
        $region23: #{tpu_custom_call.1} parent=11 // pred_region
          %s205 = ssub.s32 8192, 8192
          %206 = vsyncadd [#allocation11], %s205
          %s207 = sshll.u32 [#allocation10], 4
          %s208 = int_to_ptr.vmem [resolvable:$true] %s207
          %213 = dma.hbm_to_vmem [thread:$0]  %s3, 8192, %s208, [#allocation11], 512, 512, 32
        $region24: #{tpu_custom_call.1} parent=11 // pred_fallthru
          _
      $region12: #{tpu_custom_call.1} parent=5 // pred_fallthru
        _
      %p214 = scmp.lt.s32.totalorder %s23, 3
      // Predicated region
      $region25: #{tpu_custom_call.1} parent=5 // pred_check
        %p215 = pneg %p214
      $region26: #{tpu_custom_call.1} parent=5 // pred_check_branch
        %217 = sbr.rel (%p215) target = $region28
      $region27: #{tpu_custom_call.1} parent=5 // pred_region
        // Predicated region
        $region29: #{tpu_custom_call.1} parent=27 // pred_check
          %p218 = pneg %p43
        $region30: #{tpu_custom_call.1} parent=27 // pred_check_branch
          %220 = sbr.rel (%p218) target = $region32
        $region31: #{tpu_custom_call.1} parent=27 // pred_region
          %s221 = sand.u32 %s33, 1
          %s222 = scalar_lea.sflag [#allocation5], %s221
          %s223 = sand.u32 %s33, 1
          %s224 = smul.addr %s223, 256
          %s225 = scalar_lea.vmem [#allocation4], %s224
          %s226 = smul.u32 8, %s23
          %s228 = ssub.s32 4096, 4096
          %229 = vsyncadd %s222, %s228
          %s230 = smul.addr %s226, 4
          %s231 = smul.addr %s230, 128
          %s232 = scalar_lea.hbm %s0, %s231
          %s233 = sshll.u32 %s225, 4
          %s234 = int_to_ptr.vmem [resolvable:$true] %s233
          %239 = dma.hbm_to_vmem [thread:$0]  %s232, 4096, %s234, %s222, 512, 512, 32
        $region32: #{tpu_custom_call.1} parent=27 // pred_fallthru
          _
      $region28: #{tpu_custom_call.1} parent=5 // pred_fallthru
        _
      %p240 = scmp.le.s32.totalorder 1, %s23
      %p241 = scmp.lt.s32.totalorder %s23, 4
      %p242 = pnand %p240, %p241
      %p243 = pneg %p242
      // Predicated region
      $region33: #{tpu_custom_call.1} parent=5 // pred_check
        _
      $region34: #{tpu_custom_call.1} parent=5 // pred_check_branch
        %245 = sbr.rel (%p242) target = $region36
      $region35: #{tpu_custom_call.1} parent=5 // pred_region
        %s246 = ssub.s32 %s23, 1
        %s247 = sand.u32 %s36, 1
        %s248 = scalar_lea.sflag [#allocation5], %s247
        %s249 = sand.u32 %s36, 1
        %s250 = smul.addr %s249, 256
        %s251 = scalar_lea.vmem [#allocation4], %s250
        // Predicated region
        $region37: #{tpu_custom_call.1} parent=35 // pred_check
          %p252 = pneg %p49
        $region38: #{tpu_custom_call.1} parent=35 // pred_check_branch
          %254 = sbr.rel (%p252) target = $region40
        $region39: #{tpu_custom_call.1} parent=35 // pred_region
          %255 = dma.done %s248, 4096
        $region40: #{tpu_custom_call.1} parent=35 // pred_fallthru
          _
        // Predicated region
        $region41: #{tpu_custom_call.1} parent=35 // pred_check
          %p256 = pneg %p70
        $region42: #{tpu_custom_call.1} parent=35 // pred_check_branch
          %258 = sbr.rel (%p256) target = $region44
        $region43: #{tpu_custom_call.1} parent=35 // pred_region
          %259 = dma.done [#allocation8], 128
        $region44: #{tpu_custom_call.1} parent=35 // pred_fallthru
          _
        // Predicated region
        $region45: #{tpu_custom_call.1} parent=35 // pred_check
          %p260 = pneg %p91
        $region46: #{tpu_custom_call.1} parent=35 // pred_check_branch
          %262 = sbr.rel (%p260) target = $region48
        $region47: #{tpu_custom_call.1} parent=35 // pred_region
          %263 = dma.done [#allocation8], 128
        $region48: #{tpu_custom_call.1} parent=35 // pred_fallthru
          _
        // Predicated region
        $region49: #{tpu_custom_call.1} parent=35 // pred_check
          %p264 = pneg %p112
        $region50: #{tpu_custom_call.1} parent=35 // pred_check_branch
          %266 = sbr.rel (%p264) target = $region52
        $region51: #{tpu_custom_call.1} parent=35 // pred_region
          %267 = dma.done [#allocation11], 8192
        $region52: #{tpu_custom_call.1} parent=35 // pred_fallthru
          _
        %s268 = sand.u32 %s36, 1
        %s269 = scalar_lea.sflag [#allocation5], %s268
        %s270 = sand.u32 %s36, 1
        %s271 = smul.addr %s270, 256
        %s272 = scalar_lea.vmem [#allocation4], %s271
        %p273 = pneg %p49
        %p274 = pneg %p46
        %p275 = pneg %p70
        %p276 = pneg %p67
        %p277 = pneg %p91
        %p278 = pneg %p88
        %p279 = pneg %p112
        %p280 = pneg %p109
        %p281 = pneg %p138
        %p282 = pneg %p135
        %s283 = sand.u32 %s125, 1
        %s284 = scalar_lea.sflag [#allocation6], %s283
        %s285 = sand.u32 %s125, 1
        %s286 = smul.addr %s285, 64
        %s287 = scalar_lea.vmem [#allocation12], %s286
        %p288 = pneg %p164
        %p289 = pneg %p161
        %s290 = sand.u32 %s151, 1
        %s291 = scalar_lea.sflag [#allocation14], %s290
        %s292 = sand.u32 %s151, 1
        %s293 = smul.addr %s292, 64
        %s294 = scalar_lea.vmem [#allocation13], %s293
        %s295 = smul.u32 8, %s28
        %s296 = smul.u32 8, %s28
        %s297 = smul.u32 8, %s28
        %p298 = scmp.eq.s32.totalorder %s28, 0
        // Predicated region
        $region53: #{tpu_custom_call.1} parent=35 // pred_check
          %p299 = pneg %p298
        $region54: #{tpu_custom_call.1} parent=35 // pred_check_branch
          %301 = sbr.rel (%p299) target = $region56
        $region55: #{tpu_custom_call.1} parent=35 // pred_region
          %v302 = vld [vmem:[#allocation7] sm:$0xff]
          %303 = vst [vmem:[#allocation2] sm:$0xff] %v302
          %v304 = vld [vmem:[#allocation9] sm:$0xff]
          %305 = vst [vmem:[#allocation3] sm:$0xff] %v304
        $region56: #{tpu_custom_call.1} parent=35 // pred_fallthru
          _
        %v306 = vld [vmem:[%s251] sm:$0xff]
        %v307 = vld [vmem:[%s251 + $0x8] sm:$0xff]
        %v308 = vld [vmem:[%s251 + $0x10] sm:$0xff]
        %v309 = vld [vmem:[%s251 + $0x18] sm:$0xff]
        %v310 = vld [vmem:[#allocation2] sm:$0xff]
        %v311 = vld [vmem:[#allocation10] sm:$0xff]
        %v312 = vld [vmem:[#allocation10 + $0x8] sm:$0xff]
        %v313 = vld [vmem:[#allocation10 + $0x10] sm:$0xff]
        %v314 = vld [vmem:[#allocation10 + $0x18] sm:$0xff]
        %v315 = vld [vmem:[#allocation10 + $0x20] sm:$0xff]
        %v316 = vld [vmem:[#allocation10 + $0x28] sm:$0xff]
        %v317 = vld [vmem:[#allocation10 + $0x30] sm:$0xff]
        %v318 = vld [vmem:[#allocation10 + $0x38] sm:$0xff]
        %v319 = vld [vmem:[#allocation10 + $0x40] sm:$0xff]
        %v320 = vld [vmem:[#allocation10 + $0x48] sm:$0xff]
        %v321 = vld [vmem:[#allocation10 + $0x50] sm:$0xff]
        %v322 = vld [vmem:[#allocation10 + $0x58] sm:$0xff]
        %v323 = vld [vmem:[#allocation10 + $0x60] sm:$0xff]
        %v324 = vld [vmem:[#allocation10 + $0x68] sm:$0xff]
        %v325 = vld [vmem:[#allocation10 + $0x70] sm:$0xff]
        %v326 = vld [vmem:[#allocation10 + $0x78] sm:$0xff]
        %v327 = vld [vmem:[#allocation10 + $0x80] sm:$0xff]
        %v328 = vld [vmem:[#allocation10 + $0x88] sm:$0xff]
        %v329 = vld [vmem:[#allocation10 + $0x90] sm:$0xff]
        %v330 = vld [vmem:[#allocation10 + $0x98] sm:$0xff]
        %v331 = vld [vmem:[#allocation10 + $0xa0] sm:$0xff]
        %v332 = vld [vmem:[#allocation10 + $0xa8] sm:$0xff]
        %v333 = vld [vmem:[#allocation10 + $0xb0] sm:$0xff]
        %v334 = vld [vmem:[#allocation10 + $0xb8] sm:$0xff]
        %v335 = vld [vmem:[#allocation10 + $0xc0] sm:$0xff]
        %v336 = vld [vmem:[#allocation10 + $0xc8] sm:$0xff]
        %v337 = vld [vmem:[#allocation10 + $0xd0] sm:$0xff]
        %v338 = vld [vmem:[#allocation10 + $0xd8] sm:$0xff]
        %v339 = vld [vmem:[#allocation10 + $0xe0] sm:$0xff]
        %v340 = vld [vmem:[#allocation10 + $0xe8] sm:$0xff]
        %v341 = vld [vmem:[#allocation10 + $0xf0] sm:$0xff]
        %v342 = vld [vmem:[#allocation10 + $0xf8] sm:$0xff]
        %v343 = vld [vmem:[#allocation10 + $0x100] sm:$0xff]
        %v344 = vld [vmem:[#allocation10 + $0x108] sm:$0xff]
        %v345 = vld [vmem:[#allocation10 + $0x110] sm:$0xff]
        %v346 = vld [vmem:[#allocation10 + $0x118] sm:$0xff]
        %v347 = vld [vmem:[#allocation10 + $0x120] sm:$0xff]
        %v348 = vld [vmem:[#allocation10 + $0x128] sm:$0xff]
        %v349 = vld [vmem:[#allocation10 + $0x130] sm:$0xff]
        %v350 = vld [vmem:[#allocation10 + $0x138] sm:$0xff]
        %v351 = vld [vmem:[#allocation10 + $0x140] sm:$0xff]
        %v352 = vld [vmem:[#allocation10 + $0x148] sm:$0xff]
        %v353 = vld [vmem:[#allocation10 + $0x150] sm:$0xff]
        %v354 = vld [vmem:[#allocation10 + $0x158] sm:$0xff]
        %v355 = vld [vmem:[#allocation10 + $0x160] sm:$0xff]
        %v356 = vld [vmem:[#allocation10 + $0x168] sm:$0xff]
        %v357 = vld [vmem:[#allocation10 + $0x170] sm:$0xff]
        %v358 = vld [vmem:[#allocation10 + $0x178] sm:$0xff]
        %v359 = vld [vmem:[#allocation10 + $0x180] sm:$0xff]
        %v360 = vld [vmem:[#allocation10 + $0x188] sm:$0xff]
        %v361 = vld [vmem:[#allocation10 + $0x190] sm:$0xff]
        %v362 = vld [vmem:[#allocation10 + $0x198] sm:$0xff]
        %v363 = vld [vmem:[#allocation10 + $0x1a0] sm:$0xff]
        %v364 = vld [vmem:[#allocation10 + $0x1a8] sm:$0xff]
        %v365 = vld [vmem:[#allocation10 + $0x1b0] sm:$0xff]
        %v366 = vld [vmem:[#allocation10 + $0x1b8] sm:$0xff]
        %v367 = vld [vmem:[#allocation10 + $0x1c0] sm:$0xff]
        %v368 = vld [vmem:[#allocation10 + $0x1c8] sm:$0xff]
        %v369 = vld [vmem:[#allocation10 + $0x1d0] sm:$0xff]
        %v370 = vld [vmem:[#allocation10 + $0x1d8] sm:$0xff]
        %v371 = vld [vmem:[#allocation10 + $0x1e0] sm:$0xff]
        %v372 = vld [vmem:[#allocation10 + $0x1e8] sm:$0xff]
        %v373 = vld [vmem:[#allocation10 + $0x1f0] sm:$0xff]
        %v374 = vld [vmem:[#allocation10 + $0x1f8] sm:$0xff]
        %375 = vmatprep.subr.mxu0 %v312
        %376 = vmatpush1.msra.mxu0 %v311
        %377 = vmatprep.subr.mxu0 %v316
        %378 = vmatpush1.msra.mxu0 %v315
        %379 = vmatprep.subr.mxu0 %v320
        %380 = vmatpush1.msra.mxu0 %v319
        %381 = vmatprep.subr.mxu0 %v324
        %382 = vmatpush1.msra.mxu0 %v323
        %383 = vmatprep.subr.mxu0 %v328
        %384 = vmatpush1.msra.mxu0 %v327
        %385 = vmatprep.subr.mxu0 %v332
        %386 = vmatpush1.msra.mxu0 %v331
        %387 = vmatprep.subr.mxu0 %v336
        %388 = vmatpush1.msra.mxu0 %v335
        %389 = vmatprep.subr.mxu0 %v340
        %390 = vmatpush1.msra.mxu0 %v339
        %391 = vmatprep.subr.mxu0 %v344
        %392 = vmatpush1.msra.mxu0 %v343
        %393 = vmatprep.subr.mxu0 %v348
        %394 = vmatpush1.msra.mxu0 %v347
        %395 = vmatprep.subr.mxu0 %v352
        %396 = vmatpush1.msra.mxu0 %v351
        %397 = vmatprep.subr.mxu0 %v356
        %398 = vmatpush1.msra.mxu0 %v355
        %399 = vmatprep.subr.mxu0 %v360
        %400 = vmatpush1.msra.mxu0 %v359
        %401 = vmatprep.subr.mxu0 %v364
        %402 = vmatpush1.msra.mxu0 %v363
        %403 = vmatprep.subr.mxu0 %v368
        %404 = vmatpush1.msra.mxu0 %v367
        %405 = vmatprep.subr.mxu0 %v372
        %406 = vmatpush1.msra.mxu0 %v371
        %407 = vmatprep.subr.mxu0 0.0
        %408 = vmatpush1.msra.mxu0 0.0
        %409 = vmatprep.subr.mxu0 0.0
        %410 = vmatpush1.msra.mxu0 0.0
        %411 = vmatprep.subr.mxu0 0.0
        %412 = vmatpush1.msra.mxu0 0.0
        %413 = vmatprep.subr.mxu0 0.0
        %414 = vmatpush1.msra.mxu0 0.0
        %415 = vmatprep.subr.mxu0 0.0
        %416 = vmatpush1.msra.mxu0 0.0
        %417 = vmatprep.subr.mxu0 0.0
        %418 = vmatpush1.msra.mxu0 0.0
        %419 = vmatprep.subr.mxu0 0.0
        %420 = vmatpush1.msra.mxu0 0.0
        %421 = vmatprep.subr.mxu0 0.0
        %422 = vmatpush1.msra.mxu0 0.0
        %423 = vmatprep.subr.mxu0 0.0
        %424 = vmatpush1.msra.mxu0 0.0
        %425 = vmatprep.subr.mxu0 0.0
        %426 = vmatpush1.msra.mxu0 0.0
        %427 = vmatprep.subr.mxu0 0.0
        %428 = vmatpush1.msra.mxu0 0.0
        %429 = vmatprep.subr.mxu0 0.0
        %430 = vmatpush1.msra.mxu0 0.0
        %431 = vmatprep.subr.mxu0 0.0
        %432 = vmatpush1.msra.mxu0 0.0
        %433 = vmatprep.subr.mxu0 0.0
        %434 = vmatpush1.msra.mxu0 0.0
        %435 = vmatprep.subr.mxu0 0.0
        %436 = vmatpush1.msra.mxu0 0.0
        %437 = vmatprep.subr.mxu0 0.0
        %438 = vmatpush1.msra.mxu0 0.0
        %439 = vmatprep.mubr.f32.mxu0 0.0
        %440 = vmatmul.mubr.f32.gmra.mrb[0].mxu0 %v310
        %v441 = vpop.f32.mrb[0].mxu0
        %v442 = vadd.f32 0.0, %v441
        %v443 = vpop.f32.mrb[0].mxu0
        %v444 = vadd.f32 0.0, %v443
        %445 = vdwg.mxu0
        %446 = vmatprep.subr.mxu0 %v314
        %447 = vmatpush1.msra.mxu0 %v313
        %448 = vmatprep.subr.mxu0 %v318
        %449 = vmatpush1.msra.mxu0 %v317
        %450 = vmatprep.subr.mxu0 %v322
        %451 = vmatpush1.msra.mxu0 %v321
        %452 = vmatprep.subr.mxu0 %v326
        %453 = vmatpush1.msra.mxu0 %v325
        %454 = vmatprep.subr.mxu0 %v330
        %455 = vmatpush1.msra.mxu0 %v329
        %456 = vmatprep.subr.mxu0 %v334
        %457 = vmatpush1.msra.mxu0 %v333
        %458 = vmatprep.subr.mxu0 %v338
        %459 = vmatpush1.msra.mxu0 %v337
        %460 = vmatprep.subr.mxu0 %v342
        %461 = vmatpush1.msra.mxu0 %v341
        %462 = vmatprep.subr.mxu0 %v346
        %463 = vmatpush1.msra.mxu0 %v345
        %464 = vmatprep.subr.mxu0 %v350
        %465 = vmatpush1.msra.mxu0 %v349
        %466 = vmatprep.subr.mxu0 %v354
        %467 = vmatpush1.msra.mxu0 %v353
        %468 = vmatprep.subr.mxu0 %v358
        %469 = vmatpush1.msra.mxu0 %v357
        %470 = vmatprep.subr.mxu0 %v362
        %471 = vmatpush1.msra.mxu0 %v361
        %472 = vmatprep.subr.mxu0 %v366
        %473 = vmatpush1.msra.mxu0 %v365
        %474 = vmatprep.subr.mxu0 %v370
        %475 = vmatpush1.msra.mxu0 %v369
        %476 = vmatprep.subr.mxu0 %v374
        %477 = vmatpush1.msra.mxu0 %v373
        %478 = vmatprep.subr.mxu0 0.0
        %479 = vmatpush1.msra.mxu0 0.0
        %480 = vmatprep.subr.mxu0 0.0
        %481 = vmatpush1.msra.mxu0 0.0
        %482 = vmatprep.subr.mxu0 0.0
        %483 = vmatpush1.msra.mxu0 0.0
        %484 = vmatprep.subr.mxu0 0.0
        %485 = vmatpush1.msra.mxu0 0.0
        %486 = vmatprep.subr.mxu0 0.0
        %487 = vmatpush1.msra.mxu0 0.0
        %488 = vmatprep.subr.mxu0 0.0
        %489 = vmatpush1.msra.mxu0 0.0
        %490 = vmatprep.subr.mxu0 0.0
        %491 = vmatpush1.msra.mxu0 0.0
        %492 = vmatprep.subr.mxu0 0.0
        %493 = vmatpush1.msra.mxu0 0.0
        %494 = vmatprep.subr.mxu0 0.0
        %495 = vmatpush1.msra.mxu0 0.0
        %496 = vmatprep.subr.mxu0 0.0
        %497 = vmatpush1.msra.mxu0 0.0
        %498 = vmatprep.subr.mxu0 0.0
        %499 = vmatpush1.msra.mxu0 0.0
        %500 = vmatprep.subr.mxu0 0.0
        %501 = vmatpush1.msra.mxu0 0.0
        %502 = vmatprep.subr.mxu0 0.0
        %503 = vmatpush1.msra.mxu0 0.0
        %504 = vmatprep.subr.mxu0 0.0
        %505 = vmatpush1.msra.mxu0 0.0
        %506 = vmatprep.subr.mxu0 0.0
        %507 = vmatpush1.msra.mxu0 0.0
        %508 = vmatprep.subr.mxu0 0.0
        %509 = vmatpush1.msra.mxu0 0.0
        %510 = vmatprep.mubr.f32.mxu0 0.0
        %511 = vmatmul.mubr.f32.gmra.mrb[0].mxu0 %v310
        %v512 = vpop.f32.mrb[0].mxu0
        %v513 = vadd.f32 0.0, %v512
        %v514 = vpop.f32.mrb[0].mxu0
        %v515 = vadd.f32 0.0, %v514
        %516 = vdwg.mxu0
        %v517 = vadd.f32 %v306, %v442
        %v518 = vadd.f32 %v307, %v444
        %v519 = vadd.f32 %v308, %v513
        %v520 = vadd.f32 %v309, %v515
        %v521 = vmul.f32 %v517, 0.5
        %v522 = vtanh.pop %v521
        %v523 = vmul.f32 %v522, 0.5
        %v524 = vadd.f32 %v523, 0.5
        %v525 = vmul.f32 %v518, 0.5
        %v526 = vtanh.pop %v525
        %v527 = vmul.f32 %v526, 0.5
        %v528 = vadd.f32 %v527, 0.5
        %v529 = vtanh.pop %v519
        %v530 = vmul.f32 %v520, 0.5
        %v531 = vtanh.pop %v530
        %v532 = vmul.f32 %v531, 0.5
        %v533 = vadd.f32 %v532, 0.5
        %v534 = vld [vmem:[#allocation3] sm:$0xff]
        %v535 = vmul.f32 %v528, %v534
        %v536 = vmul.f32 %v524, %v529
        %v537 = vadd.f32 %v535, %v536
        %v538 = vtanh.pop %v537
        %v539 = vmul.f32 %v533, %v538
        %540 = vst [vmem:[#allocation2] sm:$0xff] %v539
        %541 = vst [vmem:[#allocation3] sm:$0xff] %v537
        %542 = vst [vmem:[%s287] sm:$0xff] %v539
        %543 = vst [vmem:[%s294] sm:$0xff] %v537
        %s544 = scalar_lea.vmem %s251, 32 [#allocation4]
        %v545 = vld [vmem:[%s544] sm:$0xff]
        %v546 = vld [vmem:[%s544 + $0x8] sm:$0xff]
        %v547 = vld [vmem:[%s544 + $0x10] sm:$0xff]
        %v548 = vld [vmem:[%s544 + $0x18] sm:$0xff]
        %v549 = vld [vmem:[#allocation2] sm:$0xff]
        %v550 = vld [vmem:[#allocation10] sm:$0xff]
        %v551 = vld [vmem:[#allocation10 + $0x8] sm:$0xff]
        %v552 = vld [vmem:[#allocation10 + $0x10] sm:$0xff]
        %v553 = vld [vmem:[#allocation10 + $0x18] sm:$0xff]
        %v554 = vld [vmem:[#allocation10 + $0x20] sm:$0xff]
        %v555 = vld [vmem:[#allocation10 + $0x28] sm:$0xff]
        %v556 = vld [vmem:[#allocation10 + $0x30] sm:$0xff]
        %v557 = vld [vmem:[#allocation10 + $0x38] sm:$0xff]
        %v558 = vld [vmem:[#allocation10 + $0x40] sm:$0xff]
        %v559 = vld [vmem:[#allocation10 + $0x48] sm:$0xff]
        %v560 = vld [vmem:[#allocation10 + $0x50] sm:$0xff]
        %v561 = vld [vmem:[#allocation10 + $0x58] sm:$0xff]
        %v562 = vld [vmem:[#allocation10 + $0x60] sm:$0xff]
        %v563 = vld [vmem:[#allocation10 + $0x68] sm:$0xff]
        %v564 = vld [vmem:[#allocation10 + $0x70] sm:$0xff]
        %v565 = vld [vmem:[#allocation10 + $0x78] sm:$0xff]
        %v566 = vld [vmem:[#allocation10 + $0x80] sm:$0xff]
        %v567 = vld [vmem:[#allocation10 + $0x88] sm:$0xff]
        %v568 = vld [vmem:[#allocation10 + $0x90] sm:$0xff]
        %v569 = vld [vmem:[#allocation10 + $0x98] sm:$0xff]
        %v570 = vld [vmem:[#allocation10 + $0xa0] sm:$0xff]
        %v571 = vld [vmem:[#allocation10 + $0xa8] sm:$0xff]
        %v572 = vld [vmem:[#allocation10 + $0xb0] sm:$0xff]
        %v573 = vld [vmem:[#allocation10 + $0xb8] sm:$0xff]
        %v574 = vld [vmem:[#allocation10 + $0xc0] sm:$0xff]
        %v575 = vld [vmem:[#allocation10 + $0xc8] sm:$0xff]
        %v576 = vld [vmem:[#allocation10 + $0xd0] sm:$0xff]
        %v577 = vld [vmem:[#allocation10 + $0xd8] sm:$0xff]
        %v578 = vld [vmem:[#allocation10 + $0xe0] sm:$0xff]
        %v579 = vld [vmem:[#allocation10 + $0xe8] sm:$0xff]
        %v580 = vld [vmem:[#allocation10 + $0xf0] sm:$0xff]
        %v581 = vld [vmem:[#allocation10 + $0xf8] sm:$0xff]
        %v582 = vld [vmem:[#allocation10 + $0x100] sm:$0xff]
        %v583 = vld [vmem:[#allocation10 + $0x108] sm:$0xff]
        %v584 = vld [vmem:[#allocation10 + $0x110] sm:$0xff]
        %v585 = vld [vmem:[#allocation10 + $0x118] sm:$0xff]
        %v586 = vld [vmem:[#allocation10 + $0x120] sm:$0xff]
        %v587 = vld [vmem:[#allocation10 + $0x128] sm:$0xff]
        %v588 = vld [vmem:[#allocation10 + $0x130] sm:$0xff]
        %v589 = vld [vmem:[#allocation10 + $0x138] sm:$0xff]
        %v590 = vld [vmem:[#allocation10 + $0x140] sm:$0xff]
        %v591 = vld [vmem:[#allocation10 + $0x148] sm:$0xff]
        %v592 = vld [vmem:[#allocation10 + $0x150] sm:$0xff]
        %v593 = vld [vmem:[#allocation10 + $0x158] sm:$0xff]
        %v594 = vld [vmem:[#allocation10 + $0x160] sm:$0xff]
        %v595 = vld [vmem:[#allocation10 + $0x168] sm:$0xff]
        %v596 = vld [vmem:[#allocation10 + $0x170] sm:$0xff]
        %v597 = vld [vmem:[#allocation10 + $0x178] sm:$0xff]
        %v598 = vld [vmem:[#allocation10 + $0x180] sm:$0xff]
        %v599 = vld [vmem:[#allocation10 + $0x188] sm:$0xff]
        %v600 = vld [vmem:[#allocation10 + $0x190] sm:$0xff]
        %v601 = vld [vmem:[#allocation10 + $0x198] sm:$0xff]
        %v602 = vld [vmem:[#allocation10 + $0x1a0] sm:$0xff]
        %v603 = vld [vmem:[#allocation10 + $0x1a8] sm:$0xff]
        %v604 = vld [vmem:[#allocation10 + $0x1b0] sm:$0xff]
        %v605 = vld [vmem:[#allocation10 + $0x1b8] sm:$0xff]
        %v606 = vld [vmem:[#allocation10 + $0x1c0] sm:$0xff]
        %v607 = vld [vmem:[#allocation10 + $0x1c8] sm:$0xff]
        %v608 = vld [vmem:[#allocation10 + $0x1d0] sm:$0xff]
        %v609 = vld [vmem:[#allocation10 + $0x1d8] sm:$0xff]
        %v610 = vld [vmem:[#allocation10 + $0x1e0] sm:$0xff]
        %v611 = vld [vmem:[#allocation10 + $0x1e8] sm:$0xff]
        %v612 = vld [vmem:[#allocation10 + $0x1f0] sm:$0xff]
        %v613 = vld [vmem:[#allocation10 + $0x1f8] sm:$0xff]
        %614 = vmatprep.subr.mxu0 %v551
        %615 = vmatpush1.msra.mxu0 %v550
        %616 = vmatprep.subr.mxu0 %v555
        %617 = vmatpush1.msra.mxu0 %v554
        %618 = vmatprep.subr.mxu0 %v559
        %619 = vmatpush1.msra.mxu0 %v558
        %620 = vmatprep.subr.mxu0 %v563
        %621 = vmatpush1.msra.mxu0 %v562
        %622 = vmatprep.subr.mxu0 %v567
        %623 = vmatpush1.msra.mxu0 %v566
        %624 = vmatprep.subr.mxu0 %v571
        %625 = vmatpush1.msra.mxu0 %v570
        %626 = vmatprep.subr.mxu0 %v575
        %627 = vmatpush1.msra.mxu0 %v574
        %628 = vmatprep.subr.mxu0 %v579
        %629 = vmatpush1.msra.mxu0 %v578
        %630 = vmatprep.subr.mxu0 %v583
        %631 = vmatpush1.msra.mxu0 %v582
        %632 = vmatprep.subr.mxu0 %v587
        %633 = vmatpush1.msra.mxu0 %v586
        %634 = vmatprep.subr.mxu0 %v591
        %635 = vmatpush1.msra.mxu0 %v590
        %636 = vmatprep.subr.mxu0 %v595
        %637 = vmatpush1.msra.mxu0 %v594
        %638 = vmatprep.subr.mxu0 %v599
        %639 = vmatpush1.msra.mxu0 %v598
        %640 = vmatprep.subr.mxu0 %v603
        %641 = vmatpush1.msra.mxu0 %v602
        %642 = vmatprep.subr.mxu0 %v607
        %643 = vmatpush1.msra.mxu0 %v606
        %644 = vmatprep.subr.mxu0 %v611
        %645 = vmatpush1.msra.mxu0 %v610
        %646 = vmatprep.subr.mxu0 0.0
        %647 = vmatpush1.msra.mxu0 0.0
        %648 = vmatprep.subr.mxu0 0.0
        %649 = vmatpush1.msra.mxu0 0.0
        %650 = vmatprep.subr.mxu0 0.0
        %651 = vmatpush1.msra.mxu0 0.0
        %652 = vmatprep.subr.mxu0 0.0
        %653 = vmatpush1.msra.mxu0 0.0
        %654 = vmatprep.subr.mxu0 0.0
        %655 = vmatpush1.msra.mxu0 0.0
        %656 = vmatprep.subr.mxu0 0.0
        %657 = vmatpush1.msra.mxu0 0.0
        %658 = vmatprep.subr.mxu0 0.0
        %659 = vmatpush1.msra.mxu0 0.0
        %660 = vmatprep.subr.mxu0 0.0
        %661 = vmatpush1.msra.mxu0 0.0
        %662 = vmatprep.subr.mxu0 0.0
        %663 = vmatpush1.msra.mxu0 0.0
        %664 = vmatprep.subr.mxu0 0.0
        %665 = vmatpush1.msra.mxu0 0.0
        %666 = vmatprep.subr.mxu0 0.0
        %667 = vmatpush1.msra.mxu0 0.0
        %668 = vmatprep.subr.mxu0 0.0
        %669 = vmatpush1.msra.mxu0 0.0
        %670 = vmatprep.subr.mxu0 0.0
        %671 = vmatpush1.msra.mxu0 0.0
        %672 = vmatprep.subr.mxu0 0.0
        %673 = vmatpush1.msra.mxu0 0.0
        %674 = vmatprep.subr.mxu0 0.0
        %675 = vmatpush1.msra.mxu0 0.0
        %676 = vmatprep.subr.mxu0 0.0
        %677 = vmatpush1.msra.mxu0 0.0
        %678 = vmatprep.mubr.f32.mxu0 0.0
        %679 = vmatmul.mubr.f32.gmra.mrb[0].mxu0 %v549
        %v680 = vpop.f32.mrb[0].mxu0
        %v681 = vadd.f32 0.0, %v680
        %v682 = vpop.f32.mrb[0].mxu0
        %v683 = vadd.f32 0.0, %v682
        %684 = vdwg.mxu0
        %685 = vmatprep.subr.mxu0 %v553
        %686 = vmatpush1.msra.mxu0 %v552
        %687 = vmatprep.subr.mxu0 %v557
        %688 = vmatpush1.msra.mxu0 %v556
        %689 = vmatprep.subr.mxu0 %v561
        %690 = vmatpush1.msra.mxu0 %v560
        %691 = vmatprep.subr.mxu0 %v565
        %692 = vmatpush1.msra.mxu0 %v564
        %693 = vmatprep.subr.mxu0 %v569
        %694 = vmatpush1.msra.mxu0 %v568
        %695 = vmatprep.subr.mxu0 %v573
        %696 = vmatpush1.msra.mxu0 %v572
        %697 = vmatprep.subr.mxu0 %v577
        %698 = vmatpush1.msra.mxu0 %v576
        %699 = vmatprep.subr.mxu0 %v581
        %700 = vmatpush1.msra.mxu0 %v580
        %701 = vmatprep.subr.mxu0 %v585
        %702 = vmatpush1.msra.mxu0 %v584
        %703 = vmatprep.subr.mxu0 %v589
        %704 = vmatpush1.msra.mxu0 %v588
        %705 = vmatprep.subr.mxu0 %v593
        %706 = vmatpush1.msra.mxu0 %v592
        %707 = vmatprep.subr.mxu0 %v597
        %708 = vmatpush1.msra.mxu0 %v596
        %709 = vmatprep.subr.mxu0 %v601
        %710 = vmatpush1.msra.mxu0 %v600
        %711 = vmatprep.subr.mxu0 %v605
        %712 = vmatpush1.msra.mxu0 %v604
        %713 = vmatprep.subr.mxu0 %v609
        %714 = vmatpush1.msra.mxu0 %v608
        %715 = vmatprep.subr.mxu0 %v613
        %716 = vmatpush1.msra.mxu0 %v612
        %717 = vmatprep.subr.mxu0 0.0
        %718 = vmatpush1.msra.mxu0 0.0
        %719 = vmatprep.subr.mxu0 0.0
        %720 = vmatpush1.msra.mxu0 0.0
        %721 = vmatprep.subr.mxu0 0.0
        %722 = vmatpush1.msra.mxu0 0.0
        %723 = vmatprep.subr.mxu0 0.0
        %724 = vmatpush1.msra.mxu0 0.0
        %725 = vmatprep.subr.mxu0 0.0
        %726 = vmatpush1.msra.mxu0 0.0
        %727 = vmatprep.subr.mxu0 0.0
        %728 = vmatpush1.msra.mxu0 0.0
        %729 = vmatprep.subr.mxu0 0.0
        %730 = vmatpush1.msra.mxu0 0.0
        %731 = vmatprep.subr.mxu0 0.0
        %732 = vmatpush1.msra.mxu0 0.0
        %733 = vmatprep.subr.mxu0 0.0
        %734 = vmatpush1.msra.mxu0 0.0
        %735 = vmatprep.subr.mxu0 0.0
        %736 = vmatpush1.msra.mxu0 0.0
        %737 = vmatprep.subr.mxu0 0.0
        %738 = vmatpush1.msra.mxu0 0.0
        %739 = vmatprep.subr.mxu0 0.0
        %740 = vmatpush1.msra.mxu0 0.0
        %741 = vmatprep.subr.mxu0 0.0
        %742 = vmatpush1.msra.mxu0 0.0
        %743 = vmatprep.subr.mxu0 0.0
        %744 = vmatpush1.msra.mxu0 0.0
        %745 = vmatprep.subr.mxu0 0.0
        %746 = vmatpush1.msra.mxu0 0.0
        %747 = vmatprep.subr.mxu0 0.0
        %748 = vmatpush1.msra.mxu0 0.0
        %749 = vmatprep.mubr.f32.mxu0 0.0
        %750 = vmatmul.mubr.f32.gmra.mrb[0].mxu0 %v549
        %v751 = vpop.f32.mrb[0].mxu0
        %v752 = vadd.f32 0.0, %v751
        %v753 = vpop.f32.mrb[0].mxu0
        %v754 = vadd.f32 0.0, %v753
        %755 = vdwg.mxu0
        %v756 = vadd.f32 %v545, %v681
        %v757 = vadd.f32 %v546, %v683
        %v758 = vadd.f32 %v547, %v752
        %v759 = vadd.f32 %v548, %v754
        %v760 = vmul.f32 %v756, 0.5
        %v761 = vtanh.pop %v760
        %v762 = vmul.f32 %v761, 0.5
        %v763 = vadd.f32 %v762, 0.5
        %v764 = vmul.f32 %v757, 0.5
        %v765 = vtanh.pop %v764
        %v766 = vmul.f32 %v765, 0.5
        %v767 = vadd.f32 %v766, 0.5
        %v768 = vtanh.pop %v758
        %v769 = vmul.f32 %v759, 0.5
        %v770 = vtanh.pop %v769
        %v771 = vmul.f32 %v770, 0.5
        %v772 = vadd.f32 %v771, 0.5
        %v773 = vld [vmem:[#allocation3] sm:$0xff]
        %v774 = vmul.f32 %v767, %v773
        %v775 = vmul.f32 %v763, %v768
        %v776 = vadd.f32 %v774, %v775
        %v777 = vtanh.pop %v776
        %v778 = vmul.f32 %v772, %v777
        %779 = vst [vmem:[#allocation2] sm:$0xff] %v778
        %780 = vst [vmem:[#allocation3] sm:$0xff] %v776
        %s781 = scalar_lea.vmem %s287, 8 [#allocation12]
        %782 = vst [vmem:[%s781] sm:$0xff] %v778
        %s783 = scalar_lea.vmem %s294, 8 [#allocation13]
        %784 = vst [vmem:[%s783] sm:$0xff] %v776
        %s785 = scalar_lea.vmem %s251, 64 [#allocation4]
        %v786 = vld [vmem:[%s785] sm:$0xff]
        %v787 = vld [vmem:[%s785 + $0x8] sm:$0xff]
        %v788 = vld [vmem:[%s785 + $0x10] sm:$0xff]
        %v789 = vld [vmem:[%s785 + $0x18] sm:$0xff]
        %v790 = vld [vmem:[#allocation2] sm:$0xff]
        %v791 = vld [vmem:[#allocation10] sm:$0xff]
        %v792 = vld [vmem:[#allocation10 + $0x8] sm:$0xff]
        %v793 = vld [vmem:[#allocation10 + $0x10] sm:$0xff]
        %v794 = vld [vmem:[#allocation10 + $0x18] sm:$0xff]
        %v795 = vld [vmem:[#allocation10 + $0x20] sm:$0xff]
        %v796 = vld [vmem:[#allocation10 + $0x28] sm:$0xff]
        %v797 = vld [vmem:[#allocation10 + $0x30] sm:$0xff]
        %v798 = vld [vmem:[#allocation10 + $0x38] sm:$0xff]
        %v799 = vld [vmem:[#allocation10 + $0x40] sm:$0xff]
        %v800 = vld [vmem:[#allocation10 + $0x48] sm:$0xff]
        %v801 = vld [vmem:[#allocation10 + $0x50] sm:$0xff]
        %v802 = vld [vmem:[#allocation10 + $0x58] sm:$0xff]
        %v803 = vld [vmem:[#allocation10 + $0x60] sm:$0xff]
        %v804 = vld [vmem:[#allocation10 + $0x68] sm:$0xff]
        %v805 = vld [vmem:[#allocation10 + $0x70] sm:$0xff]
        %v806 = vld [vmem:[#allocation10 + $0x78] sm:$0xff]
        %v807 = vld [vmem:[#allocation10 + $0x80] sm:$0xff]
        %v808 = vld [vmem:[#allocation10 + $0x88] sm:$0xff]
        %v809 = vld [vmem:[#allocation10 + $0x90] sm:$0xff]
        %v810 = vld [vmem:[#allocation10 + $0x98] sm:$0xff]
        %v811 = vld [vmem:[#allocation10 + $0xa0] sm:$0xff]
        %v812 = vld [vmem:[#allocation10 + $0xa8] sm:$0xff]
        %v813 = vld [vmem:[#allocation10 + $0xb0] sm:$0xff]
        %v814 = vld [vmem:[#allocation10 + $0xb8] sm:$0xff]
        %v815 = vld [vmem:[#allocation10 + $0xc0] sm:$0xff]
        %v816 = vld [vmem:[#allocation10 + $0xc8] sm:$0xff]
        %v817 = vld [vmem:[#allocation10 + $0xd0] sm:$0xff]
        %v818 = vld [vmem:[#allocation10 + $0xd8] sm:$0xff]
        %v819 = vld [vmem:[#allocation10 + $0xe0] sm:$0xff]
        %v820 = vld [vmem:[#allocation10 + $0xe8] sm:$0xff]
        %v821 = vld [vmem:[#allocation10 + $0xf0] sm:$0xff]
        %v822 = vld [vmem:[#allocation10 + $0xf8] sm:$0xff]
        %v823 = vld [vmem:[#allocation10 + $0x100] sm:$0xff]
        %v824 = vld [vmem:[#allocation10 + $0x108] sm:$0xff]
        %v825 = vld [vmem:[#allocation10 + $0x110] sm:$0xff]
        %v826 = vld [vmem:[#allocation10 + $0x118] sm:$0xff]
        %v827 = vld [vmem:[#allocation10 + $0x120] sm:$0xff]
        %v828 = vld [vmem:[#allocation10 + $0x128] sm:$0xff]
        %v829 = vld [vmem:[#allocation10 + $0x130] sm:$0xff]
        %v830 = vld [vmem:[#allocation10 + $0x138] sm:$0xff]
        %v831 = vld [vmem:[#allocation10 + $0x140] sm:$0xff]
        %v832 = vld [vmem:[#allocation10 + $0x148] sm:$0xff]
        %v833 = vld [vmem:[#allocation10 + $0x150] sm:$0xff]
        %v834 = vld [vmem:[#allocation10 + $0x158] sm:$0xff]
        %v835 = vld [vmem:[#allocation10 + $0x160] sm:$0xff]
        %v836 = vld [vmem:[#allocation10 + $0x168] sm:$0xff]
        %v837 = vld [vmem:[#allocation10 + $0x170] sm:$0xff]
        %v838 = vld [vmem:[#allocation10 + $0x178] sm:$0xff]
        %v839 = vld [vmem:[#allocation10 + $0x180] sm:$0xff]
        %v840 = vld [vmem:[#allocation10 + $0x188] sm:$0xff]
        %v841 = vld [vmem:[#allocation10 + $0x190] sm:$0xff]
        %v842 = vld [vmem:[#allocation10 + $0x198] sm:$0xff]
        %v843 = vld [vmem:[#allocation10 + $0x1a0] sm:$0xff]
        %v844 = vld [vmem:[#allocation10 + $0x1a8] sm:$0xff]
        %v845 = vld [vmem:[#allocation10 + $0x1b0] sm:$0xff]
        %v846 = vld [vmem:[#allocation10 + $0x1b8] sm:$0xff]
        %v847 = vld [vmem:[#allocation10 + $0x1c0] sm:$0xff]
        %v848 = vld [vmem:[#allocation10 + $0x1c8] sm:$0xff]
        %v849 = vld [vmem:[#allocation10 + $0x1d0] sm:$0xff]
        %v850 = vld [vmem:[#allocation10 + $0x1d8] sm:$0xff]
        %v851 = vld [vmem:[#allocation10 + $0x1e0] sm:$0xff]
        %v852 = vld [vmem:[#allocation10 + $0x1e8] sm:$0xff]
        %v853 = vld [vmem:[#allocation10 + $0x1f0] sm:$0xff]
        %v854 = vld [vmem:[#allocation10 + $0x1f8] sm:$0xff]
        %855 = vmatprep.subr.mxu0 %v792
        %856 = vmatpush1.msra.mxu0 %v791
        %857 = vmatprep.subr.mxu0 %v796
        %858 = vmatpush1.msra.mxu0 %v795
        %859 = vmatprep.subr.mxu0 %v800
        %860 = vmatpush1.msra.mxu0 %v799
        %861 = vmatprep.subr.mxu0 %v804
        %862 = vmatpush1.msra.mxu0 %v803
        %863 = vmatprep.subr.mxu0 %v808
        %864 = vmatpush1.msra.mxu0 %v807
        %865 = vmatprep.subr.mxu0 %v812
        %866 = vmatpush1.msra.mxu0 %v811
        %867 = vmatprep.subr.mxu0 %v816
        %868 = vmatpush1.msra.mxu0 %v815
        %869 = vmatprep.subr.mxu0 %v820
        %870 = vmatpush1.msra.mxu0 %v819
        %871 = vmatprep.subr.mxu0 %v824
        %872 = vmatpush1.msra.mxu0 %v823
        %873 = vmatprep.subr.mxu0 %v828
        %874 = vmatpush1.msra.mxu0 %v827
        %875 = vmatprep.subr.mxu0 %v832
        %876 = vmatpush1.msra.mxu0 %v831
        %877 = vmatprep.subr.mxu0 %v836
        %878 = vmatpush1.msra.mxu0 %v835
        %879 = vmatprep.subr.mxu0 %v840
        %880 = vmatpush1.msra.mxu0 %v839
        %881 = vmatprep.subr.mxu0 %v844
        %882 = vmatpush1.msra.mxu0 %v843
        %883 = vmatprep.subr.mxu0 %v848
        %884 = vmatpush1.msra.mxu0 %v847
        %885 = vmatprep.subr.mxu0 %v852
        %886 = vmatpush1.msra.mxu0 %v851
        %887 = vmatprep.subr.mxu0 0.0
        %888 = vmatpush1.msra.mxu0 0.0
        %889 = vmatprep.subr.mxu0 0.0
        %890 = vmatpush1.msra.mxu0 0.0
        %891 = vmatprep.subr.mxu0 0.0
        %892 = vmatpush1.msra.mxu0 0.0
        %893 = vmatprep.subr.mxu0 0.0
        %894 = vmatpush1.msra.mxu0 0.0
        %895 = vmatprep.subr.mxu0 0.0
        %896 = vmatpush1.msra.mxu0 0.0
        %897 = vmatprep.subr.mxu0 0.0
        %898 = vmatpush1.msra.mxu0 0.0
        %899 = vmatprep.subr.mxu0 0.0
        %900 = vmatpush1.msra.mxu0 0.0
        %901 = vmatprep.subr.mxu0 0.0
        %902 = vmatpush1.msra.mxu0 0.0
        %903 = vmatprep.subr.mxu0 0.0
        %904 = vmatpush1.msra.mxu0 0.0
        %905 = vmatprep.subr.mxu0 0.0
        %906 = vmatpush1.msra.mxu0 0.0
        %907 = vmatprep.subr.mxu0 0.0
        %908 = vmatpush1.msra.mxu0 0.0
        %909 = vmatprep.subr.mxu0 0.0
        %910 = vmatpush1.msra.mxu0 0.0
        %911 = vmatprep.subr.mxu0 0.0
        %912 = vmatpush1.msra.mxu0 0.0
        %913 = vmatprep.subr.mxu0 0.0
        %914 = vmatpush1.msra.mxu0 0.0
        %915 = vmatprep.subr.mxu0 0.0
        %916 = vmatpush1.msra.mxu0 0.0
        %917 = vmatprep.subr.mxu0 0.0
        %918 = vmatpush1.msra.mxu0 0.0
        %919 = vmatprep.mubr.f32.mxu0 0.0
        %920 = vmatmul.mubr.f32.gmra.mrb[0].mxu0 %v790
        %v921 = vpop.f32.mrb[0].mxu0
        %v922 = vadd.f32 0.0, %v921
        %v923 = vpop.f32.mrb[0].mxu0
        %v924 = vadd.f32 0.0, %v923
        %925 = vdwg.mxu0
        %926 = vmatprep.subr.mxu0 %v794
        %927 = vmatpush1.msra.mxu0 %v793
        %928 = vmatprep.subr.mxu0 %v798
        %929 = vmatpush1.msra.mxu0 %v797
        %930 = vmatprep.subr.mxu0 %v802
        %931 = vmatpush1.msra.mxu0 %v801
        %932 = vmatprep.subr.mxu0 %v806
        %933 = vmatpush1.msra.mxu0 %v805
        %934 = vmatprep.subr.mxu0 %v810
        %935 = vmatpush1.msra.mxu0 %v809
        %936 = vmatprep.subr.mxu0 %v814
        %937 = vmatpush1.msra.mxu0 %v813
        %938 = vmatprep.subr.mxu0 %v818
        %939 = vmatpush1.msra.mxu0 %v817
        %940 = vmatprep.subr.mxu0 %v822
        %941 = vmatpush1.msra.mxu0 %v821
        %942 = vmatprep.subr.mxu0 %v826
        %943 = vmatpush1.msra.mxu0 %v825
        %944 = vmatprep.subr.mxu0 %v830
        %945 = vmatpush1.msra.mxu0 %v829
        %946 = vmatprep.subr.mxu0 %v834
        %947 = vmatpush1.msra.mxu0 %v833
        %948 = vmatprep.subr.mxu0 %v838
        %949 = vmatpush1.msra.mxu0 %v837
        %950 = vmatprep.subr.mxu0 %v842
        %951 = vmatpush1.msra.mxu0 %v841
        %952 = vmatprep.subr.mxu0 %v846
        %953 = vmatpush1.msra.mxu0 %v845
        %954 = vmatprep.subr.mxu0 %v850
        %955 = vmatpush1.msra.mxu0 %v849
        %956 = vmatprep.subr.mxu0 %v854
        %957 = vmatpush1.msra.mxu0 %v853
        %958 = vmatprep.subr.mxu0 0.0
        %959 = vmatpush1.msra.mxu0 0.0
        %960 = vmatprep.subr.mxu0 0.0
        %961 = vmatpush1.msra.mxu0 0.0
        %962 = vmatprep.subr.mxu0 0.0
        %963 = vmatpush1.msra.mxu0 0.0
        %964 = vmatprep.subr.mxu0 0.0
        %965 = vmatpush1.msra.mxu0 0.0
        %966 = vmatprep.subr.mxu0 0.0
        %967 = vmatpush1.msra.mxu0 0.0
        %968 = vmatprep.subr.mxu0 0.0
        %969 = vmatpush1.msra.mxu0 0.0
        %970 = vmatprep.subr.mxu0 0.0
        %971 = vmatpush1.msra.mxu0 0.0
        %972 = vmatprep.subr.mxu0 0.0
        %973 = vmatpush1.msra.mxu0 0.0
        %974 = vmatprep.subr.mxu0 0.0
        %975 = vmatpush1.msra.mxu0 0.0
        %976 = vmatprep.subr.mxu0 0.0
        %977 = vmatpush1.msra.mxu0 0.0
        %978 = vmatprep.subr.mxu0 0.0
        %979 = vmatpush1.msra.mxu0 0.0
        %980 = vmatprep.subr.mxu0 0.0
        %981 = vmatpush1.msra.mxu0 0.0
        %982 = vmatprep.subr.mxu0 0.0
        %983 = vmatpush1.msra.mxu0 0.0
        %984 = vmatprep.subr.mxu0 0.0
        %985 = vmatpush1.msra.mxu0 0.0
        %986 = vmatprep.subr.mxu0 0.0
        %987 = vmatpush1.msra.mxu0 0.0
        %988 = vmatprep.subr.mxu0 0.0
        %989 = vmatpush1.msra.mxu0 0.0
        %990 = vmatprep.mubr.f32.mxu0 0.0
        %991 = vmatmul.mubr.f32.gmra.mrb[0].mxu0 %v790
        %v992 = vpop.f32.mrb[0].mxu0
        %v993 = vadd.f32 0.0, %v992
        %v994 = vpop.f32.mrb[0].mxu0
        %v995 = vadd.f32 0.0, %v994
        %996 = vdwg.mxu0
        %v997 = vadd.f32 %v786, %v922
        %v998 = vadd.f32 %v787, %v924
        %v999 = vadd.f32 %v788, %v993
        %v1000 = vadd.f32 %v789, %v995
        %v1001 = vmul.f32 %v997, 0.5
        %v1002 = vtanh.pop %v1001
        %v1003 = vmul.f32 %v1002, 0.5
        %v1004 = vadd.f32 %v1003, 0.5
        %v1005 = vmul.f32 %v998, 0.5
        %v1006 = vtanh.pop %v1005
        %v1007 = vmul.f32 %v1006, 0.5
        %v1008 = vadd.f32 %v1007, 0.5
        %v1009 = vtanh.pop %v999
        %v1010 = vmul.f32 %v1000, 0.5
        %v1011 = vtanh.pop %v1010
        %v1012 = vmul.f32 %v1011, 0.5
        %v1013 = vadd.f32 %v1012, 0.5
        %v1014 = vld [vmem:[#allocation3] sm:$0xff]
        %v1015 = vmul.f32 %v1008, %v1014
        %v1016 = vmul.f32 %v1004, %v1009
        %v1017 = vadd.f32 %v1015, %v1016
        %v1018 = vtanh.pop %v1017
        %v1019 = vmul.f32 %v1013, %v1018
        %1020 = vst [vmem:[#allocation2] sm:$0xff] %v1019
        %1021 = vst [vmem:[#allocation3] sm:$0xff] %v1017
        %s1022 = scalar_lea.vmem %s287, 16 [#allocation12]
        %1023 = vst [vmem:[%s1022] sm:$0xff] %v1019
        %s1024 = scalar_lea.vmem %s294, 16 [#allocation13]
        %1025 = vst [vmem:[%s1024] sm:$0xff] %v1017
        %s1026 = scalar_lea.vmem %s251, 96 [#allocation4]
        %v1027 = vld [vmem:[%s1026] sm:$0xff]
        %v1028 = vld [vmem:[%s1026 + $0x8] sm:$0xff]
        %v1029 = vld [vmem:[%s1026 + $0x10] sm:$0xff]
        %v1030 = vld [vmem:[%s1026 + $0x18] sm:$0xff]
        %v1031 = vld [vmem:[#allocation2] sm:$0xff]
        %v1032 = vld [vmem:[#allocation10] sm:$0xff]
        %v1033 = vld [vmem:[#allocation10 + $0x8] sm:$0xff]
        %v1034 = vld [vmem:[#allocation10 + $0x10] sm:$0xff]
        %v1035 = vld [vmem:[#allocation10 + $0x18] sm:$0xff]
        %v1036 = vld [vmem:[#allocation10 + $0x20] sm:$0xff]
        %v1037 = vld [vmem:[#allocation10 + $0x28] sm:$0xff]
        %v1038 = vld [vmem:[#allocation10 + $0x30] sm:$0xff]
        %v1039 = vld [vmem:[#allocation10 + $0x38] sm:$0xff]
        %v1040 = vld [vmem:[#allocation10 + $0x40] sm:$0xff]
        %v1041 = vld [vmem:[#allocation10 + $0x48] sm:$0xff]
        %v1042 = vld [vmem:[#allocation10 + $0x50] sm:$0xff]
        %v1043 = vld [vmem:[#allocation10 + $0x58] sm:$0xff]
        %v1044 = vld [vmem:[#allocation10 + $0x60] sm:$0xff]
        %v1045 = vld [vmem:[#allocation10 + $0x68] sm:$0xff]
        %v1046 = vld [vmem:[#allocation10 + $0x70] sm:$0xff]
        %v1047 = vld [vmem:[#allocation10 + $0x78] sm:$0xff]
        %v1048 = vld [vmem:[#allocation10 + $0x80] sm:$0xff]
        %v1049 = vld [vmem:[#allocation10 + $0x88] sm:$0xff]
        %v1050 = vld [vmem:[#allocation10 + $0x90] sm:$0xff]
        %v1051 = vld [vmem:[#allocation10 + $0x98] sm:$0xff]
        %v1052 = vld [vmem:[#allocation10 + $0xa0] sm:$0xff]
        %v1053 = vld [vmem:[#allocation10 + $0xa8] sm:$0xff]
        %v1054 = vld [vmem:[#allocation10 + $0xb0] sm:$0xff]
        %v1055 = vld [vmem:[#allocation10 + $0xb8] sm:$0xff]
        %v1056 = vld [vmem:[#allocation10 + $0xc0] sm:$0xff]
        %v1057 = vld [vmem:[#allocation10 + $0xc8] sm:$0xff]
        %v1058 = vld [vmem:[#allocation10 + $0xd0] sm:$0xff]
        %v1059 = vld [vmem:[#allocation10 + $0xd8] sm:$0xff]
        %v1060 = vld [vmem:[#allocation10 + $0xe0] sm:$0xff]
        %v1061 = vld [vmem:[#allocation10 + $0xe8] sm:$0xff]
        %v1062 = vld [vmem:[#allocation10 + $0xf0] sm:$0xff]
        %v1063 = vld [vmem:[#allocation10 + $0xf8] sm:$0xff]
        %v1064 = vld [vmem:[#allocation10 + $0x100] sm:$0xff]
        %v1065 = vld [vmem:[#allocation10 + $0x108] sm:$0xff]
        %v1066 = vld [vmem:[#allocation10 + $0x110] sm:$0xff]
        %v1067 = vld [vmem:[#allocation10 + $0x118] sm:$0xff]
        %v1068 = vld [vmem:[#allocation10 + $0x120] sm:$0xff]
        %v1069 = vld [vmem:[#allocation10 + $0x128] sm:$0xff]
        %v1070 = vld [vmem:[#allocation10 + $0x130] sm:$0xff]
        %v1071 = vld [vmem:[#allocation10 + $0x138] sm:$0xff]
        %v1072 = vld [vmem:[#allocation10 + $0x140] sm:$0xff]
        %v1073 = vld [vmem:[#allocation10 + $0x148] sm:$0xff]
        %v1074 = vld [vmem:[#allocation10 + $0x150] sm:$0xff]
        %v1075 = vld [vmem:[#allocation10 + $0x158] sm:$0xff]
        %v1076 = vld [vmem:[#allocation10 + $0x160] sm:$0xff]
        %v1077 = vld [vmem:[#allocation10 + $0x168] sm:$0xff]
        %v1078 = vld [vmem:[#allocation10 + $0x170] sm:$0xff]
        %v1079 = vld [vmem:[#allocation10 + $0x178] sm:$0xff]
        %v1080 = vld [vmem:[#allocation10 + $0x180] sm:$0xff]
        %v1081 = vld [vmem:[#allocation10 + $0x188] sm:$0xff]
        %v1082 = vld [vmem:[#allocation10 + $0x190] sm:$0xff]
        %v1083 = vld [vmem:[#allocation10 + $0x198] sm:$0xff]
        %v1084 = vld [vmem:[#allocation10 + $0x1a0] sm:$0xff]
        %v1085 = vld [vmem:[#allocation10 + $0x1a8] sm:$0xff]
        %v1086 = vld [vmem:[#allocation10 + $0x1b0] sm:$0xff]
        %v1087 = vld [vmem:[#allocation10 + $0x1b8] sm:$0xff]
        %v1088 = vld [vmem:[#allocation10 + $0x1c0] sm:$0xff]
        %v1089 = vld [vmem:[#allocation10 + $0x1c8] sm:$0xff]
        %v1090 = vld [vmem:[#allocation10 + $0x1d0] sm:$0xff]
        %v1091 = vld [vmem:[#allocation10 + $0x1d8] sm:$0xff]
        %v1092 = vld [vmem:[#allocation10 + $0x1e0] sm:$0xff]
        %v1093 = vld [vmem:[#allocation10 + $0x1e8] sm:$0xff]
        %v1094 = vld [vmem:[#allocation10 + $0x1f0] sm:$0xff]
        %v1095 = vld [vmem:[#allocation10 + $0x1f8] sm:$0xff]
        %1096 = vmatprep.subr.mxu0 %v1033
        %1097 = vmatpush1.msra.mxu0 %v1032
        %1098 = vmatprep.subr.mxu0 %v1037
        %1099 = vmatpush1.msra.mxu0 %v1036
        %1100 = vmatprep.subr.mxu0 %v1041
        %1101 = vmatpush1.msra.mxu0 %v1040
        %1102 = vmatprep.subr.mxu0 %v1045
        %1103 = vmatpush1.msra.mxu0 %v1044
        %1104 = vmatprep.subr.mxu0 %v1049
        %1105 = vmatpush1.msra.mxu0 %v1048
        %1106 = vmatprep.subr.mxu0 %v1053
        %1107 = vmatpush1.msra.mxu0 %v1052
        %1108 = vmatprep.subr.mxu0 %v1057
        %1109 = vmatpush1.msra.mxu0 %v1056
        %1110 = vmatprep.subr.mxu0 %v1061
        %1111 = vmatpush1.msra.mxu0 %v1060
        %1112 = vmatprep.subr.mxu0 %v1065
        %1113 = vmatpush1.msra.mxu0 %v1064
        %1114 = vmatprep.subr.mxu0 %v1069
        %1115 = vmatpush1.msra.mxu0 %v1068
        %1116 = vmatprep.subr.mxu0 %v1073
        %1117 = vmatpush1.msra.mxu0 %v1072
        %1118 = vmatprep.subr.mxu0 %v1077
        %1119 = vmatpush1.msra.mxu0 %v1076
        %1120 = vmatprep.subr.mxu0 %v1081
        %1121 = vmatpush1.msra.mxu0 %v1080
        %1122 = vmatprep.subr.mxu0 %v1085
        %1123 = vmatpush1.msra.mxu0 %v1084
        %1124 = vmatprep.subr.mxu0 %v1089
        %1125 = vmatpush1.msra.mxu0 %v1088
        %1126 = vmatprep.subr.mxu0 %v1093
        %1127 = vmatpush1.msra.mxu0 %v1092
        %1128 = vmatprep.subr.mxu0 0.0
        %1129 = vmatpush1.msra.mxu0 0.0
        %1130 = vmatprep.subr.mxu0 0.0
        %1131 = vmatpush1.msra.mxu0 0.0
        %1132 = vmatprep.subr.mxu0 0.0
        %1133 = vmatpush1.msra.mxu0 0.0
        %1134 = vmatprep.subr.mxu0 0.0
        %1135 = vmatpush1.msra.mxu0 0.0
        %1136 = vmatprep.subr.mxu0 0.0
        %1137 = vmatpush1.msra.mxu0 0.0
        %1138 = vmatprep.subr.mxu0 0.0
        %1139 = vmatpush1.msra.mxu0 0.0
        %1140 = vmatprep.subr.mxu0 0.0
        %1141 = vmatpush1.msra.mxu0 0.0
        %1142 = vmatprep.subr.mxu0 0.0
        %1143 = vmatpush1.msra.mxu0 0.0
        %1144 = vmatprep.subr.mxu0 0.0
        %1145 = vmatpush1.msra.mxu0 0.0
        %1146 = vmatprep.subr.mxu0 0.0
        %1147 = vmatpush1.msra.mxu0 0.0
        %1148 = vmatprep.subr.mxu0 0.0
        %1149 = vmatpush1.msra.mxu0 0.0
        %1150 = vmatprep.subr.mxu0 0.0
        %1151 = vmatpush1.msra.mxu0 0.0
        %1152 = vmatprep.subr.mxu0 0.0
        %1153 = vmatpush1.msra.mxu0 0.0
        %1154 = vmatprep.subr.mxu0 0.0
        %1155 = vmatpush1.msra.mxu0 0.0
        %1156 = vmatprep.subr.mxu0 0.0
        %1157 = vmatpush1.msra.mxu0 0.0
        %1158 = vmatprep.subr.mxu0 0.0
        %1159 = vmatpush1.msra.mxu0 0.0
        %1160 = vmatprep.mubr.f32.mxu0 0.0
        %1161 = vmatmul.mubr.f32.gmra.mrb[0].mxu0 %v1031
        %v1162 = vpop.f32.mrb[0].mxu0
        %v1163 = vadd.f32 0.0, %v1162
        %v1164 = vpop.f32.mrb[0].mxu0
        %v1165 = vadd.f32 0.0, %v1164
        %1166 = vdwg.mxu0
        %1167 = vmatprep.subr.mxu0 %v1035
        %1168 = vmatpush1.msra.mxu0 %v1034
        %1169 = vmatprep.subr.mxu0 %v1039
        %1170 = vmatpush1.msra.mxu0 %v1038
        %1171 = vmatprep.subr.mxu0 %v1043
        %1172 = vmatpush1.msra.mxu0 %v1042
        %1173 = vmatprep.subr.mxu0 %v1047
        %1174 = vmatpush1.msra.mxu0 %v1046
        %1175 = vmatprep.subr.mxu0 %v1051
        %1176 = vmatpush1.msra.mxu0 %v1050
        %1177 = vmatprep.subr.mxu0 %v1055
        %1178 = vmatpush1.msra.mxu0 %v1054
        %1179 = vmatprep.subr.mxu0 %v1059
        %1180 = vmatpush1.msra.mxu0 %v1058
        %1181 = vmatprep.subr.mxu0 %v1063
        %1182 = vmatpush1.msra.mxu0 %v1062
        %1183 = vmatprep.subr.mxu0 %v1067
        %1184 = vmatpush1.msra.mxu0 %v1066
        %1185 = vmatprep.subr.mxu0 %v1071
        %1186 = vmatpush1.msra.mxu0 %v1070
        %1187 = vmatprep.subr.mxu0 %v1075
        %1188 = vmatpush1.msra.mxu0 %v1074
        %1189 = vmatprep.subr.mxu0 %v1079
        %1190 = vmatpush1.msra.mxu0 %v1078
        %1191 = vmatprep.subr.mxu0 %v1083
        %1192 = vmatpush1.msra.mxu0 %v1082
        %1193 = vmatprep.subr.mxu0 %v1087
        %1194 = vmatpush1.msra.mxu0 %v1086
        %1195 = vmatprep.subr.mxu0 %v1091
        %1196 = vmatpush1.msra.mxu0 %v1090
        %1197 = vmatprep.subr.mxu0 %v1095
        %1198 = vmatpush1.msra.mxu0 %v1094
        %1199 = vmatprep.subr.mxu0 0.0
        %1200 = vmatpush1.msra.mxu0 0.0
        %1201 = vmatprep.subr.mxu0 0.0
        %1202 = vmatpush1.msra.mxu0 0.0
        %1203 = vmatprep.subr.mxu0 0.0
        %1204 = vmatpush1.msra.mxu0 0.0
        %1205 = vmatprep.subr.mxu0 0.0
        %1206 = vmatpush1.msra.mxu0 0.0
        %1207 = vmatprep.subr.mxu0 0.0
        %1208 = vmatpush1.msra.mxu0 0.0
        %1209 = vmatprep.subr.mxu0 0.0
        %1210 = vmatpush1.msra.mxu0 0.0
        %1211 = vmatprep.subr.mxu0 0.0
        %1212 = vmatpush1.msra.mxu0 0.0
        %1213 = vmatprep.subr.mxu0 0.0
        %1214 = vmatpush1.msra.mxu0 0.0
        %1215 = vmatprep.subr.mxu0 0.0
        %1216 = vmatpush1.msra.mxu0 0.0
        %1217 = vmatprep.subr.mxu0 0.0
        %1218 = vmatpush1.msra.mxu0 0.0
        %1219 = vmatprep.subr.mxu0 0.0
        %1220 = vmatpush1.msra.mxu0 0.0
        %1221 = vmatprep.subr.mxu0 0.0
        %1222 = vmatpush1.msra.mxu0 0.0
        %1223 = vmatprep.subr.mxu0 0.0
        %1224 = vmatpush1.msra.mxu0 0.0
        %1225 = vmatprep.subr.mxu0 0.0
        %1226 = vmatpush1.msra.mxu0 0.0
        %1227 = vmatprep.subr.mxu0 0.0
        %1228 = vmatpush1.msra.mxu0 0.0
        %1229 = vmatprep.subr.mxu0 0.0
        %1230 = vmatpush1.msra.mxu0 0.0
        %1231 = vmatprep.mubr.f32.mxu0 0.0
        %1232 = vmatmul.mubr.f32.gmra.mrb[0].mxu0 %v1031
        %v1233 = vpop.f32.mrb[0].mxu0
        %v1234 = vadd.f32 0.0, %v1233
        %v1235 = vpop.f32.mrb[0].mxu0
        %v1236 = vadd.f32 0.0, %v1235
        %1237 = vdwg.mxu0
        %v1238 = vadd.f32 %v1027, %v1163
        %v1239 = vadd.f32 %v1028, %v1165
        %v1240 = vadd.f32 %v1029, %v1234
        %v1241 = vadd.f32 %v1030, %v1236
        %v1242 = vmul.f32 %v1238, 0.5
        %v1243 = vtanh.pop %v1242
        %v1244 = vmul.f32 %v1243, 0.5
        %v1245 = vadd.f32 %v1244, 0.5
        %v1246 = vmul.f32 %v1239, 0.5
        %v1247 = vtanh.pop %v1246
        %v1248 = vmul.f32 %v1247, 0.5
        %v1249 = vadd.f32 %v1248, 0.5
        %v1250 = vtanh.pop %v1240
        %v1251 = vmul.f32 %v1241, 0.5
        %v1252 = vtanh.pop %v1251
        %v1253 = vmul.f32 %v1252, 0.5
        %v1254 = vadd.f32 %v1253, 0.5
        %v1255 = vld [vmem:[#allocation3] sm:$0xff]
        %v1256 = vmul.f32 %v1249, %v1255
        %v1257 = vmul.f32 %v1245, %v1250
        %v1258 = vadd.f32 %v1256, %v1257
        %v1259 = vtanh.pop %v1258
        %v1260 = vmul.f32 %v1254, %v1259
        %1261 = vst [vmem:[#allocation2] sm:$0xff] %v1260
        %1262 = vst [vmem:[#allocation3] sm:$0xff] %v1258
        %s1263 = scalar_lea.vmem %s287, 24 [#allocation12]
        %1264 = vst [vmem:[%s1263] sm:$0xff] %v1260
        %s1265 = scalar_lea.vmem %s294, 24 [#allocation13]
        %1266 = vst [vmem:[%s1265] sm:$0xff] %v1258
        %s1267 = scalar_lea.vmem %s251, 128 [#allocation4]
        %v1268 = vld [vmem:[%s1267] sm:$0xff]
        %v1269 = vld [vmem:[%s1267 + $0x8] sm:$0xff]
        %v1270 = vld [vmem:[%s1267 + $0x10] sm:$0xff]
        %v1271 = vld [vmem:[%s1267 + $0x18] sm:$0xff]
        %v1272 = vld [vmem:[#allocation2] sm:$0xff]
        %v1273 = vld [vmem:[#allocation10] sm:$0xff]
        %v1274 = vld [vmem:[#allocation10 + $0x8] sm:$0xff]
        %v1275 = vld [vmem:[#allocation10 + $0x10] sm:$0xff]
        %v1276 = vld [vmem:[#allocation10 + $0x18] sm:$0xff]
        %v1277 = vld [vmem:[#allocation10 + $0x20] sm:$0xff]
        %v1278 = vld [vmem:[#allocation10 + $0x28] sm:$0xff]
        %v1279 = vld [vmem:[#allocation10 + $0x30] sm:$0xff]
        %v1280 = vld [vmem:[#allocation10 + $0x38] sm:$0xff]
        %v1281 = vld [vmem:[#allocation10 + $0x40] sm:$0xff]
        %v1282 = vld [vmem:[#allocation10 + $0x48] sm:$0xff]
        %v1283 = vld [vmem:[#allocation10 + $0x50] sm:$0xff]
        %v1284 = vld [vmem:[#allocation10 + $0x58] sm:$0xff]
        %v1285 = vld [vmem:[#allocation10 + $0x60] sm:$0xff]
        %v1286 = vld [vmem:[#allocation10 + $0x68] sm:$0xff]
        %v1287 = vld [vmem:[#allocation10 + $0x70] sm:$0xff]
        %v1288 = vld [vmem:[#allocation10 + $0x78] sm:$0xff]
        %v1289 = vld [vmem:[#allocation10 + $0x80] sm:$0xff]
        %v1290 = vld [vmem:[#allocation10 + $0x88] sm:$0xff]
        %v1291 = vld [vmem:[#allocation10 + $0x90] sm:$0xff]
        %v1292 = vld [vmem:[#allocation10 + $0x98] sm:$0xff]
        %v1293 = vld [vmem:[#allocation10 + $0xa0] sm:$0xff]
        %v1294 = vld [vmem:[#allocation10 + $0xa8] sm:$0xff]
        %v1295 = vld [vmem:[#allocation10 + $0xb0] sm:$0xff]
        %v1296 = vld [vmem:[#allocation10 + $0xb8] sm:$0xff]
        %v1297 = vld [vmem:[#allocation10 + $0xc0] sm:$0xff]
        %v1298 = vld [vmem:[#allocation10 + $0xc8] sm:$0xff]
        %v1299 = vld [vmem:[#allocation10 + $0xd0] sm:$0xff]
        %v1300 = vld [vmem:[#allocation10 + $0xd8] sm:$0xff]
        %v1301 = vld [vmem:[#allocation10 + $0xe0] sm:$0xff]
        %v1302 = vld [vmem:[#allocation10 + $0xe8] sm:$0xff]
        %v1303 = vld [vmem:[#allocation10 + $0xf0] sm:$0xff]
        %v1304 = vld [vmem:[#allocation10 + $0xf8] sm:$0xff]
        %v1305 = vld [vmem:[#allocation10 + $0x100] sm:$0xff]
        %v1306 = vld [vmem:[#allocation10 + $0x108] sm:$0xff]
        %v1307 = vld [vmem:[#allocation10 + $0x110] sm:$0xff]
        %v1308 = vld [vmem:[#allocation10 + $0x118] sm:$0xff]
        %v1309 = vld [vmem:[#allocation10 + $0x120] sm:$0xff]
        %v1310 = vld [vmem:[#allocation10 + $0x128] sm:$0xff]
        %v1311 = vld [vmem:[#allocation10 + $0x130] sm:$0xff]
        %v1312 = vld [vmem:[#allocation10 + $0x138] sm:$0xff]
        %v1313 = vld [vmem:[#allocation10 + $0x140] sm:$0xff]
        %v1314 = vld [vmem:[#allocation10 + $0x148] sm:$0xff]
        %v1315 = vld [vmem:[#allocation10 + $0x150] sm:$0xff]
        %v1316 = vld [vmem:[#allocation10 + $0x158] sm:$0xff]
        %v1317 = vld [vmem:[#allocation10 + $0x160] sm:$0xff]
        %v1318 = vld [vmem:[#allocation10 + $0x168] sm:$0xff]
        %v1319 = vld [vmem:[#allocation10 + $0x170] sm:$0xff]
        %v1320 = vld [vmem:[#allocation10 + $0x178] sm:$0xff]
        %v1321 = vld [vmem:[#allocation10 + $0x180] sm:$0xff]
        %v1322 = vld [vmem:[#allocation10 + $0x188] sm:$0xff]
        %v1323 = vld [vmem:[#allocation10 + $0x190] sm:$0xff]
        %v1324 = vld [vmem:[#allocation10 + $0x198] sm:$0xff]
        %v1325 = vld [vmem:[#allocation10 + $0x1a0] sm:$0xff]
        %v1326 = vld [vmem:[#allocation10 + $0x1a8] sm:$0xff]
        %v1327 = vld [vmem:[#allocation10 + $0x1b0] sm:$0xff]
        %v1328 = vld [vmem:[#allocation10 + $0x1b8] sm:$0xff]
        %v1329 = vld [vmem:[#allocation10 + $0x1c0] sm:$0xff]
        %v1330 = vld [vmem:[#allocation10 + $0x1c8] sm:$0xff]
        %v1331 = vld [vmem:[#allocation10 + $0x1d0] sm:$0xff]
        %v1332 = vld [vmem:[#allocation10 + $0x1d8] sm:$0xff]
        %v1333 = vld [vmem:[#allocation10 + $0x1e0] sm:$0xff]
        %v1334 = vld [vmem:[#allocation10 + $0x1e8] sm:$0xff]
        %v1335 = vld [vmem:[#allocation10 + $0x1f0] sm:$0xff]
        %v1336 = vld [vmem:[#allocation10 + $0x1f8] sm:$0xff]
        %1337 = vmatprep.subr.mxu0 %v1274
        %1338 = vmatpush1.msra.mxu0 %v1273
        %1339 = vmatprep.subr.mxu0 %v1278
        %1340 = vmatpush1.msra.mxu0 %v1277
        %1341 = vmatprep.subr.mxu0 %v1282
        %1342 = vmatpush1.msra.mxu0 %v1281
        %1343 = vmatprep.subr.mxu0 %v1286
        %1344 = vmatpush1.msra.mxu0 %v1285
        %1345 = vmatprep.subr.mxu0 %v1290
        %1346 = vmatpush1.msra.mxu0 %v1289
        %1347 = vmatprep.subr.mxu0 %v1294
        %1348 = vmatpush1.msra.mxu0 %v1293
        %1349 = vmatprep.subr.mxu0 %v1298
        %1350 = vmatpush1.msra.mxu0 %v1297
        %1351 = vmatprep.subr.mxu0 %v1302
        %1352 = vmatpush1.msra.mxu0 %v1301
        %1353 = vmatprep.subr.mxu0 %v1306
        %1354 = vmatpush1.msra.mxu0 %v1305
        %1355 = vmatprep.subr.mxu0 %v1310
        %1356 = vmatpush1.msra.mxu0 %v1309
        %1357 = vmatprep.subr.mxu0 %v1314
        %1358 = vmatpush1.msra.mxu0 %v1313
        %1359 = vmatprep.subr.mxu0 %v1318
        %1360 = vmatpush1.msra.mxu0 %v1317
        %1361 = vmatprep.subr.mxu0 %v1322
        %1362 = vmatpush1.msra.mxu0 %v1321
        %1363 = vmatprep.subr.mxu0 %v1326
        %1364 = vmatpush1.msra.mxu0 %v1325
        %1365 = vmatprep.subr.mxu0 %v1330
        %1366 = vmatpush1.msra.mxu0 %v1329
        %1367 = vmatprep.subr.mxu0 %v1334
        %1368 = vmatpush1.msra.mxu0 %v1333
        %1369 = vmatprep.subr.mxu0 0.0
        %1370 = vmatpush1.msra.mxu0 0.0
        %1371 = vmatprep.subr.mxu0 0.0
        %1372 = vmatpush1.msra.mxu0 0.0
        %1373 = vmatprep.subr.mxu0 0.0
        %1374 = vmatpush1.msra.mxu0 0.0
        %1375 = vmatprep.subr.mxu0 0.0
        %1376 = vmatpush1.msra.mxu0 0.0
        %1377 = vmatprep.subr.mxu0 0.0
        %1378 = vmatpush1.msra.mxu0 0.0
        %1379 = vmatprep.subr.mxu0 0.0
        %1380 = vmatpush1.msra.mxu0 0.0
        %1381 = vmatprep.subr.mxu0 0.0
        %1382 = vmatpush1.msra.mxu0 0.0
        %1383 = vmatprep.subr.mxu0 0.0
        %1384 = vmatpush1.msra.mxu0 0.0
        %1385 = vmatprep.subr.mxu0 0.0
        %1386 = vmatpush1.msra.mxu0 0.0
        %1387 = vmatprep.subr.mxu0 0.0
        %1388 = vmatpush1.msra.mxu0 0.0
        %1389 = vmatprep.subr.mxu0 0.0
        %1390 = vmatpush1.msra.mxu0 0.0
        %1391 = vmatprep.subr.mxu0 0.0
        %1392 = vmatpush1.msra.mxu0 0.0
        %1393 = vmatprep.subr.mxu0 0.0
        %1394 = vmatpush1.msra.mxu0 0.0
        %1395 = vmatprep.subr.mxu0 0.0
        %1396 = vmatpush1.msra.mxu0 0.0
        %1397 = vmatprep.subr.mxu0 0.0
        %1398 = vmatpush1.msra.mxu0 0.0
        %1399 = vmatprep.subr.mxu0 0.0
        %1400 = vmatpush1.msra.mxu0 0.0
        %1401 = vmatprep.mubr.f32.mxu0 0.0
        %1402 = vmatmul.mubr.f32.gmra.mrb[0].mxu0 %v1272
        %v1403 = vpop.f32.mrb[0].mxu0
        %v1404 = vadd.f32 0.0, %v1403
        %v1405 = vpop.f32.mrb[0].mxu0
        %v1406 = vadd.f32 0.0, %v1405
        %1407 = vdwg.mxu0
        %1408 = vmatprep.subr.mxu0 %v1276
        %1409 = vmatpush1.msra.mxu0 %v1275
        %1410 = vmatprep.subr.mxu0 %v1280
        %1411 = vmatpush1.msra.mxu0 %v1279
        %1412 = vmatprep.subr.mxu0 %v1284
        %1413 = vmatpush1.msra.mxu0 %v1283
        %1414 = vmatprep.subr.mxu0 %v1288
        %1415 = vmatpush1.msra.mxu0 %v1287
        %1416 = vmatprep.subr.mxu0 %v1292
        %1417 = vmatpush1.msra.mxu0 %v1291
        %1418 = vmatprep.subr.mxu0 %v1296
        %1419 = vmatpush1.msra.mxu0 %v1295
        %1420 = vmatprep.subr.mxu0 %v1300
        %1421 = vmatpush1.msra.mxu0 %v1299
        %1422 = vmatprep.subr.mxu0 %v1304
        %1423 = vmatpush1.msra.mxu0 %v1303
        %1424 = vmatprep.subr.mxu0 %v1308
        %1425 = vmatpush1.msra.mxu0 %v1307
        %1426 = vmatprep.subr.mxu0 %v1312
        %1427 = vmatpush1.msra.mxu0 %v1311
        %1428 = vmatprep.subr.mxu0 %v1316
        %1429 = vmatpush1.msra.mxu0 %v1315
        %1430 = vmatprep.subr.mxu0 %v1320
        %1431 = vmatpush1.msra.mxu0 %v1319
        %1432 = vmatprep.subr.mxu0 %v1324
        %1433 = vmatpush1.msra.mxu0 %v1323
        %1434 = vmatprep.subr.mxu0 %v1328
        %1435 = vmatpush1.msra.mxu0 %v1327
        %1436 = vmatprep.subr.mxu0 %v1332
        %1437 = vmatpush1.msra.mxu0 %v1331
        %1438 = vmatprep.subr.mxu0 %v1336
        %1439 = vmatpush1.msra.mxu0 %v1335
        %1440 = vmatprep.subr.mxu0 0.0
        %1441 = vmatpush1.msra.mxu0 0.0
        %1442 = vmatprep.subr.mxu0 0.0
        %1443 = vmatpush1.msra.mxu0 0.0
        %1444 = vmatprep.subr.mxu0 0.0
        %1445 = vmatpush1.msra.mxu0 0.0
        %1446 = vmatprep.subr.mxu0 0.0
        %1447 = vmatpush1.msra.mxu0 0.0
        %1448 = vmatprep.subr.mxu0 0.0
        %1449 = vmatpush1.msra.mxu0 0.0
        %1450 = vmatprep.subr.mxu0 0.0
        %1451 = vmatpush1.msra.mxu0 0.0
        %1452 = vmatprep.subr.mxu0 0.0
        %1453 = vmatpush1.msra.mxu0 0.0
        %1454 = vmatprep.subr.mxu0 0.0
        %1455 = vmatpush1.msra.mxu0 0.0
        %1456 = vmatprep.subr.mxu0 0.0
        %1457 = vmatpush1.msra.mxu0 0.0
        %1458 = vmatprep.subr.mxu0 0.0
        %1459 = vmatpush1.msra.mxu0 0.0
        %1460 = vmatprep.subr.mxu0 0.0
        %1461 = vmatpush1.msra.mxu0 0.0
        %1462 = vmatprep.subr.mxu0 0.0
        %1463 = vmatpush1.msra.mxu0 0.0
        %1464 = vmatprep.subr.mxu0 0.0
        %1465 = vmatpush1.msra.mxu0 0.0
        %1466 = vmatprep.subr.mxu0 0.0
        %1467 = vmatpush1.msra.mxu0 0.0
        %1468 = vmatprep.subr.mxu0 0.0
        %1469 = vmatpush1.msra.mxu0 0.0
        %1470 = vmatprep.subr.mxu0 0.0
        %1471 = vmatpush1.msra.mxu0 0.0
        %1472 = vmatprep.mubr.f32.mxu0 0.0
        %1473 = vmatmul.mubr.f32.gmra.mrb[0].mxu0 %v1272
        %v1474 = vpop.f32.mrb[0].mxu0
        %v1475 = vadd.f32 0.0, %v1474
        %v1476 = vpop.f32.mrb[0].mxu0
        %v1477 = vadd.f32 0.0, %v1476
        %1478 = vdwg.mxu0
        %v1479 = vadd.f32 %v1268, %v1404
        %v1480 = vadd.f32 %v1269, %v1406
        %v1481 = vadd.f32 %v1270, %v1475
        %v1482 = vadd.f32 %v1271, %v1477
        %v1483 = vmul.f32 %v1479, 0.5
        %v1484 = vtanh.pop %v1483
        %v1485 = vmul.f32 %v1484, 0.5
        %v1486 = vadd.f32 %v1485, 0.5
        %v1487 = vmul.f32 %v1480, 0.5
        %v1488 = vtanh.pop %v1487
        %v1489 = vmul.f32 %v1488, 0.5
        %v1490 = vadd.f32 %v1489, 0.5
        %v1491 = vtanh.pop %v1481
        %v1492 = vmul.f32 %v1482, 0.5
        %v1493 = vtanh.pop %v1492
        %v1494 = vmul.f32 %v1493, 0.5
        %v1495 = vadd.f32 %v1494, 0.5
        %v1496 = vld [vmem:[#allocation3] sm:$0xff]
        %v1497 = vmul.f32 %v1490, %v1496
        %v1498 = vmul.f32 %v1486, %v1491
        %v1499 = vadd.f32 %v1497, %v1498
        %v1500 = vtanh.pop %v1499
        %v1501 = vmul.f32 %v1495, %v1500
        %1502 = vst [vmem:[#allocation2] sm:$0xff] %v1501
        %1503 = vst [vmem:[#allocation3] sm:$0xff] %v1499
        %s1504 = scalar_lea.vmem %s287, 32 [#allocation12]
        %1505 = vst [vmem:[%s1504] sm:$0xff] %v1501
        %s1506 = scalar_lea.vmem %s294, 32 [#allocation13]
        %1507 = vst [vmem:[%s1506] sm:$0xff] %v1499
        %s1508 = scalar_lea.vmem %s251, 160 [#allocation4]
        %v1509 = vld [vmem:[%s1508] sm:$0xff]
        %v1510 = vld [vmem:[%s1508 + $0x8] sm:$0xff]
        %v1511 = vld [vmem:[%s1508 + $0x10] sm:$0xff]
        %v1512 = vld [vmem:[%s1508 + $0x18] sm:$0xff]
        %v1513 = vld [vmem:[#allocation2] sm:$0xff]
        %v1514 = vld [vmem:[#allocation10] sm:$0xff]
        %v1515 = vld [vmem:[#allocation10 + $0x8] sm:$0xff]
        %v1516 = vld [vmem:[#allocation10 + $0x10] sm:$0xff]
        %v1517 = vld [vmem:[#allocation10 + $0x18] sm:$0xff]
        %v1518 = vld [vmem:[#allocation10 + $0x20] sm:$0xff]
        %v1519 = vld [vmem:[#allocation10 + $0x28] sm:$0xff]
        %v1520 = vld [vmem:[#allocation10 + $0x30] sm:$0xff]
        %v1521 = vld [vmem:[#allocation10 + $0x38] sm:$0xff]
        %v1522 = vld [vmem:[#allocation10 + $0x40] sm:$0xff]
        %v1523 = vld [vmem:[#allocation10 + $0x48] sm:$0xff]
        %v1524 = vld [vmem:[#allocation10 + $0x50] sm:$0xff]
        %v1525 = vld [vmem:[#allocation10 + $0x58] sm:$0xff]
        %v1526 = vld [vmem:[#allocation10 + $0x60] sm:$0xff]
        %v1527 = vld [vmem:[#allocation10 + $0x68] sm:$0xff]
        %v1528 = vld [vmem:[#allocation10 + $0x70] sm:$0xff]
        %v1529 = vld [vmem:[#allocation10 + $0x78] sm:$0xff]
        %v1530 = vld [vmem:[#allocation10 + $0x80] sm:$0xff]
        %v1531 = vld [vmem:[#allocation10 + $0x88] sm:$0xff]
        %v1532 = vld [vmem:[#allocation10 + $0x90] sm:$0xff]
        %v1533 = vld [vmem:[#allocation10 + $0x98] sm:$0xff]
        %v1534 = vld [vmem:[#allocation10 + $0xa0] sm:$0xff]
        %v1535 = vld [vmem:[#allocation10 + $0xa8] sm:$0xff]
        %v1536 = vld [vmem:[#allocation10 + $0xb0] sm:$0xff]
        %v1537 = vld [vmem:[#allocation10 + $0xb8] sm:$0xff]
        %v1538 = vld [vmem:[#allocation10 + $0xc0] sm:$0xff]
        %v1539 = vld [vmem:[#allocation10 + $0xc8] sm:$0xff]
        %v1540 = vld [vmem:[#allocation10 + $0xd0] sm:$0xff]
        %v1541 = vld [vmem:[#allocation10 + $0xd8] sm:$0xff]
        %v1542 = vld [vmem:[#allocation10 + $0xe0] sm:$0xff]
        %v1543 = vld [vmem:[#allocation10 + $0xe8] sm:$0xff]
        %v1544 = vld [vmem:[#allocation10 + $0xf0] sm:$0xff]
        %v1545 = vld [vmem:[#allocation10 + $0xf8] sm:$0xff]
        %v1546 = vld [vmem:[#allocation10 + $0x100] sm:$0xff]
        %v1547 = vld [vmem:[#allocation10 + $0x108] sm:$0xff]
        %v1548 = vld [vmem:[#allocation10 + $0x110] sm:$0xff]
        %v1549 = vld [vmem:[#allocation10 + $0x118] sm:$0xff]
        %v1550 = vld [vmem:[#allocation10 + $0x120] sm:$0xff]
        %v1551 = vld [vmem:[#allocation10 + $0x128] sm:$0xff]
        %v1552 = vld [vmem:[#allocation10 + $0x130] sm:$0xff]
        %v1553 = vld [vmem:[#allocation10 + $0x138] sm:$0xff]
        %v1554 = vld [vmem:[#allocation10 + $0x140] sm:$0xff]
        %v1555 = vld [vmem:[#allocation10 + $0x148] sm:$0xff]
        %v1556 = vld [vmem:[#allocation10 + $0x150] sm:$0xff]
        %v1557 = vld [vmem:[#allocation10 + $0x158] sm:$0xff]
        %v1558 = vld [vmem:[#allocation10 + $0x160] sm:$0xff]
        %v1559 = vld [vmem:[#allocation10 + $0x168] sm:$0xff]
        %v1560 = vld [vmem:[#allocation10 + $0x170] sm:$0xff]
        %v1561 = vld [vmem:[#allocation10 + $0x178] sm:$0xff]
        %v1562 = vld [vmem:[#allocation10 + $0x180] sm:$0xff]
        %v1563 = vld [vmem:[#allocation10 + $0x188] sm:$0xff]
        %v1564 = vld [vmem:[#allocation10 + $0x190] sm:$0xff]
        %v1565 = vld [vmem:[#allocation10 + $0x198] sm:$0xff]
        %v1566 = vld [vmem:[#allocation10 + $0x1a0] sm:$0xff]
        %v1567 = vld [vmem:[#allocation10 + $0x1a8] sm:$0xff]
        %v1568 = vld [vmem:[#allocation10 + $0x1b0] sm:$0xff]
        %v1569 = vld [vmem:[#allocation10 + $0x1b8] sm:$0xff]
        %v1570 = vld [vmem:[#allocation10 + $0x1c0] sm:$0xff]
        %v1571 = vld [vmem:[#allocation10 + $0x1c8] sm:$0xff]
        %v1572 = vld [vmem:[#allocation10 + $0x1d0] sm:$0xff]
        %v1573 = vld [vmem:[#allocation10 + $0x1d8] sm:$0xff]
        %v1574 = vld [vmem:[#allocation10 + $0x1e0] sm:$0xff]
        %v1575 = vld [vmem:[#allocation10 + $0x1e8] sm:$0xff]
        %v1576 = vld [vmem:[#allocation10 + $0x1f0] sm:$0xff]
        %v1577 = vld [vmem:[#allocation10 + $0x1f8] sm:$0xff]
        %1578 = vmatprep.subr.mxu0 %v1515
        %1579 = vmatpush1.msra.mxu0 %v1514
        %1580 = vmatprep.subr.mxu0 %v1519
        %1581 = vmatpush1.msra.mxu0 %v1518
        %1582 = vmatprep.subr.mxu0 %v1523
        %1583 = vmatpush1.msra.mxu0 %v1522
        %1584 = vmatprep.subr.mxu0 %v1527
        %1585 = vmatpush1.msra.mxu0 %v1526
        %1586 = vmatprep.subr.mxu0 %v1531
        %1587 = vmatpush1.msra.mxu0 %v1530
        %1588 = vmatprep.subr.mxu0 %v1535
        %1589 = vmatpush1.msra.mxu0 %v1534
        %1590 = vmatprep.subr.mxu0 %v1539
        %1591 = vmatpush1.msra.mxu0 %v1538
        %1592 = vmatprep.subr.mxu0 %v1543
        %1593 = vmatpush1.msra.mxu0 %v1542
        %1594 = vmatprep.subr.mxu0 %v1547
        %1595 = vmatpush1.msra.mxu0 %v1546
        %1596 = vmatprep.subr.mxu0 %v1551
        %1597 = vmatpush1.msra.mxu0 %v1550
        %1598 = vmatprep.subr.mxu0 %v1555
        %1599 = vmatpush1.msra.mxu0 %v1554
        %1600 = vmatprep.subr.mxu0 %v1559
        %1601 = vmatpush1.msra.mxu0 %v1558
        %1602 = vmatprep.subr.mxu0 %v1563
        %1603 = vmatpush1.msra.mxu0 %v1562
        %1604 = vmatprep.subr.mxu0 %v1567
        %1605 = vmatpush1.msra.mxu0 %v1566
        %1606 = vmatprep.subr.mxu0 %v1571
        %1607 = vmatpush1.msra.mxu0 %v1570
        %1608 = vmatprep.subr.mxu0 %v1575
        %1609 = vmatpush1.msra.mxu0 %v1574
        %1610 = vmatprep.subr.mxu0 0.0
        %1611 = vmatpush1.msra.mxu0 0.0
        %1612 = vmatprep.subr.mxu0 0.0
        %1613 = vmatpush1.msra.mxu0 0.0
        %1614 = vmatprep.subr.mxu0 0.0
        %1615 = vmatpush1.msra.mxu0 0.0
        %1616 = vmatprep.subr.mxu0 0.0
        %1617 = vmatpush1.msra.mxu0 0.0
        %1618 = vmatprep.subr.mxu0 0.0
        %1619 = vmatpush1.msra.mxu0 0.0
        %1620 = vmatprep.subr.mxu0 0.0
        %1621 = vmatpush1.msra.mxu0 0.0
        %1622 = vmatprep.subr.mxu0 0.0
        %1623 = vmatpush1.msra.mxu0 0.0
        %1624 = vmatprep.subr.mxu0 0.0
        %1625 = vmatpush1.msra.mxu0 0.0
        %1626 = vmatprep.subr.mxu0 0.0
        %1627 = vmatpush1.msra.mxu0 0.0
        %1628 = vmatprep.subr.mxu0 0.0
        %1629 = vmatpush1.msra.mxu0 0.0
        %1630 = vmatprep.subr.mxu0 0.0
        %1631 = vmatpush1.msra.mxu0 0.0
        %1632 = vmatprep.subr.mxu0 0.0
        %1633 = vmatpush1.msra.mxu0 0.0
        %1634 = vmatprep.subr.mxu0 0.0
        %1635 = vmatpush1.msra.mxu0 0.0
        %1636 = vmatprep.subr.mxu0 0.0
        %1637 = vmatpush1.msra.mxu0 0.0
        %1638 = vmatprep.subr.mxu0 0.0
        %1639 = vmatpush1.msra.mxu0 0.0
        %1640 = vmatprep.subr.mxu0 0.0
        %1641 = vmatpush1.msra.mxu0 0.0
        %1642 = vmatprep.mubr.f32.mxu0 0.0
        %1643 = vmatmul.mubr.f32.gmra.mrb[0].mxu0 %v1513
        %v1644 = vpop.f32.mrb[0].mxu0
        %v1645 = vadd.f32 0.0, %v1644
        %v1646 = vpop.f32.mrb[0].mxu0
        %v1647 = vadd.f32 0.0, %v1646
        %1648 = vdwg.mxu0
        %1649 = vmatprep.subr.mxu0 %v1517
        %1650 = vmatpush1.msra.mxu0 %v1516
        %1651 = vmatprep.subr.mxu0 %v1521
        %1652 = vmatpush1.msra.mxu0 %v1520
        %1653 = vmatprep.subr.mxu0 %v1525
        %1654 = vmatpush1.msra.mxu0 %v1524
        %1655 = vmatprep.subr.mxu0 %v1529
        %1656 = vmatpush1.msra.mxu0 %v1528
        %1657 = vmatprep.subr.mxu0 %v1533
        %1658 = vmatpush1.msra.mxu0 %v1532
        %1659 = vmatprep.subr.mxu0 %v1537
        %1660 = vmatpush1.msra.mxu0 %v1536
        %1661 = vmatprep.subr.mxu0 %v1541
        %1662 = vmatpush1.msra.mxu0 %v1540
        %1663 = vmatprep.subr.mxu0 %v1545
        %1664 = vmatpush1.msra.mxu0 %v1544
        %1665 = vmatprep.subr.mxu0 %v1549
        %1666 = vmatpush1.msra.mxu0 %v1548
        %1667 = vmatprep.subr.mxu0 %v1553
        %1668 = vmatpush1.msra.mxu0 %v1552
        %1669 = vmatprep.subr.mxu0 %v1557
        %1670 = vmatpush1.msra.mxu0 %v1556
        %1671 = vmatprep.subr.mxu0 %v1561
        %1672 = vmatpush1.msra.mxu0 %v1560
        %1673 = vmatprep.subr.mxu0 %v1565
        %1674 = vmatpush1.msra.mxu0 %v1564
        %1675 = vmatprep.subr.mxu0 %v1569
        %1676 = vmatpush1.msra.mxu0 %v1568
        %1677 = vmatprep.subr.mxu0 %v1573
        %1678 = vmatpush1.msra.mxu0 %v1572
        %1679 = vmatprep.subr.mxu0 %v1577
        %1680 = vmatpush1.msra.mxu0 %v1576
        %1681 = vmatprep.subr.mxu0 0.0
        %1682 = vmatpush1.msra.mxu0 0.0
        %1683 = vmatprep.subr.mxu0 0.0
        %1684 = vmatpush1.msra.mxu0 0.0
        %1685 = vmatprep.subr.mxu0 0.0
        %1686 = vmatpush1.msra.mxu0 0.0
        %1687 = vmatprep.subr.mxu0 0.0
        %1688 = vmatpush1.msra.mxu0 0.0
        %1689 = vmatprep.subr.mxu0 0.0
        %1690 = vmatpush1.msra.mxu0 0.0
        %1691 = vmatprep.subr.mxu0 0.0
        %1692 = vmatpush1.msra.mxu0 0.0
        %1693 = vmatprep.subr.mxu0 0.0
        %1694 = vmatpush1.msra.mxu0 0.0
        %1695 = vmatprep.subr.mxu0 0.0
        %1696 = vmatpush1.msra.mxu0 0.0
        %1697 = vmatprep.subr.mxu0 0.0
        %1698 = vmatpush1.msra.mxu0 0.0
        %1699 = vmatprep.subr.mxu0 0.0
        %1700 = vmatpush1.msra.mxu0 0.0
        %1701 = vmatprep.subr.mxu0 0.0
        %1702 = vmatpush1.msra.mxu0 0.0
        %1703 = vmatprep.subr.mxu0 0.0
        %1704 = vmatpush1.msra.mxu0 0.0
        %1705 = vmatprep.subr.mxu0 0.0
        %1706 = vmatpush1.msra.mxu0 0.0
        %1707 = vmatprep.subr.mxu0 0.0
        %1708 = vmatpush1.msra.mxu0 0.0
        %1709 = vmatprep.subr.mxu0 0.0
        %1710 = vmatpush1.msra.mxu0 0.0
        %1711 = vmatprep.subr.mxu0 0.0
        %1712 = vmatpush1.msra.mxu0 0.0
        %1713 = vmatprep.mubr.f32.mxu0 0.0
        %1714 = vmatmul.mubr.f32.gmra.mrb[0].mxu0 %v1513
        %v1715 = vpop.f32.mrb[0].mxu0
        %v1716 = vadd.f32 0.0, %v1715
        %v1717 = vpop.f32.mrb[0].mxu0
        %v1718 = vadd.f32 0.0, %v1717
        %1719 = vdwg.mxu0
        %v1720 = vadd.f32 %v1509, %v1645
        %v1721 = vadd.f32 %v1510, %v1647
        %v1722 = vadd.f32 %v1511, %v1716
        %v1723 = vadd.f32 %v1512, %v1718
        %v1724 = vmul.f32 %v1720, 0.5
        %v1725 = vtanh.pop %v1724
        %v1726 = vmul.f32 %v1725, 0.5
        %v1727 = vadd.f32 %v1726, 0.5
        %v1728 = vmul.f32 %v1721, 0.5
        %v1729 = vtanh.pop %v1728
        %v1730 = vmul.f32 %v1729, 0.5
        %v1731 = vadd.f32 %v1730, 0.5
        %v1732 = vtanh.pop %v1722
        %v1733 = vmul.f32 %v1723, 0.5
        %v1734 = vtanh.pop %v1733
        %v1735 = vmul.f32 %v1734, 0.5
        %v1736 = vadd.f32 %v1735, 0.5
        %v1737 = vld [vmem:[#allocation3] sm:$0xff]
        %v1738 = vmul.f32 %v1731, %v1737
        %v1739 = vmul.f32 %v1727, %v1732
        %v1740 = vadd.f32 %v1738, %v1739
        %v1741 = vtanh.pop %v1740
        %v1742 = vmul.f32 %v1736, %v1741
        %1743 = vst [vmem:[#allocation2] sm:$0xff] %v1742
        %1744 = vst [vmem:[#allocation3] sm:$0xff] %v1740
        %s1745 = scalar_lea.vmem %s287, 40 [#allocation12]
        %1746 = vst [vmem:[%s1745] sm:$0xff] %v1742
        %s1747 = scalar_lea.vmem %s294, 40 [#allocation13]
        %1748 = vst [vmem:[%s1747] sm:$0xff] %v1740
        %s1749 = scalar_lea.vmem %s251, 192 [#allocation4]
        %v1750 = vld [vmem:[%s1749] sm:$0xff]
        %v1751 = vld [vmem:[%s1749 + $0x8] sm:$0xff]
        %v1752 = vld [vmem:[%s1749 + $0x10] sm:$0xff]
        %v1753 = vld [vmem:[%s1749 + $0x18] sm:$0xff]
        %v1754 = vld [vmem:[#allocation2] sm:$0xff]
        %v1755 = vld [vmem:[#allocation10] sm:$0xff]
        %v1756 = vld [vmem:[#allocation10 + $0x8] sm:$0xff]
        %v1757 = vld [vmem:[#allocation10 + $0x10] sm:$0xff]
        %v1758 = vld [vmem:[#allocation10 + $0x18] sm:$0xff]
        %v1759 = vld [vmem:[#allocation10 + $0x20] sm:$0xff]
        %v1760 = vld [vmem:[#allocation10 + $0x28] sm:$0xff]
        %v1761 = vld [vmem:[#allocation10 + $0x30] sm:$0xff]
        %v1762 = vld [vmem:[#allocation10 + $0x38] sm:$0xff]
        %v1763 = vld [vmem:[#allocation10 + $0x40] sm:$0xff]
        %v1764 = vld [vmem:[#allocation10 + $0x48] sm:$0xff]
        %v1765 = vld [vmem:[#allocation10 + $0x50] sm:$0xff]
        %v1766 = vld [vmem:[#allocation10 + $0x58] sm:$0xff]
        %v1767 = vld [vmem:[#allocation10 + $0x60] sm:$0xff]
        %v1768 = vld [vmem:[#allocation10 + $0x68] sm:$0xff]
        %v1769 = vld [vmem:[#allocation10 + $0x70] sm:$0xff]
        %v1770 = vld [vmem:[#allocation10 + $0x78] sm:$0xff]
        %v1771 = vld [vmem:[#allocation10 + $0x80] sm:$0xff]
        %v1772 = vld [vmem:[#allocation10 + $0x88] sm:$0xff]
        %v1773 = vld [vmem:[#allocation10 + $0x90] sm:$0xff]
        %v1774 = vld [vmem:[#allocation10 + $0x98] sm:$0xff]
        %v1775 = vld [vmem:[#allocation10 + $0xa0] sm:$0xff]
        %v1776 = vld [vmem:[#allocation10 + $0xa8] sm:$0xff]
        %v1777 = vld [vmem:[#allocation10 + $0xb0] sm:$0xff]
        %v1778 = vld [vmem:[#allocation10 + $0xb8] sm:$0xff]
        %v1779 = vld [vmem:[#allocation10 + $0xc0] sm:$0xff]
        %v1780 = vld [vmem:[#allocation10 + $0xc8] sm:$0xff]
        %v1781 = vld [vmem:[#allocation10 + $0xd0] sm:$0xff]
        %v1782 = vld [vmem:[#allocation10 + $0xd8] sm:$0xff]
        %v1783 = vld [vmem:[#allocation10 + $0xe0] sm:$0xff]
        %v1784 = vld [vmem:[#allocation10 + $0xe8] sm:$0xff]
        %v1785 = vld [vmem:[#allocation10 + $0xf0] sm:$0xff]
        %v1786 = vld [vmem:[#allocation10 + $0xf8] sm:$0xff]
        %v1787 = vld [vmem:[#allocation10 + $0x100] sm:$0xff]
        %v1788 = vld [vmem:[#allocation10 + $0x108] sm:$0xff]
        %v1789 = vld [vmem:[#allocation10 + $0x110] sm:$0xff]
        %v1790 = vld [vmem:[#allocation10 + $0x118] sm:$0xff]
        %v1791 = vld [vmem:[#allocation10 + $0x120] sm:$0xff]
        %v1792 = vld [vmem:[#allocation10 + $0x128] sm:$0xff]
        %v1793 = vld [vmem:[#allocation10 + $0x130] sm:$0xff]
        %v1794 = vld [vmem:[#allocation10 + $0x138] sm:$0xff]
        %v1795 = vld [vmem:[#allocation10 + $0x140] sm:$0xff]
        %v1796 = vld [vmem:[#allocation10 + $0x148] sm:$0xff]
        %v1797 = vld [vmem:[#allocation10 + $0x150] sm:$0xff]
        %v1798 = vld [vmem:[#allocation10 + $0x158] sm:$0xff]
        %v1799 = vld [vmem:[#allocation10 + $0x160] sm:$0xff]
        %v1800 = vld [vmem:[#allocation10 + $0x168] sm:$0xff]
        %v1801 = vld [vmem:[#allocation10 + $0x170] sm:$0xff]
        %v1802 = vld [vmem:[#allocation10 + $0x178] sm:$0xff]
        %v1803 = vld [vmem:[#allocation10 + $0x180] sm:$0xff]
        %v1804 = vld [vmem:[#allocation10 + $0x188] sm:$0xff]
        %v1805 = vld [vmem:[#allocation10 + $0x190] sm:$0xff]
        %v1806 = vld [vmem:[#allocation10 + $0x198] sm:$0xff]
        %v1807 = vld [vmem:[#allocation10 + $0x1a0] sm:$0xff]
        %v1808 = vld [vmem:[#allocation10 + $0x1a8] sm:$0xff]
        %v1809 = vld [vmem:[#allocation10 + $0x1b0] sm:$0xff]
        %v1810 = vld [vmem:[#allocation10 + $0x1b8] sm:$0xff]
        %v1811 = vld [vmem:[#allocation10 + $0x1c0] sm:$0xff]
        %v1812 = vld [vmem:[#allocation10 + $0x1c8] sm:$0xff]
        %v1813 = vld [vmem:[#allocation10 + $0x1d0] sm:$0xff]
        %v1814 = vld [vmem:[#allocation10 + $0x1d8] sm:$0xff]
        %v1815 = vld [vmem:[#allocation10 + $0x1e0] sm:$0xff]
        %v1816 = vld [vmem:[#allocation10 + $0x1e8] sm:$0xff]
        %v1817 = vld [vmem:[#allocation10 + $0x1f0] sm:$0xff]
        %v1818 = vld [vmem:[#allocation10 + $0x1f8] sm:$0xff]
        %1819 = vmatprep.subr.mxu0 %v1756
        %1820 = vmatpush1.msra.mxu0 %v1755
        %1821 = vmatprep.subr.mxu0 %v1760
        %1822 = vmatpush1.msra.mxu0 %v1759
        %1823 = vmatprep.subr.mxu0 %v1764
        %1824 = vmatpush1.msra.mxu0 %v1763
        %1825 = vmatprep.subr.mxu0 %v1768
        %1826 = vmatpush1.msra.mxu0 %v1767
        %1827 = vmatprep.subr.mxu0 %v1772
        %1828 = vmatpush1.msra.mxu0 %v1771
        %1829 = vmatprep.subr.mxu0 %v1776
        %1830 = vmatpush1.msra.mxu0 %v1775
        %1831 = vmatprep.subr.mxu0 %v1780
        %1832 = vmatpush1.msra.mxu0 %v1779
        %1833 = vmatprep.subr.mxu0 %v1784
        %1834 = vmatpush1.msra.mxu0 %v1783
        %1835 = vmatprep.subr.mxu0 %v1788
        %1836 = vmatpush1.msra.mxu0 %v1787
        %1837 = vmatprep.subr.mxu0 %v1792
        %1838 = vmatpush1.msra.mxu0 %v1791
        %1839 = vmatprep.subr.mxu0 %v1796
        %1840 = vmatpush1.msra.mxu0 %v1795
        %1841 = vmatprep.subr.mxu0 %v1800
        %1842 = vmatpush1.msra.mxu0 %v1799
        %1843 = vmatprep.subr.mxu0 %v1804
        %1844 = vmatpush1.msra.mxu0 %v1803
        %1845 = vmatprep.subr.mxu0 %v1808
        %1846 = vmatpush1.msra.mxu0 %v1807
        %1847 = vmatprep.subr.mxu0 %v1812
        %1848 = vmatpush1.msra.mxu0 %v1811
        %1849 = vmatprep.subr.mxu0 %v1816
        %1850 = vmatpush1.msra.mxu0 %v1815
        %1851 = vmatprep.subr.mxu0 0.0
        %1852 = vmatpush1.msra.mxu0 0.0
        %1853 = vmatprep.subr.mxu0 0.0
        %1854 = vmatpush1.msra.mxu0 0.0
        %1855 = vmatprep.subr.mxu0 0.0
        %1856 = vmatpush1.msra.mxu0 0.0
        %1857 = vmatprep.subr.mxu0 0.0
        %1858 = vmatpush1.msra.mxu0 0.0
        %1859 = vmatprep.subr.mxu0 0.0
        %1860 = vmatpush1.msra.mxu0 0.0
        %1861 = vmatprep.subr.mxu0 0.0
        %1862 = vmatpush1.msra.mxu0 0.0
        %1863 = vmatprep.subr.mxu0 0.0
        %1864 = vmatpush1.msra.mxu0 0.0
        %1865 = vmatprep.subr.mxu0 0.0
        %1866 = vmatpush1.msra.mxu0 0.0
        %1867 = vmatprep.subr.mxu0 0.0
        %1868 = vmatpush1.msra.mxu0 0.0
        %1869 = vmatprep.subr.mxu0 0.0
        %1870 = vmatpush1.msra.mxu0 0.0
        %1871 = vmatprep.subr.mxu0 0.0
        %1872 = vmatpush1.msra.mxu0 0.0
        %1873 = vmatprep.subr.mxu0 0.0
        %1874 = vmatpush1.msra.mxu0 0.0
        %1875 = vmatprep.subr.mxu0 0.0
        %1876 = vmatpush1.msra.mxu0 0.0
        %1877 = vmatprep.subr.mxu0 0.0
        %1878 = vmatpush1.msra.mxu0 0.0
        %1879 = vmatprep.subr.mxu0 0.0
        %1880 = vmatpush1.msra.mxu0 0.0
        %1881 = vmatprep.subr.mxu0 0.0
        %1882 = vmatpush1.msra.mxu0 0.0
        %1883 = vmatprep.mubr.f32.mxu0 0.0
        %1884 = vmatmul.mubr.f32.gmra.mrb[0].mxu0 %v1754
        %v1885 = vpop.f32.mrb[0].mxu0
        %v1886 = vadd.f32 0.0, %v1885
        %v1887 = vpop.f32.mrb[0].mxu0
        %v1888 = vadd.f32 0.0, %v1887
        %1889 = vdwg.mxu0
        %1890 = vmatprep.subr.mxu0 %v1758
        %1891 = vmatpush1.msra.mxu0 %v1757
        %1892 = vmatprep.subr.mxu0 %v1762
        %1893 = vmatpush1.msra.mxu0 %v1761
        %1894 = vmatprep.subr.mxu0 %v1766
        %1895 = vmatpush1.msra.mxu0 %v1765
        %1896 = vmatprep.subr.mxu0 %v1770
        %1897 = vmatpush1.msra.mxu0 %v1769
        %1898 = vmatprep.subr.mxu0 %v1774
        %1899 = vmatpush1.msra.mxu0 %v1773
        %1900 = vmatprep.subr.mxu0 %v1778
        %1901 = vmatpush1.msra.mxu0 %v1777
        %1902 = vmatprep.subr.mxu0 %v1782
        %1903 = vmatpush1.msra.mxu0 %v1781
        %1904 = vmatprep.subr.mxu0 %v1786
        %1905 = vmatpush1.msra.mxu0 %v1785
        %1906 = vmatprep.subr.mxu0 %v1790
        %1907 = vmatpush1.msra.mxu0 %v1789
        %1908 = vmatprep.subr.mxu0 %v1794
        %1909 = vmatpush1.msra.mxu0 %v1793
        %1910 = vmatprep.subr.mxu0 %v1798
        %1911 = vmatpush1.msra.mxu0 %v1797
        %1912 = vmatprep.subr.mxu0 %v1802
        %1913 = vmatpush1.msra.mxu0 %v1801
        %1914 = vmatprep.subr.mxu0 %v1806
        %1915 = vmatpush1.msra.mxu0 %v1805
        %1916 = vmatprep.subr.mxu0 %v1810
        %1917 = vmatpush1.msra.mxu0 %v1809
        %1918 = vmatprep.subr.mxu0 %v1814
        %1919 = vmatpush1.msra.mxu0 %v1813
        %1920 = vmatprep.subr.mxu0 %v1818
        %1921 = vmatpush1.msra.mxu0 %v1817
        %1922 = vmatprep.subr.mxu0 0.0
        %1923 = vmatpush1.msra.mxu0 0.0
        %1924 = vmatprep.subr.mxu0 0.0
        %1925 = vmatpush1.msra.mxu0 0.0
        %1926 = vmatprep.subr.mxu0 0.0
        %1927 = vmatpush1.msra.mxu0 0.0
        %1928 = vmatprep.subr.mxu0 0.0
        %1929 = vmatpush1.msra.mxu0 0.0
        %1930 = vmatprep.subr.mxu0 0.0
        %1931 = vmatpush1.msra.mxu0 0.0
        %1932 = vmatprep.subr.mxu0 0.0
        %1933 = vmatpush1.msra.mxu0 0.0
        %1934 = vmatprep.subr.mxu0 0.0
        %1935 = vmatpush1.msra.mxu0 0.0
        %1936 = vmatprep.subr.mxu0 0.0
        %1937 = vmatpush1.msra.mxu0 0.0
        %1938 = vmatprep.subr.mxu0 0.0
        %1939 = vmatpush1.msra.mxu0 0.0
        %1940 = vmatprep.subr.mxu0 0.0
        %1941 = vmatpush1.msra.mxu0 0.0
        %1942 = vmatprep.subr.mxu0 0.0
        %1943 = vmatpush1.msra.mxu0 0.0
        %1944 = vmatprep.subr.mxu0 0.0
        %1945 = vmatpush1.msra.mxu0 0.0
        %1946 = vmatprep.subr.mxu0 0.0
        %1947 = vmatpush1.msra.mxu0 0.0
        %1948 = vmatprep.subr.mxu0 0.0
        %1949 = vmatpush1.msra.mxu0 0.0
        %1950 = vmatprep.subr.mxu0 0.0
        %1951 = vmatpush1.msra.mxu0 0.0
        %1952 = vmatprep.subr.mxu0 0.0
        %1953 = vmatpush1.msra.mxu0 0.0
        %1954 = vmatprep.mubr.f32.mxu0 0.0
        %1955 = vmatmul.mubr.f32.gmra.mrb[0].mxu0 %v1754
        %v1956 = vpop.f32.mrb[0].mxu0
        %v1957 = vadd.f32 0.0, %v1956
        %v1958 = vpop.f32.mrb[0].mxu0
        %v1959 = vadd.f32 0.0, %v1958
        %1960 = vdwg.mxu0
        %v1961 = vadd.f32 %v1750, %v1886
        %v1962 = vadd.f32 %v1751, %v1888
        %v1963 = vadd.f32 %v1752, %v1957
        %v1964 = vadd.f32 %v1753, %v1959
        %v1965 = vmul.f32 %v1961, 0.5
        %v1966 = vtanh.pop %v1965
        %v1967 = vmul.f32 %v1966, 0.5
        %v1968 = vadd.f32 %v1967, 0.5
        %v1969 = vmul.f32 %v1962, 0.5
        %v1970 = vtanh.pop %v1969
        %v1971 = vmul.f32 %v1970, 0.5
        %v1972 = vadd.f32 %v1971, 0.5
        %v1973 = vtanh.pop %v1963
        %v1974 = vmul.f32 %v1964, 0.5
        %v1975 = vtanh.pop %v1974
        %v1976 = vmul.f32 %v1975, 0.5
        %v1977 = vadd.f32 %v1976, 0.5
        %v1978 = vld [vmem:[#allocation3] sm:$0xff]
        %v1979 = vmul.f32 %v1972, %v1978
        %v1980 = vmul.f32 %v1968, %v1973
        %v1981 = vadd.f32 %v1979, %v1980
        %v1982 = vtanh.pop %v1981
        %v1983 = vmul.f32 %v1977, %v1982
        %1984 = vst [vmem:[#allocation2] sm:$0xff] %v1983
        %1985 = vst [vmem:[#allocation3] sm:$0xff] %v1981
        %s1986 = scalar_lea.vmem %s287, 48 [#allocation12]
        %1987 = vst [vmem:[%s1986] sm:$0xff] %v1983
        %s1988 = scalar_lea.vmem %s294, 48 [#allocation13]
        %1989 = vst [vmem:[%s1988] sm:$0xff] %v1981
        %s1990 = scalar_lea.vmem %s251, 224 [#allocation4]
        %v1991 = vld [vmem:[%s1990] sm:$0xff]
        %v1992 = vld [vmem:[%s1990 + $0x8] sm:$0xff]
        %v1993 = vld [vmem:[%s1990 + $0x10] sm:$0xff]
        %v1994 = vld [vmem:[%s1990 + $0x18] sm:$0xff]
        %v1995 = vld [vmem:[#allocation2] sm:$0xff]
        %v1996 = vld [vmem:[#allocation10] sm:$0xff]
        %v1997 = vld [vmem:[#allocation10 + $0x8] sm:$0xff]
        %v1998 = vld [vmem:[#allocation10 + $0x10] sm:$0xff]
        %v1999 = vld [vmem:[#allocation10 + $0x18] sm:$0xff]
        %v2000 = vld [vmem:[#allocation10 + $0x20] sm:$0xff]
        %v2001 = vld [vmem:[#allocation10 + $0x28] sm:$0xff]
        %v2002 = vld [vmem:[#allocation10 + $0x30] sm:$0xff]
        %v2003 = vld [vmem:[#allocation10 + $0x38] sm:$0xff]
        %v2004 = vld [vmem:[#allocation10 + $0x40] sm:$0xff]
        %v2005 = vld [vmem:[#allocation10 + $0x48] sm:$0xff]
        %v2006 = vld [vmem:[#allocation10 + $0x50] sm:$0xff]
        %v2007 = vld [vmem:[#allocation10 + $0x58] sm:$0xff]
        %v2008 = vld [vmem:[#allocation10 + $0x60] sm:$0xff]
        %v2009 = vld [vmem:[#allocation10 + $0x68] sm:$0xff]
        %v2010 = vld [vmem:[#allocation10 + $0x70] sm:$0xff]
        %v2011 = vld [vmem:[#allocation10 + $0x78] sm:$0xff]
        %v2012 = vld [vmem:[#allocation10 + $0x80] sm:$0xff]
        %v2013 = vld [vmem:[#allocation10 + $0x88] sm:$0xff]
        %v2014 = vld [vmem:[#allocation10 + $0x90] sm:$0xff]
        %v2015 = vld [vmem:[#allocation10 + $0x98] sm:$0xff]
        %v2016 = vld [vmem:[#allocation10 + $0xa0] sm:$0xff]
        %v2017 = vld [vmem:[#allocation10 + $0xa8] sm:$0xff]
        %v2018 = vld [vmem:[#allocation10 + $0xb0] sm:$0xff]
        %v2019 = vld [vmem:[#allocation10 + $0xb8] sm:$0xff]
        %v2020 = vld [vmem:[#allocation10 + $0xc0] sm:$0xff]
        %v2021 = vld [vmem:[#allocation10 + $0xc8] sm:$0xff]
        %v2022 = vld [vmem:[#allocation10 + $0xd0] sm:$0xff]
        %v2023 = vld [vmem:[#allocation10 + $0xd8] sm:$0xff]
        %v2024 = vld [vmem:[#allocation10 + $0xe0] sm:$0xff]
        %v2025 = vld [vmem:[#allocation10 + $0xe8] sm:$0xff]
        %v2026 = vld [vmem:[#allocation10 + $0xf0] sm:$0xff]
        %v2027 = vld [vmem:[#allocation10 + $0xf8] sm:$0xff]
        %v2028 = vld [vmem:[#allocation10 + $0x100] sm:$0xff]
        %v2029 = vld [vmem:[#allocation10 + $0x108] sm:$0xff]
        %v2030 = vld [vmem:[#allocation10 + $0x110] sm:$0xff]
        %v2031 = vld [vmem:[#allocation10 + $0x118] sm:$0xff]
        %v2032 = vld [vmem:[#allocation10 + $0x120] sm:$0xff]
        %v2033 = vld [vmem:[#allocation10 + $0x128] sm:$0xff]
        %v2034 = vld [vmem:[#allocation10 + $0x130] sm:$0xff]
        %v2035 = vld [vmem:[#allocation10 + $0x138] sm:$0xff]
        %v2036 = vld [vmem:[#allocation10 + $0x140] sm:$0xff]
        %v2037 = vld [vmem:[#allocation10 + $0x148] sm:$0xff]
        %v2038 = vld [vmem:[#allocation10 + $0x150] sm:$0xff]
        %v2039 = vld [vmem:[#allocation10 + $0x158] sm:$0xff]
        %v2040 = vld [vmem:[#allocation10 + $0x160] sm:$0xff]
        %v2041 = vld [vmem:[#allocation10 + $0x168] sm:$0xff]
        %v2042 = vld [vmem:[#allocation10 + $0x170] sm:$0xff]
        %v2043 = vld [vmem:[#allocation10 + $0x178] sm:$0xff]
        %v2044 = vld [vmem:[#allocation10 + $0x180] sm:$0xff]
        %v2045 = vld [vmem:[#allocation10 + $0x188] sm:$0xff]
        %v2046 = vld [vmem:[#allocation10 + $0x190] sm:$0xff]
        %v2047 = vld [vmem:[#allocation10 + $0x198] sm:$0xff]
        %v2048 = vld [vmem:[#allocation10 + $0x1a0] sm:$0xff]
        %v2049 = vld [vmem:[#allocation10 + $0x1a8] sm:$0xff]
        %v2050 = vld [vmem:[#allocation10 + $0x1b0] sm:$0xff]
        %v2051 = vld [vmem:[#allocation10 + $0x1b8] sm:$0xff]
        %v2052 = vld [vmem:[#allocation10 + $0x1c0] sm:$0xff]
        %v2053 = vld [vmem:[#allocation10 + $0x1c8] sm:$0xff]
        %v2054 = vld [vmem:[#allocation10 + $0x1d0] sm:$0xff]
        %v2055 = vld [vmem:[#allocation10 + $0x1d8] sm:$0xff]
        %v2056 = vld [vmem:[#allocation10 + $0x1e0] sm:$0xff]
        %v2057 = vld [vmem:[#allocation10 + $0x1e8] sm:$0xff]
        %v2058 = vld [vmem:[#allocation10 + $0x1f0] sm:$0xff]
        %v2059 = vld [vmem:[#allocation10 + $0x1f8] sm:$0xff]
        %2060 = vmatprep.subr.mxu0 %v1997
        %2061 = vmatpush1.msra.mxu0 %v1996
        %2062 = vmatprep.subr.mxu0 %v2001
        %2063 = vmatpush1.msra.mxu0 %v2000
        %2064 = vmatprep.subr.mxu0 %v2005
        %2065 = vmatpush1.msra.mxu0 %v2004
        %2066 = vmatprep.subr.mxu0 %v2009
        %2067 = vmatpush1.msra.mxu0 %v2008
        %2068 = vmatprep.subr.mxu0 %v2013
        %2069 = vmatpush1.msra.mxu0 %v2012
        %2070 = vmatprep.subr.mxu0 %v2017
        %2071 = vmatpush1.msra.mxu0 %v2016
        %2072 = vmatprep.subr.mxu0 %v2021
        %2073 = vmatpush1.msra.mxu0 %v2020
        %2074 = vmatprep.subr.mxu0 %v2025
        %2075 = vmatpush1.msra.mxu0 %v2024
        %2076 = vmatprep.subr.mxu0 %v2029
        %2077 = vmatpush1.msra.mxu0 %v2028
        %2078 = vmatprep.subr.mxu0 %v2033
        %2079 = vmatpush1.msra.mxu0 %v2032
        %2080 = vmatprep.subr.mxu0 %v2037
        %2081 = vmatpush1.msra.mxu0 %v2036
        %2082 = vmatprep.subr.mxu0 %v2041
        %2083 = vmatpush1.msra.mxu0 %v2040
        %2084 = vmatprep.subr.mxu0 %v2045
        %2085 = vmatpush1.msra.mxu0 %v2044
        %2086 = vmatprep.subr.mxu0 %v2049
        %2087 = vmatpush1.msra.mxu0 %v2048
        %2088 = vmatprep.subr.mxu0 %v2053
        %2089 = vmatpush1.msra.mxu0 %v2052
        %2090 = vmatprep.subr.mxu0 %v2057
        %2091 = vmatpush1.msra.mxu0 %v2056
        %2092 = vmatprep.subr.mxu0 0.0
        %2093 = vmatpush1.msra.mxu0 0.0
        %2094 = vmatprep.subr.mxu0 0.0
        %2095 = vmatpush1.msra.mxu0 0.0
        %2096 = vmatprep.subr.mxu0 0.0
        %2097 = vmatpush1.msra.mxu0 0.0
        %2098 = vmatprep.subr.mxu0 0.0
        %2099 = vmatpush1.msra.mxu0 0.0
        %2100 = vmatprep.subr.mxu0 0.0
        %2101 = vmatpush1.msra.mxu0 0.0
        %2102 = vmatprep.subr.mxu0 0.0
        %2103 = vmatpush1.msra.mxu0 0.0
        %2104 = vmatprep.subr.mxu0 0.0
        %2105 = vmatpush1.msra.mxu0 0.0
        %2106 = vmatprep.subr.mxu0 0.0
        %2107 = vmatpush1.msra.mxu0 0.0
        %2108 = vmatprep.subr.mxu0 0.0
        %2109 = vmatpush1.msra.mxu0 0.0
        %2110 = vmatprep.subr.mxu0 0.0
        %2111 = vmatpush1.msra.mxu0 0.0
        %2112 = vmatprep.subr.mxu0 0.0
        %2113 = vmatpush1.msra.mxu0 0.0
        %2114 = vmatprep.subr.mxu0 0.0
        %2115 = vmatpush1.msra.mxu0 0.0
        %2116 = vmatprep.subr.mxu0 0.0
        %2117 = vmatpush1.msra.mxu0 0.0
        %2118 = vmatprep.subr.mxu0 0.0
        %2119 = vmatpush1.msra.mxu0 0.0
        %2120 = vmatprep.subr.mxu0 0.0
        %2121 = vmatpush1.msra.mxu0 0.0
        %2122 = vmatprep.subr.mxu0 0.0
        %2123 = vmatpush1.msra.mxu0 0.0
        %2124 = vmatprep.mubr.f32.mxu0 0.0
        %2125 = vmatmul.mubr.f32.gmra.mrb[0].mxu0 %v1995
        %v2126 = vpop.f32.mrb[0].mxu0
        %v2127 = vadd.f32 0.0, %v2126
        %v2128 = vpop.f32.mrb[0].mxu0
        %v2129 = vadd.f32 0.0, %v2128
        %2130 = vdwg.mxu0
        %2131 = vmatprep.subr.mxu0 %v1999
        %2132 = vmatpush1.msra.mxu0 %v1998
        %2133 = vmatprep.subr.mxu0 %v2003
        %2134 = vmatpush1.msra.mxu0 %v2002
        %2135 = vmatprep.subr.mxu0 %v2007
        %2136 = vmatpush1.msra.mxu0 %v2006
        %2137 = vmatprep.subr.mxu0 %v2011
        %2138 = vmatpush1.msra.mxu0 %v2010
        %2139 = vmatprep.subr.mxu0 %v2015
        %2140 = vmatpush1.msra.mxu0 %v2014
        %2141 = vmatprep.subr.mxu0 %v2019
        %2142 = vmatpush1.msra.mxu0 %v2018
        %2143 = vmatprep.subr.mxu0 %v2023
        %2144 = vmatpush1.msra.mxu0 %v2022
        %2145 = vmatprep.subr.mxu0 %v2027
        %2146 = vmatpush1.msra.mxu0 %v2026
        %2147 = vmatprep.subr.mxu0 %v2031
        %2148 = vmatpush1.msra.mxu0 %v2030
        %2149 = vmatprep.subr.mxu0 %v2035
        %2150 = vmatpush1.msra.mxu0 %v2034
        %2151 = vmatprep.subr.mxu0 %v2039
        %2152 = vmatpush1.msra.mxu0 %v2038
        %2153 = vmatprep.subr.mxu0 %v2043
        %2154 = vmatpush1.msra.mxu0 %v2042
        %2155 = vmatprep.subr.mxu0 %v2047
        %2156 = vmatpush1.msra.mxu0 %v2046
        %2157 = vmatprep.subr.mxu0 %v2051
        %2158 = vmatpush1.msra.mxu0 %v2050
        %2159 = vmatprep.subr.mxu0 %v2055
        %2160 = vmatpush1.msra.mxu0 %v2054
        %2161 = vmatprep.subr.mxu0 %v2059
        %2162 = vmatpush1.msra.mxu0 %v2058
        %2163 = vmatprep.subr.mxu0 0.0
        %2164 = vmatpush1.msra.mxu0 0.0
        %2165 = vmatprep.subr.mxu0 0.0
        %2166 = vmatpush1.msra.mxu0 0.0
        %2167 = vmatprep.subr.mxu0 0.0
        %2168 = vmatpush1.msra.mxu0 0.0
        %2169 = vmatprep.subr.mxu0 0.0
        %2170 = vmatpush1.msra.mxu0 0.0
        %2171 = vmatprep.subr.mxu0 0.0
        %2172 = vmatpush1.msra.mxu0 0.0
        %2173 = vmatprep.subr.mxu0 0.0
        %2174 = vmatpush1.msra.mxu0 0.0
        %2175 = vmatprep.subr.mxu0 0.0
        %2176 = vmatpush1.msra.mxu0 0.0
        %2177 = vmatprep.subr.mxu0 0.0
        %2178 = vmatpush1.msra.mxu0 0.0
        %2179 = vmatprep.subr.mxu0 0.0
        %2180 = vmatpush1.msra.mxu0 0.0
        %2181 = vmatprep.subr.mxu0 0.0
        %2182 = vmatpush1.msra.mxu0 0.0
        %2183 = vmatprep.subr.mxu0 0.0
        %2184 = vmatpush1.msra.mxu0 0.0
        %2185 = vmatprep.subr.mxu0 0.0
        %2186 = vmatpush1.msra.mxu0 0.0
        %2187 = vmatprep.subr.mxu0 0.0
        %2188 = vmatpush1.msra.mxu0 0.0
        %2189 = vmatprep.subr.mxu0 0.0
        %2190 = vmatpush1.msra.mxu0 0.0
        %2191 = vmatprep.subr.mxu0 0.0
        %2192 = vmatpush1.msra.mxu0 0.0
        %2193 = vmatprep.subr.mxu0 0.0
        %2194 = vmatpush1.msra.mxu0 0.0
        %2195 = vmatprep.mubr.f32.mxu0 0.0
        %2196 = vmatmul.mubr.f32.gmra.mrb[0].mxu0 %v1995
        %v2197 = vpop.f32.mrb[0].mxu0
        %v2198 = vadd.f32 0.0, %v2197
        %v2199 = vpop.f32.mrb[0].mxu0
        %v2200 = vadd.f32 0.0, %v2199
        %2201 = vdwg.mxu0
        %v2202 = vadd.f32 %v1991, %v2127
        %v2203 = vadd.f32 %v1992, %v2129
        %v2204 = vadd.f32 %v1993, %v2198
        %v2205 = vadd.f32 %v1994, %v2200
        %v2206 = vmul.f32 %v2202, 0.5
        %v2207 = vtanh.pop %v2206
        %v2208 = vmul.f32 %v2207, 0.5
        %v2209 = vadd.f32 %v2208, 0.5
        %v2210 = vmul.f32 %v2203, 0.5
        %v2211 = vtanh.pop %v2210
        %v2212 = vmul.f32 %v2211, 0.5
        %v2213 = vadd.f32 %v2212, 0.5
        %v2214 = vtanh.pop %v2204
        %v2215 = vmul.f32 %v2205, 0.5
        %v2216 = vtanh.pop %v2215
        %v2217 = vmul.f32 %v2216, 0.5
        %v2218 = vadd.f32 %v2217, 0.5
        %v2219 = vld [vmem:[#allocation3] sm:$0xff]
        %v2220 = vmul.f32 %v2213, %v2219
        %v2221 = vmul.f32 %v2209, %v2214
        %v2222 = vadd.f32 %v2220, %v2221
        %v2223 = vtanh.pop %v2222
        %v2224 = vmul.f32 %v2218, %v2223
        %2225 = vst [vmem:[#allocation2] sm:$0xff] %v2224
        %2226 = vst [vmem:[#allocation3] sm:$0xff] %v2222
        %s2227 = scalar_lea.vmem %s287, 56 [#allocation12]
        %2228 = vst [vmem:[%s2227] sm:$0xff] %v2224
        %s2229 = scalar_lea.vmem %s294, 56 [#allocation13]
        %2230 = vst [vmem:[%s2229] sm:$0xff] %v2222
        %s2231 = sand.u32 %s125, 1
        %s2232 = scalar_lea.sflag [#allocation6], %s2231
        %s2233 = sand.u32 %s125, 1
        %s2234 = smul.addr %s2233, 64
        %s2235 = scalar_lea.vmem [#allocation12], %s2234
        %s2236 = sand.u32 %s151, 1
        %s2237 = scalar_lea.sflag [#allocation14], %s2236
        %s2238 = sand.u32 %s151, 1
        %s2239 = smul.addr %s2238, 64
        %s2240 = scalar_lea.vmem [#allocation13], %s2239
        // Predicated region
        $region57: #{tpu_custom_call.1} parent=35 // pred_check
          %p2241 = pneg %p135
        $region58: #{tpu_custom_call.1} parent=35 // pred_check_branch
          %2243 = sbr.rel (%p2241) target = $region60
        $region59: #{tpu_custom_call.1} parent=35 // pred_region
          %s2244 = smul.u32 8, %s28
          %s2246 = ssub.s32 1024, 1024
          %2247 = vsyncadd %s2232, %s2246
          %s2248 = smul.addr %s2244, 128
          %s2249 = scalar_lea.hbm %s4, %s2248
          %s2250 = sshll.u32 %s2235, 4
          %s2251 = int_to_ptr.vmem [resolvable:$true] %s2250
          %2256 = dma.vmem_to_hbm [thread:$0]  %s2251, 1024, %s2249, %s2232, 128, 128, 8
        $region60: #{tpu_custom_call.1} parent=35 // pred_fallthru
          _
        // Predicated region
        $region61: #{tpu_custom_call.1} parent=35 // pred_check
          %p2257 = pneg %p161
        $region62: #{tpu_custom_call.1} parent=35 // pred_check_branch
          %2259 = sbr.rel (%p2257) target = $region64
        $region63: #{tpu_custom_call.1} parent=35 // pred_region
          %s2260 = smul.u32 8, %s28
          %s2262 = ssub.s32 1024, 1024
          %2263 = vsyncadd %s2237, %s2262
          %s2264 = smul.addr %s2260, 128
          %s2265 = scalar_lea.hbm %s5, %s2264
          %s2266 = sshll.u32 %s2240, 4
          %s2267 = int_to_ptr.vmem [resolvable:$true] %s2266
          %2272 = dma.vmem_to_hbm [thread:$0]  %s2267, 1024, %s2265, %s2237, 128, 128, 8
        $region64: #{tpu_custom_call.1} parent=35 // pred_fallthru
          _
      $region36: #{tpu_custom_call.1} parent=5 // pred_fallthru
        _
      %p2273 = scmp.le.s32.totalorder 2, %s23
      // Predicated region
      $region65: #{tpu_custom_call.1} parent=5 // pred_check
        %p2274 = pneg %p2273
      $region66: #{tpu_custom_call.1} parent=5 // pred_check_branch
        %2276 = sbr.rel (%p2274) target = $region68
      $region67: #{tpu_custom_call.1} parent=5 // pred_region
        %s2277 = ssub.s32 %s23, 2
        // Predicated region
        $region69: #{tpu_custom_call.1} parent=67 // pred_check
          %p2278 = pneg %p141
        $region70: #{tpu_custom_call.1} parent=67 // pred_check_branch
          %2280 = sbr.rel (%p2278) target = $region72
        $region71: #{tpu_custom_call.1} parent=67 // pred_region
          %s2281 = sand.u32 %s126, 1
          %s2282 = scalar_lea.sflag [#allocation6], %s2281
          %s2283 = sand.u32 %s126, 1
          %s2284 = smul.addr %s2283, 64
          %s2285 = scalar_lea.vmem [#allocation12], %s2284
          %2286 = dma.done %s2282, 1024
        $region72: #{tpu_custom_call.1} parent=67 // pred_fallthru
          _
        // Predicated region
        $region73: #{tpu_custom_call.1} parent=67 // pred_check
          %p2287 = pneg %p167
        $region74: #{tpu_custom_call.1} parent=67 // pred_check_branch
          %2289 = sbr.rel (%p2287) target = $region76
        $region75: #{tpu_custom_call.1} parent=67 // pred_region
          %s2290 = sand.u32 %s152, 1
          %s2291 = scalar_lea.sflag [#allocation14], %s2290
          %s2292 = sand.u32 %s152, 1
          %s2293 = smul.addr %s2292, 64
          %s2294 = scalar_lea.vmem [#allocation13], %s2293
          %2295 = dma.done %s2291, 1024
        $region76: #{tpu_custom_call.1} parent=67 // pred_fallthru
          _
      $region68: #{tpu_custom_call.1} parent=5 // pred_fallthru
        _
    $region6: #{tpu_custom_call.1} parent=1 // loop_footer
      %s27 = sadd.s32 1, %s23
    $region7: #{tpu_custom_call.1} parent=1 // loop_footer_branch
      %22 = sbr.rel target = $region3
    $region8: #{tpu_custom_call.1} parent=1 // loop_exit
      _
    %2296 = vsyncpa [#allocation5], 1
    %s2297 = scalar_lea.sflag [#allocation5], 1
    %2298 = vsyncpa %s2297, 1
    %2299 = vsyncpa [#allocation8], 1
    %2300 = vsyncpa [#allocation11], 1
    %2301 = vsyncpa [#allocation6], 1
    %s2302 = scalar_lea.sflag [#allocation6], 1
    %2303 = vsyncpa %s2302, 1
    %2304 = vsyncpa [#allocation14], 1
    %s2305 = scalar_lea.sflag [#allocation14], 1
    %2306 = vsyncpa %s2305, 1

</llo_original>
